<compile_context>
chip_gen: v6e
topology: v6e:2x2x1
jax: 0.10.0
libtpu: 0.0.40
codegen_flags: <defaults>
</compile_context>

<pallas_src>
import jax
import jax.numpy as jnp
from jax.experimental import pallas as pl
from jax.experimental.pallas import tpu as pltpu

QUERY_CHANNEL = 3
LATENT_CHANNEL = 192
OUTPUT_CHANNEL = 3
EMBED_DIM = 48
HIDDEN = 512


def _round_up(a, b):
    return (a + b - 1) // b * b


def make_basis():
    # e = 2**arange(8) * pi ; basis shape (3, 24), block diagonal.
    e = (2.0 ** jnp.arange(EMBED_DIM // 6, dtype=jnp.float32)) * jnp.pi
    z = jnp.zeros(EMBED_DIM // 6, dtype=jnp.float32)
    basis = jnp.stack([
        jnp.concatenate([e, z, z]),
        jnp.concatenate([z, e, z]),
        jnp.concatenate([z, z, e]),
    ]).astype(jnp.float32)
    return basis


def weight_norm_linear(key, out_dim, in_dim):
    """Deterministic init of a weight_norm'd Linear; returns effective (W, b)."""
    kv, kb = jax.random.split(key)
    v = jax.random.normal(kv, (out_dim, in_dim), jnp.float32) * 0.05
    g = jnp.ones((out_dim, 1), jnp.float32)
    b = jax.random.normal(kb, (out_dim,), jnp.float32) * 0.01
    w = g * v / jnp.linalg.norm(v, axis=1, keepdims=True)  # PyTorch weight_norm(dim=0)
    return w, b


def init_params(key):
    k1, k2, k3, k4 = jax.random.split(key, 4)
    basis = make_basis()
    l1 = weight_norm_linear(k1, HIDDEN, QUERY_CHANNEL + LATENT_CHANNEL + EMBED_DIM)
    l2 = weight_norm_linear(k2, HIDDEN, HIDDEN)
    l3 = weight_norm_linear(k3, HIDDEN, HIDDEN)
    lo = weight_norm_linear(k4, OUTPUT_CHANNEL, HIDDEN)
    return basis, l1, l2, l3, lo


def implicit_mlp_kernel(x_ref, z_ref, pe_ref,
                        w1x_ref, w1z_ref, w1sc_ref, b1_ref,
                        w2_ref, b2_ref, w3_ref, b3_ref,
                        wo_ref, bo_ref,
                        o_ref):
    f32 = jnp.float32
    bf16 = jnp.bfloat16

    x = x_ref[...].astype(f32)                      # (tm, 3) f32 (sin/cos needs f32 range reduction)

    # Positional embedding on the VPU. pe_ref is (4, 48): rows 0..2 are [basis | basis]
    # (block-diagonal, so x @ basis == sum_k x[:,k]*basis[k]) and row 3 is the phase
    # [0]*24 + [pi/2]*24 so that sin(t + pi/2) == cos(t). One EUP sin, no MXU pass,
    # no in-kernel lane concat; column order matches the reference cat([sin, cos]).
    proj = (x[:, 0:1] * pe_ref[0:1, :]
            + x[:, 1:2] * pe_ref[1:2, :]
            + x[:, 2:3] * pe_ref[2:3, :]
            + pe_ref[3:4, :])                       # (tm, 48) f32
    sc = jnp.sin(proj)                              # (tm, 48) == [sin(x@basis) | cos(x@basis)]

    # Layer 1:
    #   x  (K=3)   -> f32 VPU broadcast-mul/add (exact, no wasted MXU pass)
    #   z  (K=192) -> bf16 MXU pass
    #   sc (K=48)  -> single merged bf16 MXU pass
    h = (x[:, 0:1] * w1x_ref[0:1, :]
         + x[:, 1:2] * w1x_ref[1:2, :]
         + x[:, 2:3] * w1x_ref[2:3, :])             # (tm, 512) f32
    h = h + jnp.dot(z_ref[...].astype(bf16), w1z_ref[...], preferred_element_type=f32)
    h = h + jnp.dot(sc.astype(bf16), w1sc_ref[...], preferred_element_type=f32)
    h = jnp.maximum(h + b1_ref[...], 0.0)           # bias + ReLU in f32

    h = jnp.maximum(
        jnp.dot(h.astype(bf16), w2_ref[...], preferred_element_type=f32) + b2_ref[...], 0.0)
    h = jnp.maximum(
        jnp.dot(h.astype(bf16), w3_ref[...], preferred_element_type=f32) + b3_ref[...], 0.0)

    # Output lane-padded to 128 (lane-dense unmasked stores); cols >= 3 are exactly zero
    # (zero-padded weight & bias) and are sliced off in the wrapper.
    o_ref[...] = jnp.dot(h.astype(bf16), wo_ref[...], preferred_element_type=f32) + bo_ref[...]


def implicit_mlp(x, z, params, *, tm=1024):
    B, N, Cq = x.shape
    Cl = z.shape[-1]
    M = B * N

    basis, (w1, b1), (w2, b2), (w3, b3), (wo, bo) = params
    H = w1.shape[0]
    Co = wo.shape[0]
    Co_pad = _round_up(Co, 128)

    # No host-side concat/pad of the activations: reshapes are free (contiguous), the ragged
    # last row-tile is handled by Pallas partial-block masking.
    x2 = x.reshape(M, Cq).astype(jnp.float32)
    z2 = z.reshape(M, Cl)                            # dtype kept; cast to bf16 in-kernel

    # Positional-embedding operand: duplicated basis + sin->cos phase row (see kernel).
    half = EMBED_DIM // 2
    phase = jnp.concatenate([jnp.zeros((half,), jnp.float32),
                             jnp.full((half,), jnp.pi / 2, jnp.float32)]).reshape(1, EMBED_DIM)
    pe_mat = jnp.concatenate([jnp.concatenate([basis, basis], axis=1), phase], axis=0)  # (4, 48)

    # Effective weights transposed to (in, out); W1 split matching the reference concat order
    # [x | sin | cos | z]. x slice stays f32 (VPU path); the rest are bf16 MXU operands
    # (tiny one-off host casts of resident weights, not a per-row HBM pass).
    bf16 = jnp.bfloat16
    w1t = w1.T                                                       # (243, H)
    w1x = w1t[:Cq].astype(jnp.float32)                               # (3,  H) f32
    w1sc = w1t[Cq:Cq + EMBED_DIM].astype(bf16)                       # (48, H) merged sin|cos
    w1z = w1t[Cq + EMBED_DIM:].astype(bf16)                          # (192,H)
    w2t = w2.T.astype(bf16)
    w3t = w3.T.astype(bf16)
    wot = jnp.zeros((H, Co_pad), bf16).at[:, :Co].set(wo.T.astype(bf16))      # lane-padded
    bop = jnp.zeros((1, Co_pad), jnp.float32).at[:, :Co].set(bo.reshape(1, Co))

    # Row tile: large enough to fill the MXU M dim and amortize per-step overhead, but capped so
    # there are >= 2 grid steps whenever possible (v7x has 2 TensorCores sharing the parallel axis).
    tm = max(8, min(tm, _round_up(pl.cdiv(M, 2), 8)))
    grid = (pl.cdiv(M, tm),)

    def const_spec(shape):
        return pl.BlockSpec(shape, lambda i: (0,) * len(shape))

    out = pl.pallas_call(
        implicit_mlp_kernel,
        out_shape=jax.ShapeDtypeStruct((M, Co_pad), jnp.float32),
        grid_spec=pltpu.PrefetchScalarGridSpec(
            num_scalar_prefetch=0,
            grid=grid,
            in_specs=[
                pl.BlockSpec((tm, Cq), lambda i: (i, 0)),    # x row tile
                pl.BlockSpec((tm, Cl), lambda i: (i, 0)),    # z row tile
                const_spec(pe_mat.shape),
                const_spec(w1x.shape), const_spec(w1z.shape), const_spec(w1sc.shape),
                const_spec((1, H)),
                const_spec(w2t.shape), const_spec((1, H)),
                const_spec(w3t.shape), const_spec((1, H)),
                const_spec(wot.shape), const_spec((1, Co_pad)),
            ],
            out_specs=pl.BlockSpec((tm, Co_pad), lambda i: (i, 0)),  # lane-dense output tile
        ),
        compiler_params=pltpu.CompilerParams(
            dimension_semantics=("parallel",),
            # ~10-20 MB actually used at tm=1024; explicit limit raises v5e's 16 MiB default and
            # stays well under v7x's 64 MiB physical VMEM.
            vmem_limit_bytes=48 * 1024 * 1024),
    )(x2, z2, pe_mat,
      w1x, w1z, w1sc, b1.reshape(1, H),
      w2t, b2.reshape(1, H),
      w3t, b3.reshape(1, H),
      wot, bop)

    return out[:, :Co].reshape(B, N, Co)


def reference(x, z, params):
    basis, (w1, b1), (w2, b2), (w3, b3), (wo, bo) = params
    proj = jnp.einsum('bnd,de->bne', x, basis)
    pe = jnp.concatenate([jnp.sin(proj), jnp.cos(proj)], axis=2)
    inp = jnp.concatenate([x, pe, z], axis=2)
    h = jax.nn.relu(inp @ w1.T + b1)
    h = jax.nn.relu(h @ w2.T + b2)
    h = jax.nn.relu(h @ w3.T + b3)
    return h @ wo.T + bo


if __name__ == "__main__":
    key = jax.random.PRNGKey(0)
    kx, kz, kx2, kz2, kx3, kz3, kp = jax.random.split(key, 7)

    params = init_params(kp)

    # bf16 MXU operands (f32 accumulation) vs the pure-f32 reference -> ~1e-2 level deviation.
    RTOL = ATOL = 3e-2

    # Small shape consistent with the module (B=2, N=8 query points). tm shrinks to 8,
    # grid has 2 steps.
    B, N = 2, 8
    x = jax.random.uniform(kx, (B, N, QUERY_CHANNEL), jnp.float32, minval=-1.0, maxval=1.0)
    z = jax.random.normal(kz, (B, N, LATENT_CHANNEL), jnp.float32)
    out = jax.block_until_ready(implicit_mlp(x, z, params))
    ref = jax.block_until_ready(reference(x, z, params))
    assert out.shape == (B, N, OUTPUT_CHANNEL), out.shape
    assert jnp.allclose(out, ref, rtol=RTOL, atol=ATOL), float(jnp.max(jnp.abs(out - ref)))

    # Ragged row count: 2 grid steps with a partial (masked) last row tile.
    B2, N2 = 2, 333
    x2 = jax.random.uniform(kx2, (B2, N2, QUERY_CHANNEL), jnp.float32, minval=-1.0, maxval=1.0)
    z2 = jax.random.normal(kz2, (B2, N2, LATENT_CHANNEL), jnp.float32)
    out2 = jax.block_until_ready(implicit_mlp(x2, z2, params))
    ref2 = jax.block_until_ready(reference(x2, z2, params))
    assert out2.shape == (B2, N2, OUTPUT_CHANNEL), out2.shape
    assert jnp.allclose(out2, ref2, rtol=RTOL, atol=ATOL), float(jnp.max(jnp.abs(out2 - ref2)))

    # Larger row count: exercises the full tm=1024 tile, a 3-step parallel grid and a
    # partial last block at full tile size.
    B3, N3 = 2, 1200
    x3 = jax.random.uniform(kx3, (B3, N3, QUERY_CHANNEL), jnp.float32, minval=-1.0, maxval=1.0)
    z3 = jax.random.normal(kz3, (B3, N3, LATENT_CHANNEL), jnp.float32)
    out3 = jax.block_until_ready(implicit_mlp(x3, z3, params))
    ref3 = jax.block_until_ready(reference(x3, z3, params))
    assert out3.shape == (B3, N3, OUTPUT_CHANNEL), out3.shape
    assert jnp.allclose(out3, ref3, rtol=RTOL, atol=ATOL), float(jnp.max(jnp.abs(out3 - ref3)))

    print("KERNEL_OK")
</pallas_src>

<mosaic_0001>
module attributes {stable_mosaic.version = 11 : i64} {
  func.func @implicit_mlp_kernel(%arg0: i32, %arg1: memref<8x3xf32, #tpu.memory_space<vmem>>, %arg2: memref<8x192xf32, #tpu.memory_space<vmem>>, %arg3: memref<4x48xf32, #tpu.memory_space<vmem>>, %arg4: memref<3x512xf32, #tpu.memory_space<vmem>>, %arg5: memref<192x512xbf16, #tpu.memory_space<vmem>>, %arg6: memref<48x512xbf16, #tpu.memory_space<vmem>>, %arg7: memref<1x512xf32, #tpu.memory_space<vmem>>, %arg8: memref<512x512xbf16, #tpu.memory_space<vmem>>, %arg9: memref<1x512xf32, #tpu.memory_space<vmem>>, %arg10: memref<512x512xbf16, #tpu.memory_space<vmem>>, %arg11: memref<1x512xf32, #tpu.memory_space<vmem>>, %arg12: memref<512x128xbf16, #tpu.memory_space<vmem>>, %arg13: memref<1x128xf32, #tpu.memory_space<vmem>>, %arg14: memref<8x128xf32, #tpu.memory_space<vmem>>) attributes {dimension_semantics = [#tpu.dimension_semantics<parallel>], iteration_bounds = array<i64: 2>, scalar_prefetch = 0 : i64, scratch_operands = 0 : i64, tpu.core_type = #tpu.core_type<tc>, window_params = [{transform_indices = @transform_0, window_bounds = array<i64: 8, 3>}, {transform_indices = @transform_1, window_bounds = array<i64: 8, 192>}, {pipeline_mode = #tpu.pipeline_mode<synchronous>, transform_indices = @transform_2, window_bounds = array<i64: 4, 48>}, {pipeline_mode = #tpu.pipeline_mode<synchronous>, transform_indices = @transform_3, window_bounds = array<i64: 3, 512>}, {pipeline_mode = #tpu.pipeline_mode<synchronous>, transform_indices = @transform_4, window_bounds = array<i64: 192, 512>}, {pipeline_mode = #tpu.pipeline_mode<synchronous>, transform_indices = @transform_5, window_bounds = array<i64: 48, 512>}, {pipeline_mode = #tpu.pipeline_mode<synchronous>, transform_indices = @transform_6, window_bounds = array<i64: 1, 512>}, {pipeline_mode = #tpu.pipeline_mode<synchronous>, transform_indices = @transform_7, window_bounds = array<i64: 512, 512>}, {pipeline_mode = #tpu.pipeline_mode<synchronous>, transform_indices = @transform_8, window_bounds = array<i64: 1, 512>}, {pipeline_mode = #tpu.pipeline_mode<synchronous>, transform_indices = @transform_9, window_bounds = array<i64: 512, 512>}, {pipeline_mode = #tpu.pipeline_mode<synchronous>, transform_indices = @transform_10, window_bounds = array<i64: 1, 512>}, {pipeline_mode = #tpu.pipeline_mode<synchronous>, transform_indices = @transform_11, window_bounds = array<i64: 512, 128>}, {pipeline_mode = #tpu.pipeline_mode<synchronous>, transform_indices = @transform_12, window_bounds = array<i64: 1, 128>}, {transform_indices = @transform_13, window_bounds = array<i64: 8, 128>}]} {
    %c0 = arith.constant 0 : index
    %c0_0 = arith.constant 0 : index
    %0 = vector.load %arg1[%c0, %c0_0] : memref<8x3xf32, #tpu.memory_space<vmem>>, vector<8x3xf32>
    %1 = vector.extract_strided_slice %0 {offsets = [0, 0], sizes = [8, 1], strides = [1, 1]} : vector<8x3xf32> to vector<8x1xf32>
    %c0_1 = arith.constant 0 : index
    %c0_2 = arith.constant 0 : index
    %2 = vector.load %arg3[%c0_1, %c0_2] : memref<4x48xf32, #tpu.memory_space<vmem>>, vector<1x48xf32>
    %3 = vector.broadcast %1 : vector<8x1xf32> to vector<8x48xf32>
    %4 = vector.broadcast %2 : vector<1x48xf32> to vector<8x48xf32>
    %5 = arith.mulf %3, %4 : vector<8x48xf32>
    %6 = vector.extract_strided_slice %0 {offsets = [0, 1], sizes = [8, 1], strides = [1, 1]} : vector<8x3xf32> to vector<8x1xf32>
    %c1 = arith.constant 1 : index
    %c0_3 = arith.constant 0 : index
    %7 = vector.load %arg3[%c1, %c0_3] : memref<4x48xf32, #tpu.memory_space<vmem>>, vector<1x48xf32>
    %8 = vector.broadcast %6 : vector<8x1xf32> to vector<8x48xf32>
    %9 = vector.broadcast %7 : vector<1x48xf32> to vector<8x48xf32>
    %10 = arith.mulf %8, %9 : vector<8x48xf32>
    %11 = arith.addf %5, %10 : vector<8x48xf32>
    %12 = vector.extract_strided_slice %0 {offsets = [0, 2], sizes = [8, 1], strides = [1, 1]} : vector<8x3xf32> to vector<8x1xf32>
    %c2 = arith.constant 2 : index
    %c0_4 = arith.constant 0 : index
    %13 = vector.load %arg3[%c2, %c0_4] : memref<4x48xf32, #tpu.memory_space<vmem>>, vector<1x48xf32>
    %14 = vector.broadcast %12 : vector<8x1xf32> to vector<8x48xf32>
    %15 = vector.broadcast %13 : vector<1x48xf32> to vector<8x48xf32>
    %16 = arith.mulf %14, %15 : vector<8x48xf32>
    %17 = arith.addf %11, %16 : vector<8x48xf32>
    %c3 = arith.constant 3 : index
    %c0_5 = arith.constant 0 : index
    %18 = vector.load %arg3[%c3, %c0_5] : memref<4x48xf32, #tpu.memory_space<vmem>>, vector<1x48xf32>
    %19 = vector.broadcast %18 : vector<1x48xf32> to vector<8x48xf32>
    %20 = arith.addf %17, %19 : vector<8x48xf32>
    %21 = math.sin %20 : vector<8x48xf32>
    %22 = vector.extract_strided_slice %0 {offsets = [0, 0], sizes = [8, 1], strides = [1, 1]} : vector<8x3xf32> to vector<8x1xf32>
    %c0_6 = arith.constant 0 : index
    %c0_7 = arith.constant 0 : index
    %23 = vector.load %arg4[%c0_6, %c0_7] : memref<3x512xf32, #tpu.memory_space<vmem>>, vector<1x512xf32>
    %24 = vector.broadcast %22 : vector<8x1xf32> to vector<8x512xf32>
    %25 = vector.broadcast %23 : vector<1x512xf32> to vector<8x512xf32>
    %26 = arith.mulf %24, %25 : vector<8x512xf32>
    %27 = vector.extract_strided_slice %0 {offsets = [0, 1], sizes = [8, 1], strides = [1, 1]} : vector<8x3xf32> to vector<8x1xf32>
    %c1_8 = arith.constant 1 : index
    %c0_9 = arith.constant 0 : index
    %28 = vector.load %arg4[%c1_8, %c0_9] : memref<3x512xf32, #tpu.memory_space<vmem>>, vector<1x512xf32>
    %29 = vector.broadcast %27 : vector<8x1xf32> to vector<8x512xf32>
    %30 = vector.broadcast %28 : vector<1x512xf32> to vector<8x512xf32>
    %31 = arith.mulf %29, %30 : vector<8x512xf32>
    %32 = arith.addf %26, %31 : vector<8x512xf32>
    %33 = vector.extract_strided_slice %0 {offsets = [0, 2], sizes = [8, 1], strides = [1, 1]} : vector<8x3xf32> to vector<8x1xf32>
    %c2_10 = arith.constant 2 : index
    %c0_11 = arith.constant 0 : index
    %34 = vector.load %arg4[%c2_10, %c0_11] : memref<3x512xf32, #tpu.memory_space<vmem>>, vector<1x512xf32>
    %35 = vector.broadcast %33 : vector<8x1xf32> to vector<8x512xf32>
    %36 = vector.broadcast %34 : vector<1x512xf32> to vector<8x512xf32>
    %37 = arith.mulf %35, %36 : vector<8x512xf32>
    %38 = arith.addf %32, %37 : vector<8x512xf32>
    %c0_12 = arith.constant 0 : index
    %c0_13 = arith.constant 0 : index
    %39 = vector.load %arg2[%c0_12, %c0_13] : memref<8x192xf32, #tpu.memory_space<vmem>>, vector<8x192xf32>
    %40 = arith.truncf %39 : vector<8x192xf32> to vector<8x192xbf16>
    %c0_14 = arith.constant 0 : index
    %c0_15 = arith.constant 0 : index
    %41 = vector.load %arg5[%c0_14, %c0_15] : memref<192x512xbf16, #tpu.memory_space<vmem>>, vector<192x512xbf16>
    %cst = arith.constant dense<0.000000e+00> : vector<8x512xf32>
    %42 = tpu.matmul %40, %41, %cst {dimension_numbers = #tpu.dot_dimension_numbers<[1], [0], [0], [1], [0, 0, 1, 1], [], []>} : vector<8x192xbf16>, vector<192x512xbf16>, vector<8x512xf32> -> vector<8x512xf32>
    %43 = arith.addf %38, %42 : vector<8x512xf32>
    %44 = arith.truncf %21 : vector<8x48xf32> to vector<8x48xbf16>
    %c0_16 = arith.constant 0 : index
    %c0_17 = arith.constant 0 : index
    %45 = vector.load %arg6[%c0_16, %c0_17] : memref<48x512xbf16, #tpu.memory_space<vmem>>, vector<48x512xbf16>
    %cst_18 = arith.constant dense<0.000000e+00> : vector<8x512xf32>
    %46 = tpu.matmul %44, %45, %cst_18 {dimension_numbers = #tpu.dot_dimension_numbers<[1], [0], [0], [1], [0, 0, 1, 1], [], []>} : vector<8x48xbf16>, vector<48x512xbf16>, vector<8x512xf32> -> vector<8x512xf32>
    %47 = arith.addf %43, %46 : vector<8x512xf32>
    %c0_19 = arith.constant 0 : index
    %c0_20 = arith.constant 0 : index
    %48 = vector.load %arg7[%c0_19, %c0_20] : memref<1x512xf32, #tpu.memory_space<vmem>>, vector<1x512xf32>
    %49 = vector.broadcast %48 : vector<1x512xf32> to vector<8x512xf32>
    %50 = arith.addf %47, %49 : vector<8x512xf32>
    %cst_21 = arith.constant 0.000000e+00 : f32
    %51 = vector.broadcast %cst_21 : f32 to vector<8x512xf32>
    %52 = arith.maximumf %50, %51 : vector<8x512xf32>
    %53 = arith.truncf %52 : vector<8x512xf32> to vector<8x512xbf16>
    %c0_22 = arith.constant 0 : index
    %c0_23 = arith.constant 0 : index
    %54 = vector.load %arg8[%c0_22, %c0_23] : memref<512x512xbf16, #tpu.memory_space<vmem>>, vector<512x512xbf16>
    %cst_24 = arith.constant dense<0.000000e+00> : vector<8x512xf32>
    %55 = tpu.matmul %53, %54, %cst_24 {dimension_numbers = #tpu.dot_dimension_numbers<[1], [0], [0], [1], [0, 0, 1, 1], [], []>} : vector<8x512xbf16>, vector<512x512xbf16>, vector<8x512xf32> -> vector<8x512xf32>
    %c0_25 = arith.constant 0 : index
    %c0_26 = arith.constant 0 : index
    %56 = vector.load %arg9[%c0_25, %c0_26] : memref<1x512xf32, #tpu.memory_space<vmem>>, vector<1x512xf32>
    %57 = vector.broadcast %56 : vector<1x512xf32> to vector<8x512xf32>
    %58 = arith.addf %55, %57 : vector<8x512xf32>
    %cst_27 = arith.constant 0.000000e+00 : f32
    %59 = vector.broadcast %cst_27 : f32 to vector<8x512xf32>
    %60 = arith.maximumf %58, %59 : vector<8x512xf32>
    %61 = arith.truncf %60 : vector<8x512xf32> to vector<8x512xbf16>
    %c0_28 = arith.constant 0 : index
    %c0_29 = arith.constant 0 : index
    %62 = vector.load %arg10[%c0_28, %c0_29] : memref<512x512xbf16, #tpu.memory_space<vmem>>, vector<512x512xbf16>
    %cst_30 = arith.constant dense<0.000000e+00> : vector<8x512xf32>
    %63 = tpu.matmul %61, %62, %cst_30 {dimension_numbers = #tpu.dot_dimension_numbers<[1], [0], [0], [1], [0, 0, 1, 1], [], []>} : vector<8x512xbf16>, vector<512x512xbf16>, vector<8x512xf32> -> vector<8x512xf32>
    %c0_31 = arith.constant 0 : index
    %c0_32 = arith.constant 0 : index
    %64 = vector.load %arg11[%c0_31, %c0_32] : memref<1x512xf32, #tpu.memory_space<vmem>>, vector<1x512xf32>
    %65 = vector.broadcast %64 : vector<1x512xf32> to vector<8x512xf32>
    %66 = arith.addf %63, %65 : vector<8x512xf32>
    %cst_33 = arith.constant 0.000000e+00 : f32
    %67 = vector.broadcast %cst_33 : f32 to vector<8x512xf32>
    %68 = arith.maximumf %66, %67 : vector<8x512xf32>
    %69 = arith.truncf %68 : vector<8x512xf32> to vector<8x512xbf16>
    %c0_34 = arith.constant 0 : index
    %c0_35 = arith.constant 0 : index
    %70 = vector.load %arg12[%c0_34, %c0_35] : memref<512x128xbf16, #tpu.memory_space<vmem>>, vector<512x128xbf16>
    %cst_36 = arith.constant dense<0.000000e+00> : vector<8x128xf32>
    %71 = tpu.matmul %69, %70, %cst_36 {dimension_numbers = #tpu.dot_dimension_numbers<[1], [0], [0], [1], [0, 0, 1, 1], [], []>} : vector<8x512xbf16>, vector<512x128xbf16>, vector<8x128xf32> -> vector<8x128xf32>
    %c0_37 = arith.constant 0 : index
    %c0_38 = arith.constant 0 : index
    %72 = vector.load %arg13[%c0_37, %c0_38] : memref<1x128xf32, #tpu.memory_space<vmem>>, vector<1x128xf32>
    %73 = vector.broadcast %72 : vector<1x128xf32> to vector<8x128xf32>
    %74 = arith.addf %71, %73 : vector<8x128xf32>
    %c0_39 = arith.constant 0 : index
    %c0_40 = arith.constant 0 : index
    %75 = vector.load %arg14[%c0_39, %c0_40] : memref<8x128xf32, #tpu.memory_space<vmem>>, vector<8x128xf32>
    tpu.vector_store %arg14[%c0_39, %c0_40], %74 {strides = array<i32>} : memref<8x128xf32, #tpu.memory_space<vmem>>, vector<8x128xf32>,
    return
  }
  func.func @transform_0(%arg0: i32) -> (i32, i32) {
    %c0_i32 = arith.constant 0 : i32
    %c0_i32_0 = arith.constant 0 : i32
    return %arg0, %c0_i32 : i32, i32
  }
  func.func @transform_1(%arg0: i32) -> (i32, i32) {
    %c0_i32 = arith.constant 0 : i32
    %c0_i32_0 = arith.constant 0 : i32
    return %arg0, %c0_i32 : i32, i32
  }
  func.func @transform_2(%arg0: i32) -> (i32, i32) {
    %c0_i32 = arith.constant 0 : i32
    %c0_i32_0 = arith.constant 0 : i32
    %c0_i32_1 = arith.constant 0 : i32
    return %c0_i32, %c0_i32_0 : i32, i32
  }
  func.func @transform_3(%arg0: i32) -> (i32, i32) {
    %c0_i32 = arith.constant 0 : i32
    %c0_i32_0 = arith.constant 0 : i32
    %c0_i32_1 = arith.constant 0 : i32
    return %c0_i32, %c0_i32_0 : i32, i32
  }
  func.func @transform_4(%arg0: i32) -> (i32, i32) {
    %c0_i32 = arith.constant 0 : i32
    %c0_i32_0 = arith.constant 0 : i32
    %c0_i32_1 = arith.constant 0 : i32
    return %c0_i32, %c0_i32_0 : i32, i32
  }
  func.func @transform_5(%arg0: i32) -> (i32, i32) {
    %c0_i32 = arith.constant 0 : i32
    %c0_i32_0 = arith.constant 0 : i32
    %c0_i32_1 = arith.constant 0 : i32
    return %c0_i32, %c0_i32_0 : i32, i32
  }
  func.func @transform_6(%arg0: i32) -> (i32, i32) {
    %c0_i32 = arith.constant 0 : i32
    %c0_i32_0 = arith.constant 0 : i32
    %c0_i32_1 = arith.constant 0 : i32
    return %c0_i32, %c0_i32_0 : i32, i32
  }
  func.func @transform_7(%arg0: i32) -> (i32, i32) {
    %c0_i32 = arith.constant 0 : i32
    %c0_i32_0 = arith.constant 0 : i32
    %c0_i32_1 = arith.constant 0 : i32
    return %c0_i32, %c0_i32_0 : i32, i32
  }
  func.func @transform_8(%arg0: i32) -> (i32, i32) {
    %c0_i32 = arith.constant 0 : i32
    %c0_i32_0 = arith.constant 0 : i32
    %c0_i32_1 = arith.constant 0 : i32
    return %c0_i32, %c0_i32_0 : i32, i32
  }
  func.func @transform_9(%arg0: i32) -> (i32, i32) {
    %c0_i32 = arith.constant 0 : i32
    %c0_i32_0 = arith.constant 0 : i32
    %c0_i32_1 = arith.constant 0 : i32
    return %c0_i32, %c0_i32_0 : i32, i32
  }
  func.func @transform_10(%arg0: i32) -> (i32, i32) {
    %c0_i32 = arith.constant 0 : i32
    %c0_i32_0 = arith.constant 0 : i32
    %c0_i32_1 = arith.constant 0 : i32
    return %c0_i32, %c0_i32_0 : i32, i32
  }
  func.func @transform_11(%arg0: i32) -> (i32, i32) {
    %c0_i32 = arith.constant 0 : i32
    %c0_i32_0 = arith.constant 0 : i32
    %c0_i32_1 = arith.constant 0 : i32
    return %c0_i32, %c0_i32_0 : i32, i32
  }
  func.func @transform_12(%arg0: i32) -> (i32, i32) {
    %c0_i32 = arith.constant 0 : i32
    %c0_i32_0 = arith.constant 0 : i32
    %c0_i32_1 = arith.constant 0 : i32
    return %c0_i32, %c0_i32_0 : i32, i32
  }
  func.func @transform_13(%arg0: i32) -> (i32, i32) {
    %c0_i32 = arith.constant 0 : i32
    %c0_i32_0 = arith.constant 0 : i32
    return %arg0, %c0_i32 : i32, i32
  }
}

</mosaic_0001>

<llo_original>
// kernel: tpu_custom_call.1
$region0: #{tpu_custom_call.1}
  #allocation0 [shape = 'u32[]', space=smem, size = 0x4, offset = 0x4, fixed_abs, tag = 'smem constant byte address 0x4 - core index']
  #allocation1 [shape = 'u32[144,128]{1,0:T(1,128)}', space=vmem, size = 0x12000, scoped, tag = 'internal scratch']
  %s0 = inlined_call_operand.vmem [shape: f32[16,3], index: 0, kind: input, shape index: {}]
  %s1 = inlined_call_operand.hbm [shape: f32[16,192], index: 1, kind: input, shape index: {}]
  %s2 = inlined_call_operand.vmem [shape: f32[4,48], index: 2, kind: input, shape index: {}]
  %s3 = inlined_call_operand.vmem [shape: f32[3,512], index: 3, kind: input, shape index: {}]
  %s4 = inlined_call_operand.hbm [shape: bf16[192,512], index: 4, kind: input, shape index: {}]
  %s5 = inlined_call_operand.hbm [shape: bf16[48,512], index: 5, kind: input, shape index: {}]
  %s6 = inlined_call_operand.vmem [shape: f32[1,512], index: 6, kind: input, shape index: {}]
  %s7 = inlined_call_operand.hbm [shape: bf16[512,512], index: 7, kind: input, shape index: {}]
  %s8 = inlined_call_operand.vmem [shape: f32[1,512], index: 8, kind: input, shape index: {}]
  %s9 = inlined_call_operand.hbm [shape: bf16[512,512], index: 9, kind: input, shape index: {}]
  %s10 = inlined_call_operand.vmem [shape: f32[1,512], index: 10, kind: input, shape index: {}]
  %s11 = inlined_call_operand.hbm [shape: bf16[512,128], index: 11, kind: input, shape index: {}]
  %s12 = inlined_call_operand.vmem [shape: f32[1,128], index: 12, kind: input, shape index: {}]
  %s13 = inlined_call_operand.hbm [shape: f32[16,128], index: 13, kind: output, shape index: {}]
  %s14 = sld [smem:[#allocation0]]
  $region109: #{tpu_custom_call.1} parent=0
    _
  %s16 = ssub.s32 1, %s14
  %s17 = scalar_select 0, %s16, %s14
  $region1: #{tpu_custom_call.1} parent=0
    #allocation2 [shape = 'u8[16384]{0}', space=vmem, size = 0x4000, scoped, tag = 'input window, operand 1']
    #allocation3 [shape = 's32[2]{0}', space=sflag, size = 0x8, scoped, tag = 'scoped memory for tpu_custom_call.1']
    #allocation4 [shape = 's32[2]{0}', space=sflag, size = 0x8, scoped, tag = 'scoped memory for tpu_custom_call.1']
    #allocation5 [shape = 'u8[196608]{0}', space=vmem, size = 0x30000, scoped, tag = 'input window, operand 4, single buffered']
    #allocation6 [shape = 's32[1]{0}', space=sflag, size = 0x4, scoped, tag = 'scoped memory for tpu_custom_call.1']
    #allocation7 [shape = 'u8[49152]{0}', space=vmem, size = 0xc000, scoped, tag = 'input window, operand 5, single buffered']
    #allocation8 [shape = 'u8[524288]{0}', space=vmem, size = 0x80000, scoped, tag = 'input window, operand 7, single buffered']
    #allocation9 [shape = 's32[1]{0}', space=sflag, size = 0x4, scoped, tag = 'scoped memory for tpu_custom_call.1']
    #allocation10 [shape = 'u8[524288]{0}', space=vmem, size = 0x80000, scoped, tag = 'input window, operand 9, single buffered']
    #allocation11 [shape = 'u8[131072]{0}', space=vmem, size = 0x20000, scoped, tag = 'input window, operand 11, single buffered']
    #allocation12 [shape = 's32[1]{0}', space=sflag, size = 0x4, scoped, tag = 'scoped memory for tpu_custom_call.1']
    #allocation13 [shape = 'u8[8192]{0}', space=vmem, size = 0x2000, scoped, tag = 'output window, operand 0']
    %18 = vsyncpa [#allocation3], 0
    %s19 = scalar_lea.sflag [#allocation3], 1
    %20 = vsyncpa %s19, 0
    %21 = vsyncpa [#allocation6], 0
    %22 = vsyncpa [#allocation9], 0
    %23 = vsyncpa [#allocation12], 0
    %24 = vsyncpa [#allocation4], 0
    %s25 = scalar_lea.sflag [#allocation4], 1
    %26 = vsyncpa %s25, 0
    loop: start=0, step=1, limit=4
    $region2: #{tpu_custom_call.1} parent=1 // loop_pre_header
      _
    $region3: #{tpu_custom_call.1} parent=1 // loop_header
      %s28 = sphi 0, %s32
      %p29 = scmp.ge.s32.totalorder %s28, 4
      %s38 = sphi 0, %s40
      %s41 = sphi 0, %s38
      %s42 = sphi 0, %s41
      %s58 = sphi 0, %s42
      %s64 = sphi 0, %s66
      %s67 = sphi 0, %s64
      %s68 = sphi 0, %s67
      %s84 = sphi 0, %s68
      %s88 = sphi 0, %s88
      %s90 = sphi 0, %s88
      %s91 = sphi 0, %s90
      %s105 = sphi 0, %s91
      %s109 = sphi 0, %s109
      %s111 = sphi 0, %s109
      %s112 = sphi 0, %s111
      %s126 = sphi 0, %s112
      %s130 = sphi 0, %s130
      %s132 = sphi 0, %s130
      %s133 = sphi 0, %s132
      %s147 = sphi 0, %s133
      %s151 = sphi 0, %s151
      %s153 = sphi 0, %s151
      %s154 = sphi 0, %s153
      %s168 = sphi 0, %s154
      %s172 = sphi 0, %s172
      %s174 = sphi 0, %s172
      %s175 = sphi 0, %s174
      %s189 = sphi 0, %s175
      %s193 = sphi 0, %s193
      %s195 = sphi 0, %s193
      %s196 = sphi 0, %s195
      %s210 = sphi 0, %s196
      %s214 = sphi 0, %s214
      %s216 = sphi 0, %s214
      %s217 = sphi 0, %s216
      %s231 = sphi 0, %s217
      %s235 = sphi 0, %s235
      %s237 = sphi 0, %s235
      %s238 = sphi 0, %s237
      %s252 = sphi 0, %s238
      %s256 = sphi 0, %s256
      %s258 = sphi 0, %s256
      %s259 = sphi 0, %s258
      %s273 = sphi 0, %s259
      %s277 = sphi 0, %s277
      %s279 = sphi 0, %s277
      %s280 = sphi 0, %s279
      %s294 = sphi 0, %s280
      %s298 = sphi 0, %s298
      %s300 = sphi 0, %s298
      %s301 = sphi 0, %s300
      %s315 = sphi 0, %s301
      %s321 = sphi 0, %s323
      %s324 = sphi 0, %s321
      %s325 = sphi 0, %s324
      %s341 = sphi 0, %s325
    $region4: #{tpu_custom_call.1} parent=1 // loop_header_branch
      %31 = sbr.rel (%p29) target = $region8
    $region5: #{tpu_custom_call.1} parent=1 // loop_body
      %s33 = ssub.s32 %s28, 1
      %s34 = ssub.s32 %s28, 2
      %s35 = sadd.s32 %s28, 1
      %s36 = ssub.s32 %s28, %s35
      %p37 = scmp.eq.s32.totalorder %s36, 0
      %s39 = sadd.s32 %s38, 1
      %s40 = scalar_select %p37, %s38, %s39
      %p43 = pneg %p37
      %p44 = scmp.eq.s32.totalorder %s28, 1
      %p45 = por %p43, %p44
      %p46 = scmp.ne.s32.totalorder %s38, %s41
      %p47 = scmp.eq.s32.totalorder %s28, 0
      %p48 = por %p46, %p47
      %p49 = scmp.ne.s32.totalorder %s38, %s41
      %p50 = scmp.eq.s32.totalorder %s33, 1
      %p51 = por %p49, %p50
      %p52 = scmp.ne.s32.totalorder %s41, %s42
      %p53 = scmp.eq.s32.totalorder %s33, 0
      %p54 = por %p52, %p53
      %p55 = scmp.ne.s32.totalorder %s41, %s42
      %p56 = scmp.eq.s32.totalorder %s34, 1
      %p57 = por %p55, %p56
      %p59 = scmp.ne.s32.totalorder %s42, %s58
      %p60 = scmp.eq.s32.totalorder %s34, 0
      %p61 = por %p59, %p60
      %s62 = ssub.s32 %s28, %s35
      %p63 = scmp.eq.s32.totalorder %s62, 0
      %s65 = sadd.s32 %s64, 1
      %s66 = scalar_select %p63, %s64, %s65
      %p69 = pneg %p63
      %p70 = scmp.eq.s32.totalorder %s28, 1
      %p71 = por %p69, %p70
      %p72 = scmp.ne.s32.totalorder %s64, %s67
      %p73 = scmp.eq.s32.totalorder %s28, 0
      %p74 = por %p72, %p73
      %p75 = scmp.ne.s32.totalorder %s64, %s67
      %p76 = scmp.eq.s32.totalorder %s33, 1
      %p77 = por %p75, %p76
      %p78 = scmp.ne.s32.totalorder %s67, %s68
      %p79 = scmp.eq.s32.totalorder %s33, 0
      %p80 = por %p78, %p79
      %p81 = scmp.ne.s32.totalorder %s67, %s68
      %p82 = scmp.eq.s32.totalorder %s34, 1
      %p83 = por %p81, %p82
      %p85 = scmp.ne.s32.totalorder %s68, %s84
      %p86 = scmp.eq.s32.totalorder %s34, 0
      %p87 = por %p85, %p86
      %s89 = sadd.s32 %s88, 1
      %p92 = scmp.eq.s32.totalorder %s28, 1
      %p93 = scmp.ne.s32.totalorder %s88, %s90
      %p94 = scmp.eq.s32.totalorder %s28, 0
      %p95 = por %p93, %p94
      %p96 = scmp.ne.s32.totalorder %s88, %s90
      %p97 = scmp.eq.s32.totalorder %s33, 1
      %p98 = por %p96, %p97
      %p99 = scmp.ne.s32.totalorder %s90, %s91
      %p100 = scmp.eq.s32.totalorder %s33, 0
      %p101 = por %p99, %p100
      %p102 = scmp.ne.s32.totalorder %s90, %s91
      %p103 = scmp.eq.s32.totalorder %s34, 1
      %p104 = por %p102, %p103
      %p106 = scmp.ne.s32.totalorder %s91, %s105
      %p107 = scmp.eq.s32.totalorder %s34, 0
      %p108 = por %p106, %p107
      %s110 = sadd.s32 %s109, 1
      %p113 = scmp.eq.s32.totalorder %s28, 1
      %p114 = scmp.ne.s32.totalorder %s109, %s111
      %p115 = scmp.eq.s32.totalorder %s28, 0
      %p116 = por %p114, %p115
      %p117 = scmp.ne.s32.totalorder %s109, %s111
      %p118 = scmp.eq.s32.totalorder %s33, 1
      %p119 = por %p117, %p118
      %p120 = scmp.ne.s32.totalorder %s111, %s112
      %p121 = scmp.eq.s32.totalorder %s33, 0
      %p122 = por %p120, %p121
      %p123 = scmp.ne.s32.totalorder %s111, %s112
      %p124 = scmp.eq.s32.totalorder %s34, 1
      %p125 = por %p123, %p124
      %p127 = scmp.ne.s32.totalorder %s112, %s126
      %p128 = scmp.eq.s32.totalorder %s34, 0
      %p129 = por %p127, %p128
      %s131 = sadd.s32 %s130, 1
      %p134 = scmp.eq.s32.totalorder %s28, 1
      %p135 = scmp.ne.s32.totalorder %s130, %s132
      %p136 = scmp.eq.s32.totalorder %s28, 0
      %p137 = por %p135, %p136
      %p138 = scmp.ne.s32.totalorder %s130, %s132
      %p139 = scmp.eq.s32.totalorder %s33, 1
      %p140 = por %p138, %p139
      %p141 = scmp.ne.s32.totalorder %s132, %s133
      %p142 = scmp.eq.s32.totalorder %s33, 0
      %p143 = por %p141, %p142
      %p144 = scmp.ne.s32.totalorder %s132, %s133
      %p145 = scmp.eq.s32.totalorder %s34, 1
      %p146 = por %p144, %p145
      %p148 = scmp.ne.s32.totalorder %s133, %s147
      %p149 = scmp.eq.s32.totalorder %s34, 0
      %p150 = por %p148, %p149
      %s152 = sadd.s32 %s151, 1
      %p155 = scmp.eq.s32.totalorder %s28, 1
      %p156 = scmp.ne.s32.totalorder %s151, %s153
      %p157 = scmp.eq.s32.totalorder %s28, 0
      %p158 = por %p156, %p157
      %p159 = scmp.ne.s32.totalorder %s151, %s153
      %p160 = scmp.eq.s32.totalorder %s33, 1
      %p161 = por %p159, %p160
      %p162 = scmp.ne.s32.totalorder %s153, %s154
      %p163 = scmp.eq.s32.totalorder %s33, 0
      %p164 = por %p162, %p163
      %p165 = scmp.ne.s32.totalorder %s153, %s154
      %p166 = scmp.eq.s32.totalorder %s34, 1
      %p167 = por %p165, %p166
      %p169 = scmp.ne.s32.totalorder %s154, %s168
      %p170 = scmp.eq.s32.totalorder %s34, 0
      %p171 = por %p169, %p170
      %s173 = sadd.s32 %s172, 1
      %p176 = scmp.eq.s32.totalorder %s28, 1
      %p177 = scmp.ne.s32.totalorder %s172, %s174
      %p178 = scmp.eq.s32.totalorder %s28, 0
      %p179 = por %p177, %p178
      %p180 = scmp.ne.s32.totalorder %s172, %s174
      %p181 = scmp.eq.s32.totalorder %s33, 1
      %p182 = por %p180, %p181
      %p183 = scmp.ne.s32.totalorder %s174, %s175
      %p184 = scmp.eq.s32.totalorder %s33, 0
      %p185 = por %p183, %p184
      %p186 = scmp.ne.s32.totalorder %s174, %s175
      %p187 = scmp.eq.s32.totalorder %s34, 1
      %p188 = por %p186, %p187
      %p190 = scmp.ne.s32.totalorder %s175, %s189
      %p191 = scmp.eq.s32.totalorder %s34, 0
      %p192 = por %p190, %p191
      %s194 = sadd.s32 %s193, 1
      %p197 = scmp.eq.s32.totalorder %s28, 1
      %p198 = scmp.ne.s32.totalorder %s193, %s195
      %p199 = scmp.eq.s32.totalorder %s28, 0
      %p200 = por %p198, %p199
      %p201 = scmp.ne.s32.totalorder %s193, %s195
      %p202 = scmp.eq.s32.totalorder %s33, 1
      %p203 = por %p201, %p202
      %p204 = scmp.ne.s32.totalorder %s195, %s196
      %p205 = scmp.eq.s32.totalorder %s33, 0
      %p206 = por %p204, %p205
      %p207 = scmp.ne.s32.totalorder %s195, %s196
      %p208 = scmp.eq.s32.totalorder %s34, 1
      %p209 = por %p207, %p208
      %p211 = scmp.ne.s32.totalorder %s196, %s210
      %p212 = scmp.eq.s32.totalorder %s34, 0
      %p213 = por %p211, %p212
      %s215 = sadd.s32 %s214, 1
      %p218 = scmp.eq.s32.totalorder %s28, 1
      %p219 = scmp.ne.s32.totalorder %s214, %s216
      %p220 = scmp.eq.s32.totalorder %s28, 0
      %p221 = por %p219, %p220
      %p222 = scmp.ne.s32.totalorder %s214, %s216
      %p223 = scmp.eq.s32.totalorder %s33, 1
      %p224 = por %p222, %p223
      %p225 = scmp.ne.s32.totalorder %s216, %s217
      %p226 = scmp.eq.s32.totalorder %s33, 0
      %p227 = por %p225, %p226
      %p228 = scmp.ne.s32.totalorder %s216, %s217
      %p229 = scmp.eq.s32.totalorder %s34, 1
      %p230 = por %p228, %p229
      %p232 = scmp.ne.s32.totalorder %s217, %s231
      %p233 = scmp.eq.s32.totalorder %s34, 0
      %p234 = por %p232, %p233
      %s236 = sadd.s32 %s235, 1
      %p239 = scmp.eq.s32.totalorder %s28, 1
      %p240 = scmp.ne.s32.totalorder %s235, %s237
      %p241 = scmp.eq.s32.totalorder %s28, 0
      %p242 = por %p240, %p241
      %p243 = scmp.ne.s32.totalorder %s235, %s237
      %p244 = scmp.eq.s32.totalorder %s33, 1
      %p245 = por %p243, %p244
      %p246 = scmp.ne.s32.totalorder %s237, %s238
      %p247 = scmp.eq.s32.totalorder %s33, 0
      %p248 = por %p246, %p247
      %p249 = scmp.ne.s32.totalorder %s237, %s238
      %p250 = scmp.eq.s32.totalorder %s34, 1
      %p251 = por %p249, %p250
      %p253 = scmp.ne.s32.totalorder %s238, %s252
      %p254 = scmp.eq.s32.totalorder %s34, 0
      %p255 = por %p253, %p254
      %s257 = sadd.s32 %s256, 1
      %p260 = scmp.eq.s32.totalorder %s28, 1
      %p261 = scmp.ne.s32.totalorder %s256, %s258
      %p262 = scmp.eq.s32.totalorder %s28, 0
      %p263 = por %p261, %p262
      %p264 = scmp.ne.s32.totalorder %s256, %s258
      %p265 = scmp.eq.s32.totalorder %s33, 1
      %p266 = por %p264, %p265
      %p267 = scmp.ne.s32.totalorder %s258, %s259
      %p268 = scmp.eq.s32.totalorder %s33, 0
      %p269 = por %p267, %p268
      %p270 = scmp.ne.s32.totalorder %s258, %s259
      %p271 = scmp.eq.s32.totalorder %s34, 1
      %p272 = por %p270, %p271
      %p274 = scmp.ne.s32.totalorder %s259, %s273
      %p275 = scmp.eq.s32.totalorder %s34, 0
      %p276 = por %p274, %p275
      %s278 = sadd.s32 %s277, 1
      %p281 = scmp.eq.s32.totalorder %s28, 1
      %p282 = scmp.ne.s32.totalorder %s277, %s279
      %p283 = scmp.eq.s32.totalorder %s28, 0
      %p284 = por %p282, %p283
      %p285 = scmp.ne.s32.totalorder %s277, %s279
      %p286 = scmp.eq.s32.totalorder %s33, 1
      %p287 = por %p285, %p286
      %p288 = scmp.ne.s32.totalorder %s279, %s280
      %p289 = scmp.eq.s32.totalorder %s33, 0
      %p290 = por %p288, %p289
      %p291 = scmp.ne.s32.totalorder %s279, %s280
      %p292 = scmp.eq.s32.totalorder %s34, 1
      %p293 = por %p291, %p292
      %p295 = scmp.ne.s32.totalorder %s280, %s294
      %p296 = scmp.eq.s32.totalorder %s34, 0
      %p297 = por %p295, %p296
      %s299 = sadd.s32 %s298, 1
      %p302 = scmp.eq.s32.totalorder %s28, 1
      %p303 = scmp.ne.s32.totalorder %s298, %s300
      %p304 = scmp.eq.s32.totalorder %s28, 0
      %p305 = por %p303, %p304
      %p306 = scmp.ne.s32.totalorder %s298, %s300
      %p307 = scmp.eq.s32.totalorder %s33, 1
      %p308 = por %p306, %p307
      %p309 = scmp.ne.s32.totalorder %s300, %s301
      %p310 = scmp.eq.s32.totalorder %s33, 0
      %p311 = por %p309, %p310
      %p312 = scmp.ne.s32.totalorder %s300, %s301
      %p313 = scmp.eq.s32.totalorder %s34, 1
      %p314 = por %p312, %p313
      %p316 = scmp.ne.s32.totalorder %s301, %s315
      %p317 = scmp.eq.s32.totalorder %s34, 0
      %p318 = por %p316, %p317
      %s319 = ssub.s32 %s28, %s35
      %p320 = scmp.eq.s32.totalorder %s319, 0
      %s322 = sadd.s32 %s321, 1
      %s323 = scalar_select %p320, %s321, %s322
      %p326 = pneg %p320
      %p327 = scmp.eq.s32.totalorder %s28, 1
      %p328 = por %p326, %p327
      %p329 = scmp.ne.s32.totalorder %s321, %s324
      %p330 = scmp.eq.s32.totalorder %s28, 0
      %p331 = por %p329, %p330
      %p332 = scmp.ne.s32.totalorder %s321, %s324
      %p333 = scmp.eq.s32.totalorder %s33, 1
      %p334 = por %p332, %p333
      %p335 = scmp.ne.s32.totalorder %s324, %s325
      %p336 = scmp.eq.s32.totalorder %s33, 0
      %p337 = por %p335, %p336
      %p338 = scmp.ne.s32.totalorder %s324, %s325
      %p339 = scmp.eq.s32.totalorder %s34, 1
      %p340 = por %p338, %p339
      %p342 = scmp.ne.s32.totalorder %s325, %s341
      %p343 = scmp.eq.s32.totalorder %s34, 0
      %p344 = por %p342, %p343
      %p345 = scmp.le.s32.totalorder 1, %s28
      %p346 = scmp.lt.s32.totalorder %s28, 3
      %p347 = pnand %p345, %p346
      %p348 = pneg %p347
      // Predicated region
      $region9: #{tpu_custom_call.1} parent=5 // pred_check
        _
      $region10: #{tpu_custom_call.1} parent=5 // pred_check_branch
        %350 = sbr.rel (%p347) target = $region12
      $region11: #{tpu_custom_call.1} parent=5 // pred_region
        %s351 = ssub.s32 %s28, 1
        // Predicated region
        $region13: #{tpu_custom_call.1} parent=11 // pred_check
          %p352 = pneg %p101
        $region14: #{tpu_custom_call.1} parent=11 // pred_check_branch
          %354 = sbr.rel (%p352) target = $region16
        $region15: #{tpu_custom_call.1} parent=11 // pred_region
          _
        $region16: #{tpu_custom_call.1} parent=11 // pred_fallthru
          _
        // Predicated region
        $region17: #{tpu_custom_call.1} parent=11 // pred_check
          %p355 = pneg %p122
        $region18: #{tpu_custom_call.1} parent=11 // pred_check_branch
          %357 = sbr.rel (%p355) target = $region20
        $region19: #{tpu_custom_call.1} parent=11 // pred_region
          _
        $region20: #{tpu_custom_call.1} parent=11 // pred_fallthru
          _
        // Predicated region
        $region21: #{tpu_custom_call.1} parent=11 // pred_check
          %p358 = pneg %p143
        $region22: #{tpu_custom_call.1} parent=11 // pred_check_branch
          %360 = sbr.rel (%p358) target = $region24
        $region23: #{tpu_custom_call.1} parent=11 // pred_region
          %s362 = ssub.s32 6144, 6144
          %363 = vsyncadd [#allocation6], %s362
          %s364 = sshll.u32 [#allocation5], 4
          %s365 = int_to_ptr.vmem [resolvable:$true] %s364
          %370 = dma.hbm_to_vmem [thread:$0]  %s4, 6144, %s365, [#allocation6], 256, 256, 16
        $region24: #{tpu_custom_call.1} parent=11 // pred_fallthru
          _
        // Predicated region
        $region25: #{tpu_custom_call.1} parent=11 // pred_check
          %p371 = pneg %p164
        $region26: #{tpu_custom_call.1} parent=11 // pred_check_branch
          %373 = sbr.rel (%p371) target = $region28
        $region27: #{tpu_custom_call.1} parent=11 // pred_region
          %s375 = ssub.s32 1536, 1536
          %376 = vsyncadd [#allocation6], %s375
          %s377 = sshll.u32 [#allocation7], 4
          %s378 = int_to_ptr.vmem [resolvable:$true] %s377
          %383 = dma.hbm_to_vmem [thread:$0]  %s5, 1536, %s378, [#allocation6], 256, 256, 16
        $region28: #{tpu_custom_call.1} parent=11 // pred_fallthru
          _
        // Predicated region
        $region29: #{tpu_custom_call.1} parent=11 // pred_check
          %p384 = pneg %p185
        $region30: #{tpu_custom_call.1} parent=11 // pred_check_branch
          %386 = sbr.rel (%p384) target = $region32
        $region31: #{tpu_custom_call.1} parent=11 // pred_region
          _
        $region32: #{tpu_custom_call.1} parent=11 // pred_fallthru
          _
        // Predicated region
        $region33: #{tpu_custom_call.1} parent=11 // pred_check
          %p387 = pneg %p206
        $region34: #{tpu_custom_call.1} parent=11 // pred_check_branch
          %389 = sbr.rel (%p387) target = $region36
        $region35: #{tpu_custom_call.1} parent=11 // pred_region
          %s391 = ssub.s32 16384, 16384
          %392 = vsyncadd [#allocation9], %s391
          %s393 = sshll.u32 [#allocation8], 4
          %s394 = int_to_ptr.vmem [resolvable:$true] %s393
          %399 = dma.hbm_to_vmem [thread:$0]  %s7, 16384, %s394, [#allocation9], 256, 256, 16
        $region36: #{tpu_custom_call.1} parent=11 // pred_fallthru
          _
        // Predicated region
        $region37: #{tpu_custom_call.1} parent=11 // pred_check
          %p400 = pneg %p227
        $region38: #{tpu_custom_call.1} parent=11 // pred_check_branch
          %402 = sbr.rel (%p400) target = $region40
        $region39: #{tpu_custom_call.1} parent=11 // pred_region
          _
        $region40: #{tpu_custom_call.1} parent=11 // pred_fallthru
          _
        // Predicated region
        $region41: #{tpu_custom_call.1} parent=11 // pred_check
          %p403 = pneg %p248
        $region42: #{tpu_custom_call.1} parent=11 // pred_check_branch
          %405 = sbr.rel (%p403) target = $region44
        $region43: #{tpu_custom_call.1} parent=11 // pred_region
          %s407 = ssub.s32 16384, 16384
          %408 = vsyncadd [#allocation9], %s407
          %s409 = sshll.u32 [#allocation10], 4
          %s410 = int_to_ptr.vmem [resolvable:$true] %s409
          %415 = dma.hbm_to_vmem [thread:$0]  %s9, 16384, %s410, [#allocation9], 256, 256, 16
        $region44: #{tpu_custom_call.1} parent=11 // pred_fallthru
          _
        // Predicated region
        $region45: #{tpu_custom_call.1} parent=11 // pred_check
          %p416 = pneg %p269
        $region46: #{tpu_custom_call.1} parent=11 // pred_check_branch
          %418 = sbr.rel (%p416) target = $region48
        $region47: #{tpu_custom_call.1} parent=11 // pred_region
          _
        $region48: #{tpu_custom_call.1} parent=11 // pred_fallthru
          _
        // Predicated region
        $region49: #{tpu_custom_call.1} parent=11 // pred_check
          %p419 = pneg %p290
        $region50: #{tpu_custom_call.1} parent=11 // pred_check_branch
          %421 = sbr.rel (%p419) target = $region52
        $region51: #{tpu_custom_call.1} parent=11 // pred_region
          %s423 = ssub.s32 4096, 4096
          %424 = vsyncadd [#allocation12], %s423
          %s425 = sshll.u32 [#allocation11], 4
          %s426 = int_to_ptr.vmem [resolvable:$true] %s425
          %431 = dma.hbm_to_vmem [thread:$0]  %s11, 4096, %s426, [#allocation12], 64, 64, 4
        $region52: #{tpu_custom_call.1} parent=11 // pred_fallthru
          _
        // Predicated region
        $region53: #{tpu_custom_call.1} parent=11 // pred_check
          %p432 = pneg %p311
        $region54: #{tpu_custom_call.1} parent=11 // pred_check_branch
          %434 = sbr.rel (%p432) target = $region56
        $region55: #{tpu_custom_call.1} parent=11 // pred_region
          _
        $region56: #{tpu_custom_call.1} parent=11 // pred_fallthru
          _
      $region12: #{tpu_custom_call.1} parent=5 // pred_fallthru
        _
      %p435 = scmp.lt.s32.totalorder %s28, 2
      // Predicated region
      $region57: #{tpu_custom_call.1} parent=5 // pred_check
        %p436 = pneg %p435
      $region58: #{tpu_custom_call.1} parent=5 // pred_check_branch
        %438 = sbr.rel (%p436) target = $region60
      $region59: #{tpu_custom_call.1} parent=5 // pred_region
        // Predicated region
        $region61: #{tpu_custom_call.1} parent=59 // pred_check
          %p439 = pneg %p48
        $region62: #{tpu_custom_call.1} parent=59 // pred_check_branch
          %441 = sbr.rel (%p439) target = $region64
        $region63: #{tpu_custom_call.1} parent=59 // pred_region
          %p442 = scmp.lt.s32.totalorder %s28, 1
          %s443 = scalar_select %p442, %s28, 1
          %s444 = smul.addr %s443, 8
          %s445 = scalar_lea.vmem %s0, %s444
        $region64: #{tpu_custom_call.1} parent=59 // pred_fallthru
          _
        // Predicated region
        $region65: #{tpu_custom_call.1} parent=59 // pred_check
          %p446 = pneg %p74
        $region66: #{tpu_custom_call.1} parent=59 // pred_check_branch
          %448 = sbr.rel (%p446) target = $region68
        $region67: #{tpu_custom_call.1} parent=59 // pred_region
          %s449 = sand.u32 %s64, 1
          %s450 = scalar_lea.sflag [#allocation3], %s449
          %s451 = sand.u32 %s64, 1
          %s452 = smul.addr %s451, 16
          %s453 = scalar_lea.vmem [#allocation2], %s452
          %s455 = ssub.s32 256, 256
          %456 = vsyncadd %s450, %s455
          %s457 = smul.addr %s28, 2
          %s458 = smul.addr %s457, 128
          %s459 = scalar_lea.hbm %s1, %s458
          %s461 = sshll.u32 %s453, 4
          %s462 = int_to_ptr.vmem [resolvable:$true] %s461
          %464 = dma.hbm_to_vmem [thread:$0]  %s459, 256, %s462, %s450
        $region68: #{tpu_custom_call.1} parent=59 // pred_fallthru
          _
      $region60: #{tpu_custom_call.1} parent=5 // pred_fallthru
        _
      %p465 = scmp.le.s32.totalorder 1, %s28
      %p466 = scmp.lt.s32.totalorder %s28, 3
      %p467 = pnand %p465, %p466
      %p468 = pneg %p467
      // Predicated region
      $region69: #{tpu_custom_call.1} parent=5 // pred_check
        _
      $region70: #{tpu_custom_call.1} parent=5 // pred_check_branch
        %470 = sbr.rel (%p467) target = $region72
      $region71: #{tpu_custom_call.1} parent=5 // pred_region
        %s471 = ssub.s32 %s28, 1
        %s472 = sand.u32 %s67, 1
        %s473 = scalar_lea.sflag [#allocation3], %s472
        %s474 = sand.u32 %s67, 1
        %s475 = smul.addr %s474, 16
        %s476 = scalar_lea.vmem [#allocation2], %s475
        // Predicated region
        $region73: #{tpu_custom_call.1} parent=71 // pred_check
          %p477 = pneg %p80
        $region74: #{tpu_custom_call.1} parent=71 // pred_check_branch
          %479 = sbr.rel (%p477) target = $region76
        $region75: #{tpu_custom_call.1} parent=71 // pred_region
          %480 = dma.done %s473, 256
        $region76: #{tpu_custom_call.1} parent=71 // pred_fallthru
          _
        // Predicated region
        $region77: #{tpu_custom_call.1} parent=71 // pred_check
          %p481 = pneg %p143
        $region78: #{tpu_custom_call.1} parent=71 // pred_check_branch
          %483 = sbr.rel (%p481) target = $region80
        $region79: #{tpu_custom_call.1} parent=71 // pred_region
          %484 = dma.done [#allocation6], 6144
        $region80: #{tpu_custom_call.1} parent=71 // pred_fallthru
          _
        // Predicated region
        $region81: #{tpu_custom_call.1} parent=71 // pred_check
          %p485 = pneg %p164
        $region82: #{tpu_custom_call.1} parent=71 // pred_check_branch
          %487 = sbr.rel (%p485) target = $region84
        $region83: #{tpu_custom_call.1} parent=71 // pred_region
          %488 = dma.done [#allocation6], 1536
        $region84: #{tpu_custom_call.1} parent=71 // pred_fallthru
          _
        // Predicated region
        $region85: #{tpu_custom_call.1} parent=71 // pred_check
          %p489 = pneg %p206
        $region86: #{tpu_custom_call.1} parent=71 // pred_check_branch
          %491 = sbr.rel (%p489) target = $region88
        $region87: #{tpu_custom_call.1} parent=71 // pred_region
          %492 = dma.done [#allocation9], 16384
        $region88: #{tpu_custom_call.1} parent=71 // pred_fallthru
          _
        // Predicated region
        $region89: #{tpu_custom_call.1} parent=71 // pred_check
          %p493 = pneg %p248
        $region90: #{tpu_custom_call.1} parent=71 // pred_check_branch
          %495 = sbr.rel (%p493) target = $region92
        $region91: #{tpu_custom_call.1} parent=71 // pred_region
          %496 = dma.done [#allocation9], 16384
        $region92: #{tpu_custom_call.1} parent=71 // pred_fallthru
          _
        // Predicated region
        $region93: #{tpu_custom_call.1} parent=71 // pred_check
          %p497 = pneg %p290
        $region94: #{tpu_custom_call.1} parent=71 // pred_check_branch
          %499 = sbr.rel (%p497) target = $region96
        $region95: #{tpu_custom_call.1} parent=71 // pred_region
          %500 = dma.done [#allocation12], 4096
        $region96: #{tpu_custom_call.1} parent=71 // pred_fallthru
          _
        %p501 = scmp.lt.s32.totalorder %s33, 1
        %s502 = scalar_select %p501, %s33, 1
        %s503 = smul.addr %s502, 8
        %s504 = scalar_lea.vmem %s0, %s503
        %p505 = pneg %p54
        %p506 = pneg %p51
        %s507 = sand.u32 %s67, 1
        %s508 = scalar_lea.sflag [#allocation3], %s507
        %s509 = sand.u32 %s67, 1
        %s510 = smul.addr %s509, 16
        %s511 = scalar_lea.vmem [#allocation2], %s510
        %p512 = pneg %p80
        %p513 = pneg %p77
        %p514 = pneg %p101
        %p515 = pneg %p98
        %p516 = pneg %p122
        %p517 = pneg %p119
        %p518 = pneg %p143
        %p519 = pneg %p140
        %p520 = pneg %p164
        %p521 = pneg %p161
        %p522 = pneg %p185
        %p523 = pneg %p182
        %p524 = pneg %p206
        %p525 = pneg %p203
        %p526 = pneg %p227
        %p527 = pneg %p224
        %p528 = pneg %p248
        %p529 = pneg %p245
        %p530 = pneg %p269
        %p531 = pneg %p266
        %p532 = pneg %p290
        %p533 = pneg %p287
        %p534 = pneg %p311
        %p535 = pneg %p308
        %p536 = pneg %p337
        %p537 = pneg %p334
        %s538 = sand.u32 %s324, 1
        %s539 = scalar_lea.sflag [#allocation4], %s538
        %s540 = sand.u32 %s324, 1
        %s541 = smul.addr %s540, 8
        %s542 = scalar_lea.vmem [#allocation13], %s541
        %p543 = scmp.lt.s32.totalorder %s33, 1
        %s544 = scalar_select %p543, %s33, 1
        %s545 = smul.addr %s544, 8
        %s546 = scalar_lea.vmem %s0, %s545
        %v548 = vld [vmem:[%s546] sm:$0xff]
        %v549 = vld [vmem:[%s2] sm:$0x1]
        %551 = vset.pattern.permute.xlu0 0
        %552 = vperm.xlu0 %551, %v548
        %v553 = vpop.permute.xlu0 %552
        %v555 = vlaneseq
        %v556 = vshrl.u32 %v555, 7
        %v557 = vsub.s32 0, %v556
        %v558 = vrot.slane %v549, %v557
        %v559 = vmul.f32 %v553, %v558
        %v560 = vld [vmem:[%s2 + $0x1] sm:$0x1]
        %561 = vset.pattern.permute.xlu0 1
        %562 = vperm.xlu0 %561, %v548
        %v563 = vpop.permute.xlu0 %562
        %v565 = vlaneseq
        %v566 = vshrl.u32 %v565, 7
        %v567 = vsub.s32 0, %v566
        %v568 = vrot.slane %v560, %v567
        %v569 = vmul.f32 %v563, %v568
        %v570 = vadd.f32 %v559, %v569
        %v571 = vld [vmem:[%s2 + $0x2] sm:$0x1]
        %572 = vset.pattern.permute.xlu0 2
        %573 = vperm.xlu0 %572, %v548
        %v574 = vpop.permute.xlu0 %573
        %v576 = vlaneseq
        %v577 = vshrl.u32 %v576, 7
        %v578 = vsub.s32 0, %v577
        %v579 = vrot.slane %v571, %v578
        %v580 = vmul.f32 %v574, %v579
        %v581 = vadd.f32 %v570, %v580
        %v582 = vld [vmem:[%s2 + $0x3] sm:$0x1]
        %v583 = vlaneseq
        %v584 = vshrl.u32 %v583, 7
        %v585 = vsub.s32 0, %v584
        %v586 = vrot.slane %v582, %v585
        %v587 = vadd.f32 %v581, %v586
        %v588 = vand.u32 2147483647, %v587
        %vm589 = vcmp.le.f32.partialorder %v588, 0.7853982
        %vm590 = vcmp.lt.s32.totalorder %v587, 0
        %v591 = vand.u32 %v587, 2139095040
        %v592 = vshrl.u32 %v591, 23
        %v593 = vsub.s32 %v592, 127
        %v594 = vand.u32 2147483647, %v587
        %v595 = vand.u32 %v594, 8388607
        %v596 = vor.u32 %v595, 8388608
        %v597 = vsub.s32 0, %v596
        %v598 = vadd.s32 %v593, 1
        %vm599 = vcmp.gt.s32.totalorder %v598, 0
        %v600 = vsel %vm599, %v598, 0
        %v601 = vshrl.u32 %v600, 5
        %v602 = vand.u32 %v600, 31
        %v603 = vsub.s32 32, %v602
        %v604 = vshrl.u32 683565275, %v603
        %v605 = vshll.u32 683565275, %v602
        %v606 = vshrl.u32 2475754826, %v603
        %v607 = vor.u32 %v605, %v606
        %v608 = vshll.u32 2475754826, %v602
        %v609 = vshrl.u32 2131351028, %v603
        %v610 = vor.u32 %v608, %v609
        %v611 = vshll.u32 2131351028, %v602
        %v612 = vshrl.u32 2102212464, %v603
        %v613 = vor.u32 %v611, %v612
        %v614 = vshll.u32 2102212464, %v602
        %v615 = vshrl.u32 920167782, %v603
        %v616 = vor.u32 %v614, %v615
        %v617 = vshll.u32 920167782, %v602
        %v618 = vshrl.u32 1326507024, %v603
        %v619 = vor.u32 %v617, %v618
        %vm620 = vcmp.lt.s32.totalorder %v601, 1
        %vm621 = vcmp.lt.s32.totalorder %v601, 2
        %vm622 = vcmp.lt.s32.totalorder %v601, 3
        %vm623 = vcmp.lt.s32.totalorder %v601, 4
        %v624 = vsel %vm620, %v604, %v607
        %v625 = vsel %vm623, %v613, 2102212464
        %v626 = vsel %vm622, %v610, %v625
        %v627 = vsel %vm621, %v624, %v626
        %v628 = vsel %vm620, %v607, %v610
        %v629 = vsel %vm623, %v616, 920167782
        %v630 = vsel %vm622, %v613, %v629
        %v631 = vsel %vm621, %v628, %v630
        %v632 = vsel %vm620, %v610, %v613
        %v633 = vsel %vm623, %v619, 1326507024
        %v634 = vsel %vm622, %v616, %v633
        %v635 = vsel %vm621, %v632, %v634
        %v636 = vshll.u32 %v596, 8
        %v637 = vmul.u32.u64.compose %v636, %v635
        %v638 = vextract.low.u32 %v637
        %v639 = vextract.high.u32 %v637
        %v640 = vmul.u32.u64.compose %v636, %v631
        %v641 = vextract.low.u32 %v640
        %v642 = vextract.high.u32 %v640
        %v643 = vmul.u32 %v636, %v627
        %v644 = vadd.s32 %v639, %v641
        %vm645 = vc.u32 %v639, %v641
        %v646 = vadd.s32 %v642, 1
        %v647 = vsel %vm645, %v646, %v642
        %v648 = vadd.s32 %v643, %v647
        %v649 = vadd.s32 %v648, 536870912
        %v650 = vshrl.u32 %v649, 30
        %v651 = vshll.u32 %v650, 30
        %v652 = vsub.s32 %v648, %v651
        %vm653 = vcmp.lt.s32.totalorder %v652, 0
        %v654 = vsub.s32 0, %v652
        %v655 = vsel %vm653, %v654, %v652
        %v656 = vclz %v655
        %v657 = vsub.s32 %v656, 2
        %vm658 = vcmp.gt.s32.totalorder 0, %v657
        %v659 = vsel %vm658, 0, %v657
        %v660 = vsub.s32 32, %v659
        %v661 = vshll.u32 %v652, %v659
        %v662 = vshrl.u32 %v644, %v660
        %v663 = vor.u32 %v661, %v662
        %v664 = vsub.s32 4294967266, %v659
        %v665 = vadd.s32 %v664, 127
        %v666 = vshll.u32 %v665, 23
        %v667 = vor.u32 4788187, %v666
        %v668 = vand.u32 2147483647, %v667
        %v670 = vcvt.s32.f32 %v663
        %v671 = vmul.f32 %v670, %v668
        %v672 = vxor.u32 %v671, 2147483648
        %v673 = vsel %vm590, %v672, %v671
        %v674 = vsub.s32 4, %v650
        %v675 = vsel %vm590, %v674, %v650
        %v676 = vsel %vm589, %v587, %v673
        %v677 = vsel %vm589, 0, %v675
        %v678 = vcosq.f32.pop %v676
        %v679 = vsinq.f32.pop %v676
        %vm680 = vweird.f32 %v587
        %v681 = vadd.s32 %v677, 3
        %v682 = vand.u32 %v681, 3
        %vm683 = vcmp.lt.s32.totalorder %v682, 2
        %vm684 = vcmp.eq.s32.totalorder %v682, 0
        %v685 = vxor.u32 %v679, 2147483648
        %v686 = vsel %vm684, %v678, %v685
        %vm687 = vcmp.eq.s32.totalorder %v682, 2
        %v688 = vxor.u32 %v678, 2147483648
        %v689 = vsel %vm687, %v688, %v679
        %v690 = vsel %vm683, %v686, %v689
        %v691 = vsel %vm680, nan, %v690
        %v692 = vld [vmem:[%s3] ss:$4 sm:$0xf]
        %v694 = vlaneseq
        %v695 = vshrl.u32 %v694, 7
        %v696 = vsub.s32 0, %v695
        %v697 = vrot.slane %v692, %v696
        %v698 = vlaneseq
        %v699 = vshrl.u32 %v698, 7
        %v700 = vsub.s32 1, %v699
        %v701 = vrot.slane %v692, %v700
        %v702 = vlaneseq
        %v703 = vshrl.u32 %v702, 7
        %v704 = vsub.s32 2, %v703
        %v705 = vrot.slane %v692, %v704
        %v706 = vlaneseq
        %v707 = vshrl.u32 %v706, 7
        %v708 = vsub.s32 3, %v707
        %v709 = vrot.slane %v692, %v708
        %v714 = vmul.f32 %v553, %v697
        %v715 = vmul.f32 %v553, %v701
        %v716 = vmul.f32 %v553, %v705
        %v717 = vmul.f32 %v553, %v709
        %s718 = scalar_lea.vmem %s3, 1
        %v719 = vld [vmem:[%s718] ss:$4 sm:$0xf]
        %v721 = vlaneseq
        %v722 = vshrl.u32 %v721, 7
        %v723 = vsub.s32 0, %v722
        %v724 = vrot.slane %v719, %v723
        %v725 = vlaneseq
        %v726 = vshrl.u32 %v725, 7
        %v727 = vsub.s32 1, %v726
        %v728 = vrot.slane %v719, %v727
        %v729 = vlaneseq
        %v730 = vshrl.u32 %v729, 7
        %v731 = vsub.s32 2, %v730
        %v732 = vrot.slane %v719, %v731
        %v733 = vlaneseq
        %v734 = vshrl.u32 %v733, 7
        %v735 = vsub.s32 3, %v734
        %v736 = vrot.slane %v719, %v735
        %v741 = vmul.f32 %v563, %v724
        %v742 = vmul.f32 %v563, %v728
        %v743 = vmul.f32 %v563, %v732
        %v744 = vmul.f32 %v563, %v736
        %v745 = vadd.f32 %v714, %v741
        %v746 = vadd.f32 %v715, %v742
        %v747 = vadd.f32 %v716, %v743
        %v748 = vadd.f32 %v717, %v744
        %s749 = scalar_lea.vmem %s3, 2
        %v750 = vld [vmem:[%s749] ss:$4 sm:$0xf]
        %v752 = vlaneseq
        %v753 = vshrl.u32 %v752, 7
        %v754 = vsub.s32 0, %v753
        %v755 = vrot.slane %v750, %v754
        %v756 = vlaneseq
        %v757 = vshrl.u32 %v756, 7
        %v758 = vsub.s32 1, %v757
        %v759 = vrot.slane %v750, %v758
        %v760 = vlaneseq
        %v761 = vshrl.u32 %v760, 7
        %v762 = vsub.s32 2, %v761
        %v763 = vrot.slane %v750, %v762
        %v764 = vlaneseq
        %v765 = vshrl.u32 %v764, 7
        %v766 = vsub.s32 3, %v765
        %v767 = vrot.slane %v750, %v766
        %v772 = vmul.f32 %v574, %v755
        %v773 = vmul.f32 %v574, %v759
        %v774 = vmul.f32 %v574, %v763
        %v775 = vmul.f32 %v574, %v767
        %v776 = vadd.f32 %v745, %v772
        %v777 = vadd.f32 %v746, %v773
        %v778 = vadd.f32 %v747, %v774
        %v779 = vadd.f32 %v748, %v775
        %v780 = vld [vmem:[%s476] sm:$0xff]
        %v781 = vld [vmem:[%s476 + $0x8] sm:$0xff]
        %v782 = vpack.c.bf16 %v780, %v780
        %v783 = vpack.c.bf16 %v781, %v781
        %v784 = vld [vmem:[#allocation5] sm:$0xff]
        %v785 = vld [vmem:[#allocation5 + $0x8] sm:$0xff]
        %v786 = vld [vmem:[#allocation5 + $0x10] sm:$0xff]
        %v787 = vld [vmem:[#allocation5 + $0x18] sm:$0xff]
        %v788 = vld [vmem:[#allocation5 + $0x20] sm:$0xff]
        %v789 = vld [vmem:[#allocation5 + $0x28] sm:$0xff]
        %v790 = vld [vmem:[#allocation5 + $0x30] sm:$0xff]
        %v791 = vld [vmem:[#allocation5 + $0x38] sm:$0xff]
        %v792 = vld [vmem:[#allocation5 + $0x40] sm:$0xff]
        %v793 = vld [vmem:[#allocation5 + $0x48] sm:$0xff]
        %v794 = vld [vmem:[#allocation5 + $0x50] sm:$0xff]
        %v795 = vld [vmem:[#allocation5 + $0x58] sm:$0xff]
        %v796 = vld [vmem:[#allocation5 + $0x60] sm:$0xff]
        %v797 = vld [vmem:[#allocation5 + $0x68] sm:$0xff]
        %v798 = vld [vmem:[#allocation5 + $0x70] sm:$0xff]
        %v799 = vld [vmem:[#allocation5 + $0x78] sm:$0xff]
        %v800 = vld [vmem:[#allocation5 + $0x80] sm:$0xff]
        %v801 = vld [vmem:[#allocation5 + $0x88] sm:$0xff]
        %v802 = vld [vmem:[#allocation5 + $0x90] sm:$0xff]
        %v803 = vld [vmem:[#allocation5 + $0x98] sm:$0xff]
        %v804 = vld [vmem:[#allocation5 + $0xa0] sm:$0xff]
        %v805 = vld [vmem:[#allocation5 + $0xa8] sm:$0xff]
        %v806 = vld [vmem:[#allocation5 + $0xb0] sm:$0xff]
        %v807 = vld [vmem:[#allocation5 + $0xb8] sm:$0xff]
        %v808 = vld [vmem:[#allocation5 + $0xc0] sm:$0xff]
        %v809 = vld [vmem:[#allocation5 + $0xc8] sm:$0xff]
        %v810 = vld [vmem:[#allocation5 + $0xd0] sm:$0xff]
        %v811 = vld [vmem:[#allocation5 + $0xd8] sm:$0xff]
        %v812 = vld [vmem:[#allocation5 + $0xe0] sm:$0xff]
        %v813 = vld [vmem:[#allocation5 + $0xe8] sm:$0xff]
        %v814 = vld [vmem:[#allocation5 + $0xf0] sm:$0xff]
        %v815 = vld [vmem:[#allocation5 + $0xf8] sm:$0xff]
        %v816 = vld [vmem:[#allocation5 + $0x100] sm:$0xff]
        %v817 = vld [vmem:[#allocation5 + $0x108] sm:$0xff]
        %v818 = vld [vmem:[#allocation5 + $0x110] sm:$0xff]
        %v819 = vld [vmem:[#allocation5 + $0x118] sm:$0xff]
        %v820 = vld [vmem:[#allocation5 + $0x120] sm:$0xff]
        %v821 = vld [vmem:[#allocation5 + $0x128] sm:$0xff]
        %v822 = vld [vmem:[#allocation5 + $0x130] sm:$0xff]
        %v823 = vld [vmem:[#allocation5 + $0x138] sm:$0xff]
        %v824 = vld [vmem:[#allocation5 + $0x140] sm:$0xff]
        %v825 = vld [vmem:[#allocation5 + $0x148] sm:$0xff]
        %v826 = vld [vmem:[#allocation5 + $0x150] sm:$0xff]
        %v827 = vld [vmem:[#allocation5 + $0x158] sm:$0xff]
        %v828 = vld [vmem:[#allocation5 + $0x160] sm:$0xff]
        %v829 = vld [vmem:[#allocation5 + $0x168] sm:$0xff]
        %v830 = vld [vmem:[#allocation5 + $0x170] sm:$0xff]
        %v831 = vld [vmem:[#allocation5 + $0x178] sm:$0xff]
        %v880 = vunpack.c.l.b16 %v784
        %v881 = vunpack.c.h.b16 %v784
        %v882 = vunpack.c.l.b16 %v785
        %v883 = vunpack.c.h.b16 %v785
        %v884 = vunpack.c.l.b16 %v786
        %v885 = vunpack.c.h.b16 %v786
        %v886 = vunpack.c.l.b16 %v787
        %v887 = vunpack.c.h.b16 %v787
        %v888 = vunpack.c.l.b16 %v788
        %v889 = vunpack.c.h.b16 %v788
        %v890 = vunpack.c.l.b16 %v789
        %v891 = vunpack.c.h.b16 %v789
        %v892 = vunpack.c.l.b16 %v790
        %v893 = vunpack.c.h.b16 %v790
        %v894 = vunpack.c.l.b16 %v791
        %v895 = vunpack.c.h.b16 %v791
        %v896 = vunpack.c.l.b16 %v792
        %v897 = vunpack.c.h.b16 %v792
        %v898 = vunpack.c.l.b16 %v793
        %v899 = vunpack.c.h.b16 %v793
        %v900 = vunpack.c.l.b16 %v794
        %v901 = vunpack.c.h.b16 %v794
        %v902 = vunpack.c.l.b16 %v795
        %v903 = vunpack.c.h.b16 %v795
        %v904 = vunpack.c.l.b16 %v796
        %v905 = vunpack.c.h.b16 %v796
        %v906 = vunpack.c.l.b16 %v797
        %v907 = vunpack.c.h.b16 %v797
        %v908 = vunpack.c.l.b16 %v798
        %v909 = vunpack.c.h.b16 %v798
        %v910 = vunpack.c.l.b16 %v799
        %v911 = vunpack.c.h.b16 %v799
        %v912 = vunpack.c.l.b16 %v800
        %v913 = vunpack.c.h.b16 %v800
        %v914 = vunpack.c.l.b16 %v801
        %v915 = vunpack.c.h.b16 %v801
        %v916 = vunpack.c.l.b16 %v802
        %v917 = vunpack.c.h.b16 %v802
        %v918 = vunpack.c.l.b16 %v803
        %v919 = vunpack.c.h.b16 %v803
        %v920 = vunpack.c.l.b16 %v804
        %v921 = vunpack.c.h.b16 %v804
        %v922 = vunpack.c.l.b16 %v805
        %v923 = vunpack.c.h.b16 %v805
        %v924 = vunpack.c.l.b16 %v806
        %v925 = vunpack.c.h.b16 %v806
        %v926 = vunpack.c.l.b16 %v807
        %v927 = vunpack.c.h.b16 %v807
        %v928 = vunpack.c.l.b16 %v808
        %v929 = vunpack.c.h.b16 %v808
        %v930 = vunpack.c.l.b16 %v809
        %v931 = vunpack.c.h.b16 %v809
        %v932 = vunpack.c.l.b16 %v810
        %v933 = vunpack.c.h.b16 %v810
        %v934 = vunpack.c.l.b16 %v811
        %v935 = vunpack.c.h.b16 %v811
        %v936 = vunpack.c.l.b16 %v812
        %v937 = vunpack.c.h.b16 %v812
        %v938 = vunpack.c.l.b16 %v813
        %v939 = vunpack.c.h.b16 %v813
        %v940 = vunpack.c.l.b16 %v814
        %v941 = vunpack.c.h.b16 %v814
        %v942 = vunpack.c.l.b16 %v815
        %v943 = vunpack.c.h.b16 %v815
        %v944 = vunpack.c.l.b16 %v816
        %v945 = vunpack.c.h.b16 %v816
        %v946 = vunpack.c.l.b16 %v817
        %v947 = vunpack.c.h.b16 %v817
        %v948 = vunpack.c.l.b16 %v818
        %v949 = vunpack.c.h.b16 %v818
        %v950 = vunpack.c.l.b16 %v819
        %v951 = vunpack.c.h.b16 %v819
        %v952 = vunpack.c.l.b16 %v820
        %v953 = vunpack.c.h.b16 %v820
        %v954 = vunpack.c.l.b16 %v821
        %v955 = vunpack.c.h.b16 %v821
        %v956 = vunpack.c.l.b16 %v822
        %v957 = vunpack.c.h.b16 %v822
        %v958 = vunpack.c.l.b16 %v823
        %v959 = vunpack.c.h.b16 %v823
        %v960 = vunpack.c.l.b16 %v824
        %v961 = vunpack.c.h.b16 %v824
        %v962 = vunpack.c.l.b16 %v825
        %v963 = vunpack.c.h.b16 %v825
        %v964 = vunpack.c.l.b16 %v826
        %v965 = vunpack.c.h.b16 %v826
        %v966 = vunpack.c.l.b16 %v827
        %v967 = vunpack.c.h.b16 %v827
        %v968 = vunpack.c.l.b16 %v828
        %v969 = vunpack.c.h.b16 %v828
        %v970 = vunpack.c.l.b16 %v829
        %v971 = vunpack.c.h.b16 %v829
        %v972 = vunpack.c.l.b16 %v830
        %v973 = vunpack.c.h.b16 %v830
        %v974 = vunpack.c.l.b16 %v831
        %v975 = vunpack.c.h.b16 %v831
        %v976 = vpack.c.b16 %v884, %v880
        %v977 = vpack.c.b16 %v885, %v881
        %v978 = vpack.c.b16 %v886, %v882
        %v979 = vpack.c.b16 %v887, %v883
        %v980 = vpack.c.b16 %v892, %v888
        %v981 = vpack.c.b16 %v893, %v889
        %v982 = vpack.c.b16 %v894, %v890
        %v983 = vpack.c.b16 %v895, %v891
        %v984 = vpack.c.b16 %v900, %v896
        %v985 = vpack.c.b16 %v901, %v897
        %v986 = vpack.c.b16 %v902, %v898
        %v987 = vpack.c.b16 %v903, %v899
        %v988 = vpack.c.b16 %v908, %v904
        %v989 = vpack.c.b16 %v909, %v905
        %v990 = vpack.c.b16 %v910, %v906
        %v991 = vpack.c.b16 %v911, %v907
        %v992 = vpack.c.b16 %v916, %v912
        %v993 = vpack.c.b16 %v917, %v913
        %v994 = vpack.c.b16 %v918, %v914
        %v995 = vpack.c.b16 %v919, %v915
        %v996 = vpack.c.b16 %v924, %v920
        %v997 = vpack.c.b16 %v925, %v921
        %v998 = vpack.c.b16 %v926, %v922
        %v999 = vpack.c.b16 %v927, %v923
        %v1000 = vpack.c.b16 %v932, %v928
        %v1001 = vpack.c.b16 %v933, %v929
        %v1002 = vpack.c.b16 %v934, %v930
        %v1003 = vpack.c.b16 %v935, %v931
        %v1004 = vpack.c.b16 %v940, %v936
        %v1005 = vpack.c.b16 %v941, %v937
        %v1006 = vpack.c.b16 %v942, %v938
        %v1007 = vpack.c.b16 %v943, %v939
        %v1008 = vpack.c.b16 %v948, %v944
        %v1009 = vpack.c.b16 %v949, %v945
        %v1010 = vpack.c.b16 %v950, %v946
        %v1011 = vpack.c.b16 %v951, %v947
        %v1012 = vpack.c.b16 %v956, %v952
        %v1013 = vpack.c.b16 %v957, %v953
        %v1014 = vpack.c.b16 %v958, %v954
        %v1015 = vpack.c.b16 %v959, %v955
        %v1016 = vpack.c.b16 %v964, %v960
        %v1017 = vpack.c.b16 %v965, %v961
        %v1018 = vpack.c.b16 %v966, %v962
        %v1019 = vpack.c.b16 %v967, %v963
        %v1020 = vpack.c.b16 %v972, %v968
        %v1021 = vpack.c.b16 %v973, %v969
        %v1022 = vpack.c.b16 %v974, %v970
        %v1023 = vpack.c.b16 %v975, %v971
        %vm1072 = vcmask 523264
        %v1074 = vsel %vm1072, %v783, 0
        %1076 = vmatprep.subr.bf16.mxu0 %v1005
        %1077 = vmatpush1.bf16.msra.mxu0 %v1004
        %1078 = vmatprep.subr.bf16.mxu0 %v1001
        %1079 = vmatpush1.bf16.msra.mxu0 %v1000
        %1080 = vmatprep.subr.bf16.mxu0 %v997
        %1081 = vmatpush1.bf16.msra.mxu0 %v996
        %1082 = vmatprep.subr.bf16.mxu0 %v993
        %1083 = vmatpush1.bf16.msra.mxu0 %v992
        %1084 = vmatprep.subr.bf16.mxu0 %v989
        %1085 = vmatpush1.bf16.msra.mxu0 %v988
        %1086 = vmatprep.subr.bf16.mxu0 %v985
        %1087 = vmatpush1.bf16.msra.mxu0 %v984
        %1088 = vmatprep.subr.bf16.mxu0 %v981
        %1089 = vmatpush1.bf16.msra.mxu0 %v980
        %1090 = vmatprep.subr.bf16.mxu0 %v977
        %1091 = vmatpush1.bf16.msra.mxu0 %v976
        %1092 = vmatprep.subr.bf16.mxu0 0
        %1093 = vmatpush2.bf16.msra.mxu0 0
        %1094 = vmatprep.subr.bf16.mxu0 0
        %1095 = vmatpush2.bf16.msra.mxu0 0
        %1096 = vmatprep.subr.bf16.mxu0 0
        %1097 = vmatpush2.bf16.msra.mxu0 0
        %1098 = vmatprep.subr.bf16.mxu0 0
        %1099 = vmatpush2.bf16.msra.mxu0 0
        %1100 = vmatprep.subr.bf16.mxu0 %v1021
        %1101 = vmatpush2.bf16.msra.mxu0 %v1020
        %1102 = vmatprep.subr.bf16.mxu0 %v1017
        %1103 = vmatpush2.bf16.msra.mxu0 %v1016
        %1104 = vmatprep.subr.bf16.mxu0 %v1013
        %1105 = vmatpush2.bf16.msra.mxu0 %v1012
        %1106 = vmatprep.subr.bf16.mxu0 %v1009
        %1107 = vmatpush2.bf16.msra.mxu0 %v1008
        %1108 = vmatprep.mubr.bf16.mxu0 %v1074
        %1109 = vmatmul.mubr.bf16.gmra.mxu0 %v782
        %v1110 = vpop.f32.mrf.mxu0
        %v1111 = vadd.f32 0.0, %v1110
        %v1112 = vpop.f32.mrf.mxu0
        %v1113 = vadd.f32 0.0, %v1112
        %v1114 = vpop.f32.mrf.mxu0
        %v1115 = vpop.f32.mrf.mxu0
        %1116 = vdwg.mxu0
        %1117 = vmatprep.subr.bf16.mxu0 %v1007
        %1118 = vmatpush1.bf16.msra.mxu0 %v1006
        %1119 = vmatprep.subr.bf16.mxu0 %v1003
        %1120 = vmatpush1.bf16.msra.mxu0 %v1002
        %1121 = vmatprep.subr.bf16.mxu0 %v999
        %1122 = vmatpush1.bf16.msra.mxu0 %v998
        %1123 = vmatprep.subr.bf16.mxu0 %v995
        %1124 = vmatpush1.bf16.msra.mxu0 %v994
        %1125 = vmatprep.subr.bf16.mxu0 %v991
        %1126 = vmatpush1.bf16.msra.mxu0 %v990
        %1127 = vmatprep.subr.bf16.mxu0 %v987
        %1128 = vmatpush1.bf16.msra.mxu0 %v986
        %1129 = vmatprep.subr.bf16.mxu0 %v983
        %1130 = vmatpush1.bf16.msra.mxu0 %v982
        %1131 = vmatprep.subr.bf16.mxu0 %v979
        %1132 = vmatpush1.bf16.msra.mxu0 %v978
        %1133 = vmatprep.subr.bf16.mxu0 0
        %1134 = vmatpush2.bf16.msra.mxu0 0
        %1135 = vmatprep.subr.bf16.mxu0 0
        %1136 = vmatpush2.bf16.msra.mxu0 0
        %1137 = vmatprep.subr.bf16.mxu0 0
        %1138 = vmatpush2.bf16.msra.mxu0 0
        %1139 = vmatprep.subr.bf16.mxu0 0
        %1140 = vmatpush2.bf16.msra.mxu0 0
        %1141 = vmatprep.subr.bf16.mxu0 %v1023
        %1142 = vmatpush2.bf16.msra.mxu0 %v1022
        %1143 = vmatprep.subr.bf16.mxu0 %v1019
        %1144 = vmatpush2.bf16.msra.mxu0 %v1018
        %1145 = vmatprep.subr.bf16.mxu0 %v1015
        %1146 = vmatpush2.bf16.msra.mxu0 %v1014
        %1147 = vmatprep.subr.bf16.mxu0 %v1011
        %1148 = vmatpush2.bf16.msra.mxu0 %v1010
        %1149 = vmatprep.mubr.bf16.mxu0 %v1074
        %1150 = vmatmul.mubr.bf16.gmra.mxu0 %v782
        %v1151 = vpop.f32.mrf.mxu0
        %v1152 = vadd.f32 0.0, %v1151
        %v1153 = vpop.f32.mrf.mxu0
        %v1154 = vadd.f32 0.0, %v1153
        %v1155 = vpop.f32.mrf.mxu0
        %v1156 = vpop.f32.mrf.mxu0
        %1157 = vdwg.mxu0
        %v1158 = vadd.f32 %v776, %v1111
        %v1159 = vadd.f32 %v777, %v1113
        %v1160 = vadd.f32 %v778, %v1152
        %v1161 = vadd.f32 %v779, %v1154
        %v1162 = vpack.c.bf16 %v691, %v691
        %v1163 = vld [vmem:[#allocation7] sm:$0xff]
        %v1164 = vld [vmem:[#allocation7 + $0x8] sm:$0xff]
        %v1165 = vld [vmem:[#allocation7 + $0x10] sm:$0xff]
        %v1166 = vld [vmem:[#allocation7 + $0x18] sm:$0xff]
        %v1167 = vld [vmem:[#allocation7 + $0x20] sm:$0xff]
        %v1168 = vld [vmem:[#allocation7 + $0x28] sm:$0xff]
        %v1169 = vld [vmem:[#allocation7 + $0x30] sm:$0xff]
        %v1170 = vld [vmem:[#allocation7 + $0x38] sm:$0xff]
        %v1171 = vld [vmem:[#allocation7 + $0x40] sm:$0xff]
        %v1172 = vld [vmem:[#allocation7 + $0x48] sm:$0xff]
        %v1173 = vld [vmem:[#allocation7 + $0x50] sm:$0xff]
        %v1174 = vld [vmem:[#allocation7 + $0x58] sm:$0xff]
        %v1187 = vunpack.c.l.b16 %v1163
        %v1188 = vunpack.c.h.b16 %v1163
        %v1189 = vunpack.c.l.b16 %v1164
        %v1190 = vunpack.c.h.b16 %v1164
        %v1191 = vunpack.c.l.b16 %v1165
        %v1192 = vunpack.c.h.b16 %v1165
        %v1193 = vunpack.c.l.b16 %v1166
        %v1194 = vunpack.c.h.b16 %v1166
        %v1195 = vunpack.c.l.b16 %v1167
        %v1196 = vunpack.c.h.b16 %v1167
        %v1197 = vunpack.c.l.b16 %v1168
        %v1198 = vunpack.c.h.b16 %v1168
        %v1199 = vunpack.c.l.b16 %v1169
        %v1200 = vunpack.c.h.b16 %v1169
        %v1201 = vunpack.c.l.b16 %v1170
        %v1202 = vunpack.c.h.b16 %v1170
        %v1203 = vunpack.c.l.b16 %v1171
        %v1204 = vunpack.c.h.b16 %v1171
        %v1205 = vunpack.c.l.b16 %v1172
        %v1206 = vunpack.c.h.b16 %v1172
        %v1207 = vunpack.c.l.b16 %v1173
        %v1208 = vunpack.c.h.b16 %v1173
        %v1209 = vunpack.c.l.b16 %v1174
        %v1210 = vunpack.c.h.b16 %v1174
        %v1211 = vpack.c.b16 %v1191, %v1187
        %v1212 = vpack.c.b16 %v1192, %v1188
        %v1213 = vpack.c.b16 %v1193, %v1189
        %v1214 = vpack.c.b16 %v1194, %v1190
        %v1215 = vpack.c.b16 %v1199, %v1195
        %v1216 = vpack.c.b16 %v1200, %v1196
        %v1217 = vpack.c.b16 %v1201, %v1197
        %v1218 = vpack.c.b16 %v1202, %v1198
        %v1219 = vpack.c.b16 %v1207, %v1203
        %v1220 = vpack.c.b16 %v1208, %v1204
        %v1221 = vpack.c.b16 %v1209, %v1205
        %v1222 = vpack.c.b16 %v1210, %v1206
        %vm1235 = vcmask 392192
        %v1237 = vsel %vm1235, %v1162, 0
        %1239 = vmatprep.subr.bf16.mxu0 0
        %1240 = vmatpush1.bf16.msra.mxu0 0
        %1241 = vmatprep.subr.bf16.mxu0 0
        %1242 = vmatpush1.bf16.msra.mxu0 0
        %1243 = vmatprep.subr.bf16.mxu0 0
        %1244 = vmatpush1.bf16.msra.mxu0 0
        %1245 = vmatprep.subr.bf16.mxu0 0
        %1246 = vmatpush1.bf16.msra.mxu0 0
        %1247 = vmatprep.subr.bf16.mxu0 0
        %1248 = vmatpush1.bf16.msra.mxu0 0
        %1249 = vmatprep.subr.bf16.mxu0 %v1220
        %1250 = vmatpush1.bf16.msra.mxu0 %v1219
        %1251 = vmatprep.subr.bf16.mxu0 %v1216
        %1252 = vmatpush1.bf16.msra.mxu0 %v1215
        %1253 = vmatprep.subr.bf16.mxu0 %v1212
        %1254 = vmatpush1.bf16.msra.mxu0 %v1211
        %1255 = vmatprep.subr.bf16.mxu0 0
        %1256 = vmatpush2.bf16.msra.mxu0 0
        %1257 = vmatprep.subr.bf16.mxu0 0
        %1258 = vmatpush2.bf16.msra.mxu0 0
        %1259 = vmatprep.subr.bf16.mxu0 0
        %1260 = vmatpush2.bf16.msra.mxu0 0
        %1261 = vmatprep.subr.bf16.mxu0 0
        %1262 = vmatpush2.bf16.msra.mxu0 0
        %1263 = vmatprep.subr.bf16.mxu0 0
        %1264 = vmatpush2.bf16.msra.mxu0 0
        %1265 = vmatprep.subr.bf16.mxu0 0
        %1266 = vmatpush2.bf16.msra.mxu0 0
        %1267 = vmatprep.subr.bf16.mxu0 0
        %1268 = vmatpush2.bf16.msra.mxu0 0
        %1269 = vmatprep.subr.bf16.mxu0 0
        %1270 = vmatpush2.bf16.msra.mxu0 0
        %1271 = vmatprep.mubr.bf16.mxu0 0
        %1272 = vmatmul.mubr.bf16.gmra.mxu0 %v1237
        %v1273 = vpop.f32.mrf.mxu0
        %v1274 = vadd.f32 0.0, %v1273
        %v1275 = vpop.f32.mrf.mxu0
        %v1276 = vadd.f32 0.0, %v1275
        %v1277 = vpop.f32.mrf.mxu0
        %v1278 = vpop.f32.mrf.mxu0
        %1279 = vdwg.mxu0
        %1280 = vmatprep.subr.bf16.mxu0 0
        %1281 = vmatpush1.bf16.msra.mxu0 0
        %1282 = vmatprep.subr.bf16.mxu0 0
        %1283 = vmatpush1.bf16.msra.mxu0 0
        %1284 = vmatprep.subr.bf16.mxu0 0
        %1285 = vmatpush1.bf16.msra.mxu0 0
        %1286 = vmatprep.subr.bf16.mxu0 0
        %1287 = vmatpush1.bf16.msra.mxu0 0
        %1288 = vmatprep.subr.bf16.mxu0 0
        %1289 = vmatpush1.bf16.msra.mxu0 0
        %1290 = vmatprep.subr.bf16.mxu0 %v1222
        %1291 = vmatpush1.bf16.msra.mxu0 %v1221
        %1292 = vmatprep.subr.bf16.mxu0 %v1218
        %1293 = vmatpush1.bf16.msra.mxu0 %v1217
        %1294 = vmatprep.subr.bf16.mxu0 %v1214
        %1295 = vmatpush1.bf16.msra.mxu0 %v1213
        %1296 = vmatprep.subr.bf16.mxu0 0
        %1297 = vmatpush2.bf16.msra.mxu0 0
        %1298 = vmatprep.subr.bf16.mxu0 0
        %1299 = vmatpush2.bf16.msra.mxu0 0
        %1300 = vmatprep.subr.bf16.mxu0 0
        %1301 = vmatpush2.bf16.msra.mxu0 0
        %1302 = vmatprep.subr.bf16.mxu0 0
        %1303 = vmatpush2.bf16.msra.mxu0 0
        %1304 = vmatprep.subr.bf16.mxu0 0
        %1305 = vmatpush2.bf16.msra.mxu0 0
        %1306 = vmatprep.subr.bf16.mxu0 0
        %1307 = vmatpush2.bf16.msra.mxu0 0
        %1308 = vmatprep.subr.bf16.mxu0 0
        %1309 = vmatpush2.bf16.msra.mxu0 0
        %1310 = vmatprep.subr.bf16.mxu0 0
        %1311 = vmatpush2.bf16.msra.mxu0 0
        %1312 = vmatprep.mubr.bf16.mxu0 0
        %1313 = vmatmul.mubr.bf16.gmra.mxu0 %v1237
        %v1314 = vpop.f32.mrf.mxu0
        %v1315 = vadd.f32 0.0, %v1314
        %v1316 = vpop.f32.mrf.mxu0
        %v1317 = vadd.f32 0.0, %v1316
        %v1318 = vpop.f32.mrf.mxu0
        %v1319 = vpop.f32.mrf.mxu0
        %1320 = vdwg.mxu0
        %v1321 = vadd.f32 %v1158, %v1274
        %v1322 = vadd.f32 %v1159, %v1276
        %v1323 = vadd.f32 %v1160, %v1315
        %v1324 = vadd.f32 %v1161, %v1317
        %v1325 = vld [vmem:[%s6] sm:$0xf]
        %v1327 = vlaneseq
        %v1328 = vshrl.u32 %v1327, 7
        %v1329 = vsub.s32 0, %v1328
        %v1330 = vrot.slane %v1325, %v1329
        %v1331 = vlaneseq
        %v1332 = vshrl.u32 %v1331, 7
        %v1333 = vsub.s32 1, %v1332
        %v1334 = vrot.slane %v1325, %v1333
        %v1335 = vlaneseq
        %v1336 = vshrl.u32 %v1335, 7
        %v1337 = vsub.s32 2, %v1336
        %v1338 = vrot.slane %v1325, %v1337
        %v1339 = vlaneseq
        %v1340 = vshrl.u32 %v1339, 7
        %v1341 = vsub.s32 3, %v1340
        %v1342 = vrot.slane %v1325, %v1341
        %v1347 = vadd.f32 %v1321, %v1330
        %v1348 = vadd.f32 %v1322, %v1334
        %v1349 = vadd.f32 %v1323, %v1338
        %v1350 = vadd.f32 %v1324, %v1342
        %v1351 = vmax.f32 %v1347, 0.0
        %v1352 = vmax.f32 %v1348, 0.0
        %v1353 = vmax.f32 %v1349, 0.0
        %v1354 = vmax.f32 %v1350, 0.0
        %v1355 = vpack.c.bf16 %v1351, %v1351
        %v1356 = vpack.c.bf16 %v1352, %v1352
        %v1357 = vpack.c.bf16 %v1353, %v1353
        %v1358 = vpack.c.bf16 %v1354, %v1354
        %v1359 = vld [vmem:[#allocation8] sm:$0xff]
        %v1360 = vld [vmem:[#allocation8 + $0x8] sm:$0xff]
        %v1361 = vld [vmem:[#allocation8 + $0x10] sm:$0xff]
        %v1362 = vld [vmem:[#allocation8 + $0x18] sm:$0xff]
        %v1363 = vld [vmem:[#allocation8 + $0x20] sm:$0xff]
        %v1364 = vld [vmem:[#allocation8 + $0x28] sm:$0xff]
        %v1365 = vld [vmem:[#allocation8 + $0x30] sm:$0xff]
        %v1366 = vld [vmem:[#allocation8 + $0x38] sm:$0xff]
        %v1367 = vld [vmem:[#allocation8 + $0x40] sm:$0xff]
        %v1368 = vld [vmem:[#allocation8 + $0x48] sm:$0xff]
        %v1369 = vld [vmem:[#allocation8 + $0x50] sm:$0xff]
        %v1370 = vld [vmem:[#allocation8 + $0x58] sm:$0xff]
        %v1371 = vld [vmem:[#allocation8 + $0x60] sm:$0xff]
        %v1372 = vld [vmem:[#allocation8 + $0x68] sm:$0xff]
        %v1373 = vld [vmem:[#allocation8 + $0x70] sm:$0xff]
        %v1374 = vld [vmem:[#allocation8 + $0x78] sm:$0xff]
        %v1375 = vld [vmem:[#allocation8 + $0x80] sm:$0xff]
        %v1376 = vld [vmem:[#allocation8 + $0x88] sm:$0xff]
        %v1377 = vld [vmem:[#allocation8 + $0x90] sm:$0xff]
        %v1378 = vld [vmem:[#allocation8 + $0x98] sm:$0xff]
        %v1379 = vld [vmem:[#allocation8 + $0xa0] sm:$0xff]
        %v1380 = vld [vmem:[#allocation8 + $0xa8] sm:$0xff]
        %v1381 = vld [vmem:[#allocation8 + $0xb0] sm:$0xff]
        %v1382 = vld [vmem:[#allocation8 + $0xb8] sm:$0xff]
        %v1383 = vld [vmem:[#allocation8 + $0xc0] sm:$0xff]
        %v1384 = vld [vmem:[#allocation8 + $0xc8] sm:$0xff]
        %v1385 = vld [vmem:[#allocation8 + $0xd0] sm:$0xff]
        %v1386 = vld [vmem:[#allocation8 + $0xd8] sm:$0xff]
        %v1387 = vld [vmem:[#allocation8 + $0xe0] sm:$0xff]
        %v1388 = vld [vmem:[#allocation8 + $0xe8] sm:$0xff]
        %v1389 = vld [vmem:[#allocation8 + $0xf0] sm:$0xff]
        %v1390 = vld [vmem:[#allocation8 + $0xf8] sm:$0xff]
        %v1391 = vld [vmem:[#allocation8 + $0x100] sm:$0xff]
        %v1392 = vld [vmem:[#allocation8 + $0x108] sm:$0xff]
        %v1393 = vld [vmem:[#allocation8 + $0x110] sm:$0xff]
        %v1394 = vld [vmem:[#allocation8 + $0x118] sm:$0xff]
        %v1395 = vld [vmem:[#allocation8 + $0x120] sm:$0xff]
        %v1396 = vld [vmem:[#allocation8 + $0x128] sm:$0xff]
        %v1397 = vld [vmem:[#allocation8 + $0x130] sm:$0xff]
        %v1398 = vld [vmem:[#allocation8 + $0x138] sm:$0xff]
        %v1399 = vld [vmem:[#allocation8 + $0x140] sm:$0xff]
        %v1400 = vld [vmem:[#allocation8 + $0x148] sm:$0xff]
        %v1401 = vld [vmem:[#allocation8 + $0x150] sm:$0xff]
        %v1402 = vld [vmem:[#allocation8 + $0x158] sm:$0xff]
        %v1403 = vld [vmem:[#allocation8 + $0x160] sm:$0xff]
        %v1404 = vld [vmem:[#allocation8 + $0x168] sm:$0xff]
        %v1405 = vld [vmem:[#allocation8 + $0x170] sm:$0xff]
        %v1406 = vld [vmem:[#allocation8 + $0x178] sm:$0xff]
        %v1407 = vld [vmem:[#allocation8 + $0x180] sm:$0xff]
        %v1408 = vld [vmem:[#allocation8 + $0x188] sm:$0xff]
        %v1409 = vld [vmem:[#allocation8 + $0x190] sm:$0xff]
        %v1410 = vld [vmem:[#allocation8 + $0x198] sm:$0xff]
        %v1411 = vld [vmem:[#allocation8 + $0x1a0] sm:$0xff]
        %v1412 = vld [vmem:[#allocation8 + $0x1a8] sm:$0xff]
        %v1413 = vld [vmem:[#allocation8 + $0x1b0] sm:$0xff]
        %v1414 = vld [vmem:[#allocation8 + $0x1b8] sm:$0xff]
        %v1415 = vld [vmem:[#allocation8 + $0x1c0] sm:$0xff]
        %v1416 = vld [vmem:[#allocation8 + $0x1c8] sm:$0xff]
        %v1417 = vld [vmem:[#allocation8 + $0x1d0] sm:$0xff]
        %v1418 = vld [vmem:[#allocation8 + $0x1d8] sm:$0xff]
        %v1419 = vld [vmem:[#allocation8 + $0x1e0] sm:$0xff]
        %v1420 = vld [vmem:[#allocation8 + $0x1e8] sm:$0xff]
        %v1421 = vld [vmem:[#allocation8 + $0x1f0] sm:$0xff]
        %v1422 = vld [vmem:[#allocation8 + $0x1f8] sm:$0xff]
        %v1423 = vld [vmem:[#allocation8 + $0x200] sm:$0xff]
        %v1424 = vld [vmem:[#allocation8 + $0x208] sm:$0xff]
        %v1425 = vld [vmem:[#allocation8 + $0x210] sm:$0xff]
        %v1426 = vld [vmem:[#allocation8 + $0x218] sm:$0xff]
        %v1427 = vld [vmem:[#allocation8 + $0x220] sm:$0xff]
        %v1428 = vld [vmem:[#allocation8 + $0x228] sm:$0xff]
        %v1429 = vld [vmem:[#allocation8 + $0x230] sm:$0xff]
        %v1430 = vld [vmem:[#allocation8 + $0x238] sm:$0xff]
        %v1431 = vld [vmem:[#allocation8 + $0x240] sm:$0xff]
        %v1432 = vld [vmem:[#allocation8 + $0x248] sm:$0xff]
        %v1433 = vld [vmem:[#allocation8 + $0x250] sm:$0xff]
        %v1434 = vld [vmem:[#allocation8 + $0x258] sm:$0xff]
        %v1435 = vld [vmem:[#allocation8 + $0x260] sm:$0xff]
        %v1436 = vld [vmem:[#allocation8 + $0x268] sm:$0xff]
        %v1437 = vld [vmem:[#allocation8 + $0x270] sm:$0xff]
        %v1438 = vld [vmem:[#allocation8 + $0x278] sm:$0xff]
        %v1439 = vld [vmem:[#allocation8 + $0x280] sm:$0xff]
        %v1440 = vld [vmem:[#allocation8 + $0x288] sm:$0xff]
        %v1441 = vld [vmem:[#allocation8 + $0x290] sm:$0xff]
        %v1442 = vld [vmem:[#allocation8 + $0x298] sm:$0xff]
        %v1443 = vld [vmem:[#allocation8 + $0x2a0] sm:$0xff]
        %v1444 = vld [vmem:[#allocation8 + $0x2a8] sm:$0xff]
        %v1445 = vld [vmem:[#allocation8 + $0x2b0] sm:$0xff]
        %v1446 = vld [vmem:[#allocation8 + $0x2b8] sm:$0xff]
        %v1447 = vld [vmem:[#allocation8 + $0x2c0] sm:$0xff]
        %v1448 = vld [vmem:[#allocation8 + $0x2c8] sm:$0xff]
        %v1449 = vld [vmem:[#allocation8 + $0x2d0] sm:$0xff]
        %v1450 = vld [vmem:[#allocation8 + $0x2d8] sm:$0xff]
        %v1451 = vld [vmem:[#allocation8 + $0x2e0] sm:$0xff]
        %v1452 = vld [vmem:[#allocation8 + $0x2e8] sm:$0xff]
        %v1453 = vld [vmem:[#allocation8 + $0x2f0] sm:$0xff]
        %v1454 = vld [vmem:[#allocation8 + $0x2f8] sm:$0xff]
        %v1455 = vld [vmem:[#allocation8 + $0x300] sm:$0xff]
        %v1456 = vld [vmem:[#allocation8 + $0x308] sm:$0xff]
        %v1457 = vld [vmem:[#allocation8 + $0x310] sm:$0xff]
        %v1458 = vld [vmem:[#allocation8 + $0x318] sm:$0xff]
        %v1459 = vld [vmem:[#allocation8 + $0x320] sm:$0xff]
        %v1460 = vld [vmem:[#allocation8 + $0x328] sm:$0xff]
        %v1461 = vld [vmem:[#allocation8 + $0x330] sm:$0xff]
        %v1462 = vld [vmem:[#allocation8 + $0x338] sm:$0xff]
        %v1463 = vld [vmem:[#allocation8 + $0x340] sm:$0xff]
        %v1464 = vld [vmem:[#allocation8 + $0x348] sm:$0xff]
        %v1465 = vld [vmem:[#allocation8 + $0x350] sm:$0xff]
        %v1466 = vld [vmem:[#allocation8 + $0x358] sm:$0xff]
        %v1467 = vld [vmem:[#allocation8 + $0x360] sm:$0xff]
        %v1468 = vld [vmem:[#allocation8 + $0x368] sm:$0xff]
        %v1469 = vld [vmem:[#allocation8 + $0x370] sm:$0xff]
        %v1470 = vld [vmem:[#allocation8 + $0x378] sm:$0xff]
        %v1471 = vld [vmem:[#allocation8 + $0x380] sm:$0xff]
        %v1472 = vld [vmem:[#allocation8 + $0x388] sm:$0xff]
        %v1473 = vld [vmem:[#allocation8 + $0x390] sm:$0xff]
        %v1474 = vld [vmem:[#allocation8 + $0x398] sm:$0xff]
        %v1475 = vld [vmem:[#allocation8 + $0x3a0] sm:$0xff]
        %v1476 = vld [vmem:[#allocation8 + $0x3a8] sm:$0xff]
        %v1477 = vld [vmem:[#allocation8 + $0x3b0] sm:$0xff]
        %v1478 = vld [vmem:[#allocation8 + $0x3b8] sm:$0xff]
        %v1479 = vld [vmem:[#allocation8 + $0x3c0] sm:$0xff]
        %v1480 = vld [vmem:[#allocation8 + $0x3c8] sm:$0xff]
        %v1481 = vld [vmem:[#allocation8 + $0x3d0] sm:$0xff]
        %v1482 = vld [vmem:[#allocation8 + $0x3d8] sm:$0xff]
        %v1483 = vld [vmem:[#allocation8 + $0x3e0] sm:$0xff]
        %v1484 = vld [vmem:[#allocation8 + $0x3e8] sm:$0xff]
        %v1485 = vld [vmem:[#allocation8 + $0x3f0] sm:$0xff]
        %v1486 = vld [vmem:[#allocation8 + $0x3f8] sm:$0xff]
        %v1487 = vld [vmem:[%s8] sm:$0xf]
        %v1489 = vlaneseq
        %v1490 = vshrl.u32 %v1489, 7
        %v1491 = vsub.s32 0, %v1490
        %v1492 = vrot.slane %v1487, %v1491
        %v1493 = vlaneseq
        %v1494 = vshrl.u32 %v1493, 7
        %v1495 = vsub.s32 1, %v1494
        %v1496 = vrot.slane %v1487, %v1495
        %v1497 = vlaneseq
        %v1498 = vshrl.u32 %v1497, 7
        %v1499 = vsub.s32 2, %v1498
        %v1500 = vrot.slane %v1487, %v1499
        %v1501 = vlaneseq
        %v1502 = vshrl.u32 %v1501, 7
        %v1503 = vsub.s32 3, %v1502
        %v1504 = vrot.slane %v1487, %v1503
        %v1637 = vunpack.c.l.b16 %v1359
        %v1638 = vunpack.c.h.b16 %v1359
        %v1639 = vunpack.c.l.b16 %v1360
        %v1640 = vunpack.c.h.b16 %v1360
        %v1641 = vunpack.c.l.b16 %v1361
        %v1642 = vunpack.c.h.b16 %v1361
        %v1643 = vunpack.c.l.b16 %v1362
        %v1644 = vunpack.c.h.b16 %v1362
        %v1645 = vunpack.c.l.b16 %v1363
        %v1646 = vunpack.c.h.b16 %v1363
        %v1647 = vunpack.c.l.b16 %v1364
        %v1648 = vunpack.c.h.b16 %v1364
        %v1649 = vunpack.c.l.b16 %v1365
        %v1650 = vunpack.c.h.b16 %v1365
        %v1651 = vunpack.c.l.b16 %v1366
        %v1652 = vunpack.c.h.b16 %v1366
        %v1653 = vunpack.c.l.b16 %v1367
        %v1654 = vunpack.c.h.b16 %v1367
        %v1655 = vunpack.c.l.b16 %v1368
        %v1656 = vunpack.c.h.b16 %v1368
        %v1657 = vunpack.c.l.b16 %v1369
        %v1658 = vunpack.c.h.b16 %v1369
        %v1659 = vunpack.c.l.b16 %v1370
        %v1660 = vunpack.c.h.b16 %v1370
        %v1661 = vunpack.c.l.b16 %v1371
        %v1662 = vunpack.c.h.b16 %v1371
        %v1663 = vunpack.c.l.b16 %v1372
        %v1664 = vunpack.c.h.b16 %v1372
        %v1665 = vunpack.c.l.b16 %v1373
        %v1666 = vunpack.c.h.b16 %v1373
        %v1667 = vunpack.c.l.b16 %v1374
        %v1668 = vunpack.c.h.b16 %v1374
        %v1669 = vunpack.c.l.b16 %v1375
        %v1670 = vunpack.c.h.b16 %v1375
        %v1671 = vunpack.c.l.b16 %v1376
        %v1672 = vunpack.c.h.b16 %v1376
        %v1673 = vunpack.c.l.b16 %v1377
        %v1674 = vunpack.c.h.b16 %v1377
        %v1675 = vunpack.c.l.b16 %v1378
        %v1676 = vunpack.c.h.b16 %v1378
        %v1677 = vunpack.c.l.b16 %v1379
        %v1678 = vunpack.c.h.b16 %v1379
        %v1679 = vunpack.c.l.b16 %v1380
        %v1680 = vunpack.c.h.b16 %v1380
        %v1681 = vunpack.c.l.b16 %v1381
        %v1682 = vunpack.c.h.b16 %v1381
        %v1683 = vunpack.c.l.b16 %v1382
        %v1684 = vunpack.c.h.b16 %v1382
        %v1685 = vunpack.c.l.b16 %v1383
        %v1686 = vunpack.c.h.b16 %v1383
        %v1687 = vunpack.c.l.b16 %v1384
        %v1688 = vunpack.c.h.b16 %v1384
        %v1689 = vunpack.c.l.b16 %v1385
        %v1690 = vunpack.c.h.b16 %v1385
        %v1691 = vunpack.c.l.b16 %v1386
        %v1692 = vunpack.c.h.b16 %v1386
        %v1693 = vunpack.c.l.b16 %v1387
        %v1694 = vunpack.c.h.b16 %v1387
        %v1695 = vunpack.c.l.b16 %v1388
        %v1696 = vunpack.c.h.b16 %v1388
        %v1697 = vunpack.c.l.b16 %v1389
        %v1698 = vunpack.c.h.b16 %v1389
        %v1699 = vunpack.c.l.b16 %v1390
        %v1700 = vunpack.c.h.b16 %v1390
        %v1701 = vunpack.c.l.b16 %v1391
        %v1702 = vunpack.c.h.b16 %v1391
        %v1703 = vunpack.c.l.b16 %v1392
        %v1704 = vunpack.c.h.b16 %v1392
        %v1705 = vunpack.c.l.b16 %v1393
        %v1706 = vunpack.c.h.b16 %v1393
        %v1707 = vunpack.c.l.b16 %v1394
        %v1708 = vunpack.c.h.b16 %v1394
        %v1709 = vunpack.c.l.b16 %v1395
        %v1710 = vunpack.c.h.b16 %v1395
        %v1711 = vunpack.c.l.b16 %v1396
        %v1712 = vunpack.c.h.b16 %v1396
        %v1713 = vunpack.c.l.b16 %v1397
        %v1714 = vunpack.c.h.b16 %v1397
        %v1715 = vunpack.c.l.b16 %v1398
        %v1716 = vunpack.c.h.b16 %v1398
        %v1717 = vunpack.c.l.b16 %v1399
        %v1718 = vunpack.c.h.b16 %v1399
        %v1719 = vunpack.c.l.b16 %v1400
        %v1720 = vunpack.c.h.b16 %v1400
        %v1721 = vunpack.c.l.b16 %v1401
        %v1722 = vunpack.c.h.b16 %v1401
        %v1723 = vunpack.c.l.b16 %v1402
        %v1724 = vunpack.c.h.b16 %v1402
        %v1725 = vunpack.c.l.b16 %v1403
        %v1726 = vunpack.c.h.b16 %v1403
        %v1727 = vunpack.c.l.b16 %v1404
        %v1728 = vunpack.c.h.b16 %v1404
        %v1729 = vunpack.c.l.b16 %v1405
        %v1730 = vunpack.c.h.b16 %v1405
        %v1731 = vunpack.c.l.b16 %v1406
        %v1732 = vunpack.c.h.b16 %v1406
        %v1733 = vunpack.c.l.b16 %v1407
        %v1734 = vunpack.c.h.b16 %v1407
        %v1735 = vunpack.c.l.b16 %v1408
        %v1736 = vunpack.c.h.b16 %v1408
        %v1737 = vunpack.c.l.b16 %v1409
        %v1738 = vunpack.c.h.b16 %v1409
        %v1739 = vunpack.c.l.b16 %v1410
        %v1740 = vunpack.c.h.b16 %v1410
        %v1741 = vunpack.c.l.b16 %v1411
        %v1742 = vunpack.c.h.b16 %v1411
        %v1743 = vunpack.c.l.b16 %v1412
        %v1744 = vunpack.c.h.b16 %v1412
        %v1745 = vunpack.c.l.b16 %v1413
        %v1746 = vunpack.c.h.b16 %v1413
        %v1747 = vunpack.c.l.b16 %v1414
        %v1748 = vunpack.c.h.b16 %v1414
        %v1749 = vunpack.c.l.b16 %v1415
        %v1750 = vunpack.c.h.b16 %v1415
        %v1751 = vunpack.c.l.b16 %v1416
        %v1752 = vunpack.c.h.b16 %v1416
        %v1753 = vunpack.c.l.b16 %v1417
        %v1754 = vunpack.c.h.b16 %v1417
        %v1755 = vunpack.c.l.b16 %v1418
        %v1756 = vunpack.c.h.b16 %v1418
        %v1757 = vunpack.c.l.b16 %v1419
        %v1758 = vunpack.c.h.b16 %v1419
        %v1759 = vunpack.c.l.b16 %v1420
        %v1760 = vunpack.c.h.b16 %v1420
        %v1761 = vunpack.c.l.b16 %v1421
        %v1762 = vunpack.c.h.b16 %v1421
        %v1763 = vunpack.c.l.b16 %v1422
        %v1764 = vunpack.c.h.b16 %v1422
        %v1765 = vunpack.c.l.b16 %v1423
        %v1766 = vunpack.c.h.b16 %v1423
        %v1767 = vunpack.c.l.b16 %v1424
        %v1768 = vunpack.c.h.b16 %v1424
        %v1769 = vunpack.c.l.b16 %v1425
        %v1770 = vunpack.c.h.b16 %v1425
        %v1771 = vunpack.c.l.b16 %v1426
        %v1772 = vunpack.c.h.b16 %v1426
        %v1773 = vunpack.c.l.b16 %v1427
        %v1774 = vunpack.c.h.b16 %v1427
        %v1775 = vunpack.c.l.b16 %v1428
        %v1776 = vunpack.c.h.b16 %v1428
        %v1777 = vunpack.c.l.b16 %v1429
        %v1778 = vunpack.c.h.b16 %v1429
        %v1779 = vunpack.c.l.b16 %v1430
        %v1780 = vunpack.c.h.b16 %v1430
        %v1781 = vunpack.c.l.b16 %v1431
        %v1782 = vunpack.c.h.b16 %v1431
        %v1783 = vunpack.c.l.b16 %v1432
        %v1784 = vunpack.c.h.b16 %v1432
        %v1785 = vunpack.c.l.b16 %v1433
        %v1786 = vunpack.c.h.b16 %v1433
        %v1787 = vunpack.c.l.b16 %v1434
        %v1788 = vunpack.c.h.b16 %v1434
        %v1789 = vunpack.c.l.b16 %v1435
        %v1790 = vunpack.c.h.b16 %v1435
        %v1791 = vunpack.c.l.b16 %v1436
        %v1792 = vunpack.c.h.b16 %v1436
        %v1793 = vunpack.c.l.b16 %v1437
        %v1794 = vunpack.c.h.b16 %v1437
        %v1795 = vunpack.c.l.b16 %v1438
        %v1796 = vunpack.c.h.b16 %v1438
        %v1797 = vunpack.c.l.b16 %v1439
        %v1798 = vunpack.c.h.b16 %v1439
        %v1799 = vunpack.c.l.b16 %v1440
        %v1800 = vunpack.c.h.b16 %v1440
        %v1801 = vunpack.c.l.b16 %v1441
        %v1802 = vunpack.c.h.b16 %v1441
        %v1803 = vunpack.c.l.b16 %v1442
        %v1804 = vunpack.c.h.b16 %v1442
        %v1805 = vunpack.c.l.b16 %v1443
        %v1806 = vunpack.c.h.b16 %v1443
        %v1807 = vunpack.c.l.b16 %v1444
        %v1808 = vunpack.c.h.b16 %v1444
        %v1809 = vunpack.c.l.b16 %v1445
        %v1810 = vunpack.c.h.b16 %v1445
        %v1811 = vunpack.c.l.b16 %v1446
        %v1812 = vunpack.c.h.b16 %v1446
        %v1813 = vunpack.c.l.b16 %v1447
        %v1814 = vunpack.c.h.b16 %v1447
        %v1815 = vunpack.c.l.b16 %v1448
        %v1816 = vunpack.c.h.b16 %v1448
        %v1817 = vunpack.c.l.b16 %v1449
        %v1818 = vunpack.c.h.b16 %v1449
        %v1819 = vunpack.c.l.b16 %v1450
        %v1820 = vunpack.c.h.b16 %v1450
        %v1821 = vunpack.c.l.b16 %v1451
        %v1822 = vunpack.c.h.b16 %v1451
        %v1823 = vunpack.c.l.b16 %v1452
        %v1824 = vunpack.c.h.b16 %v1452
        %v1825 = vunpack.c.l.b16 %v1453
        %v1826 = vunpack.c.h.b16 %v1453
        %v1827 = vunpack.c.l.b16 %v1454
        %v1828 = vunpack.c.h.b16 %v1454
        %v1829 = vunpack.c.l.b16 %v1455
        %v1830 = vunpack.c.h.b16 %v1455
        %v1831 = vunpack.c.l.b16 %v1456
        %v1832 = vunpack.c.h.b16 %v1456
        %v1833 = vunpack.c.l.b16 %v1457
        %v1834 = vunpack.c.h.b16 %v1457
        %v1835 = vunpack.c.l.b16 %v1458
        %v1836 = vunpack.c.h.b16 %v1458
        %v1837 = vunpack.c.l.b16 %v1459
        %v1838 = vunpack.c.h.b16 %v1459
        %v1839 = vunpack.c.l.b16 %v1460
        %v1840 = vunpack.c.h.b16 %v1460
        %v1841 = vunpack.c.l.b16 %v1461
        %v1842 = vunpack.c.h.b16 %v1461
        %v1843 = vunpack.c.l.b16 %v1462
        %v1844 = vunpack.c.h.b16 %v1462
        %v1845 = vunpack.c.l.b16 %v1463
        %v1846 = vunpack.c.h.b16 %v1463
        %v1847 = vunpack.c.l.b16 %v1464
        %v1848 = vunpack.c.h.b16 %v1464
        %v1849 = vunpack.c.l.b16 %v1465
        %v1850 = vunpack.c.h.b16 %v1465
        %v1851 = vunpack.c.l.b16 %v1466
        %v1852 = vunpack.c.h.b16 %v1466
        %v1853 = vunpack.c.l.b16 %v1467
        %v1854 = vunpack.c.h.b16 %v1467
        %v1855 = vunpack.c.l.b16 %v1468
        %v1856 = vunpack.c.h.b16 %v1468
        %v1857 = vunpack.c.l.b16 %v1469
        %v1858 = vunpack.c.h.b16 %v1469
        %v1859 = vunpack.c.l.b16 %v1470
        %v1860 = vunpack.c.h.b16 %v1470
        %v1861 = vunpack.c.l.b16 %v1471
        %v1862 = vunpack.c.h.b16 %v1471
        %v1863 = vunpack.c.l.b16 %v1472
        %v1864 = vunpack.c.h.b16 %v1472
        %v1865 = vunpack.c.l.b16 %v1473
        %v1866 = vunpack.c.h.b16 %v1473
        %v1867 = vunpack.c.l.b16 %v1474
        %v1868 = vunpack.c.h.b16 %v1474
        %v1869 = vunpack.c.l.b16 %v1475
        %v1870 = vunpack.c.h.b16 %v1475
        %v1871 = vunpack.c.l.b16 %v1476
        %v1872 = vunpack.c.h.b16 %v1476
        %v1873 = vunpack.c.l.b16 %v1477
        %v1874 = vunpack.c.h.b16 %v1477
        %v1875 = vunpack.c.l.b16 %v1478
        %v1876 = vunpack.c.h.b16 %v1478
        %v1877 = vunpack.c.l.b16 %v1479
        %v1878 = vunpack.c.h.b16 %v1479
        %v1879 = vunpack.c.l.b16 %v1480
        %v1880 = vunpack.c.h.b16 %v1480
        %v1881 = vunpack.c.l.b16 %v1481
        %v1882 = vunpack.c.h.b16 %v1481
        %v1883 = vunpack.c.l.b16 %v1482
        %v1884 = vunpack.c.h.b16 %v1482
        %v1885 = vunpack.c.l.b16 %v1483
        %v1886 = vunpack.c.h.b16 %v1483
        %v1887 = vunpack.c.l.b16 %v1484
        %v1888 = vunpack.c.h.b16 %v1484
        %v1889 = vunpack.c.l.b16 %v1485
        %v1890 = vunpack.c.h.b16 %v1485
        %v1891 = vunpack.c.l.b16 %v1486
        %v1892 = vunpack.c.h.b16 %v1486
        %v1893 = vpack.c.b16 %v1641, %v1637
        %v1894 = vpack.c.b16 %v1642, %v1638
        %v1895 = vpack.c.b16 %v1643, %v1639
        %v1896 = vpack.c.b16 %v1644, %v1640
        %v1897 = vpack.c.b16 %v1649, %v1645
        %v1898 = vpack.c.b16 %v1650, %v1646
        %v1899 = vpack.c.b16 %v1651, %v1647
        %v1900 = vpack.c.b16 %v1652, %v1648
        %v1901 = vpack.c.b16 %v1657, %v1653
        %v1902 = vpack.c.b16 %v1658, %v1654
        %v1903 = vpack.c.b16 %v1659, %v1655
        %v1904 = vpack.c.b16 %v1660, %v1656
        %v1905 = vpack.c.b16 %v1665, %v1661
        %v1906 = vpack.c.b16 %v1666, %v1662
        %v1907 = vpack.c.b16 %v1667, %v1663
        %v1908 = vpack.c.b16 %v1668, %v1664
        %v1909 = vpack.c.b16 %v1673, %v1669
        %v1910 = vpack.c.b16 %v1674, %v1670
        %v1911 = vpack.c.b16 %v1675, %v1671
        %v1912 = vpack.c.b16 %v1676, %v1672
        %v1913 = vpack.c.b16 %v1681, %v1677
        %v1914 = vpack.c.b16 %v1682, %v1678
        %v1915 = vpack.c.b16 %v1683, %v1679
        %v1916 = vpack.c.b16 %v1684, %v1680
        %v1917 = vpack.c.b16 %v1689, %v1685
        %v1918 = vpack.c.b16 %v1690, %v1686
        %v1919 = vpack.c.b16 %v1691, %v1687
        %v1920 = vpack.c.b16 %v1692, %v1688
        %v1921 = vpack.c.b16 %v1697, %v1693
        %v1922 = vpack.c.b16 %v1698, %v1694
        %v1923 = vpack.c.b16 %v1699, %v1695
        %v1924 = vpack.c.b16 %v1700, %v1696
        %v1925 = vpack.c.b16 %v1705, %v1701
        %v1926 = vpack.c.b16 %v1706, %v1702
        %v1927 = vpack.c.b16 %v1707, %v1703
        %v1928 = vpack.c.b16 %v1708, %v1704
        %v1929 = vpack.c.b16 %v1713, %v1709
        %v1930 = vpack.c.b16 %v1714, %v1710
        %v1931 = vpack.c.b16 %v1715, %v1711
        %v1932 = vpack.c.b16 %v1716, %v1712
        %v1933 = vpack.c.b16 %v1721, %v1717
        %v1934 = vpack.c.b16 %v1722, %v1718
        %v1935 = vpack.c.b16 %v1723, %v1719
        %v1936 = vpack.c.b16 %v1724, %v1720
        %v1937 = vpack.c.b16 %v1729, %v1725
        %v1938 = vpack.c.b16 %v1730, %v1726
        %v1939 = vpack.c.b16 %v1731, %v1727
        %v1940 = vpack.c.b16 %v1732, %v1728
        %v1941 = vpack.c.b16 %v1737, %v1733
        %v1942 = vpack.c.b16 %v1738, %v1734
        %v1943 = vpack.c.b16 %v1739, %v1735
        %v1944 = vpack.c.b16 %v1740, %v1736
        %v1945 = vpack.c.b16 %v1745, %v1741
        %v1946 = vpack.c.b16 %v1746, %v1742
        %v1947 = vpack.c.b16 %v1747, %v1743
        %v1948 = vpack.c.b16 %v1748, %v1744
        %v1949 = vpack.c.b16 %v1753, %v1749
        %v1950 = vpack.c.b16 %v1754, %v1750
        %v1951 = vpack.c.b16 %v1755, %v1751
        %v1952 = vpack.c.b16 %v1756, %v1752
        %v1953 = vpack.c.b16 %v1761, %v1757
        %v1954 = vpack.c.b16 %v1762, %v1758
        %v1955 = vpack.c.b16 %v1763, %v1759
        %v1956 = vpack.c.b16 %v1764, %v1760
        %v1957 = vpack.c.b16 %v1769, %v1765
        %v1958 = vpack.c.b16 %v1770, %v1766
        %v1959 = vpack.c.b16 %v1771, %v1767
        %v1960 = vpack.c.b16 %v1772, %v1768
        %v1961 = vpack.c.b16 %v1777, %v1773
        %v1962 = vpack.c.b16 %v1778, %v1774
        %v1963 = vpack.c.b16 %v1779, %v1775
        %v1964 = vpack.c.b16 %v1780, %v1776
        %v1965 = vpack.c.b16 %v1785, %v1781
        %v1966 = vpack.c.b16 %v1786, %v1782
        %v1967 = vpack.c.b16 %v1787, %v1783
        %v1968 = vpack.c.b16 %v1788, %v1784
        %v1969 = vpack.c.b16 %v1793, %v1789
        %v1970 = vpack.c.b16 %v1794, %v1790
        %v1971 = vpack.c.b16 %v1795, %v1791
        %v1972 = vpack.c.b16 %v1796, %v1792
        %v1973 = vpack.c.b16 %v1801, %v1797
        %v1974 = vpack.c.b16 %v1802, %v1798
        %v1975 = vpack.c.b16 %v1803, %v1799
        %v1976 = vpack.c.b16 %v1804, %v1800
        %v1977 = vpack.c.b16 %v1809, %v1805
        %v1978 = vpack.c.b16 %v1810, %v1806
        %v1979 = vpack.c.b16 %v1811, %v1807
        %v1980 = vpack.c.b16 %v1812, %v1808
        %v1981 = vpack.c.b16 %v1817, %v1813
        %v1982 = vpack.c.b16 %v1818, %v1814
        %v1983 = vpack.c.b16 %v1819, %v1815
        %v1984 = vpack.c.b16 %v1820, %v1816
        %v1985 = vpack.c.b16 %v1825, %v1821
        %v1986 = vpack.c.b16 %v1826, %v1822
        %v1987 = vpack.c.b16 %v1827, %v1823
        %v1988 = vpack.c.b16 %v1828, %v1824
        %v1989 = vpack.c.b16 %v1833, %v1829
        %v1990 = vpack.c.b16 %v1834, %v1830
        %v1991 = vpack.c.b16 %v1835, %v1831
        %v1992 = vpack.c.b16 %v1836, %v1832
        %v1993 = vpack.c.b16 %v1841, %v1837
        %v1994 = vpack.c.b16 %v1842, %v1838
        %v1995 = vpack.c.b16 %v1843, %v1839
        %v1996 = vpack.c.b16 %v1844, %v1840
        %v1997 = vpack.c.b16 %v1849, %v1845
        %v1998 = vpack.c.b16 %v1850, %v1846
        %v1999 = vpack.c.b16 %v1851, %v1847
        %v2000 = vpack.c.b16 %v1852, %v1848
        %v2001 = vpack.c.b16 %v1857, %v1853
        %v2002 = vpack.c.b16 %v1858, %v1854
        %v2003 = vpack.c.b16 %v1859, %v1855
        %v2004 = vpack.c.b16 %v1860, %v1856
        %v2005 = vpack.c.b16 %v1865, %v1861
        %v2006 = vpack.c.b16 %v1866, %v1862
        %v2007 = vpack.c.b16 %v1867, %v1863
        %v2008 = vpack.c.b16 %v1868, %v1864
        %v2009 = vpack.c.b16 %v1873, %v1869
        %v2010 = vpack.c.b16 %v1874, %v1870
        %v2011 = vpack.c.b16 %v1875, %v1871
        %v2012 = vpack.c.b16 %v1876, %v1872
        %v2013 = vpack.c.b16 %v1881, %v1877
        %v2014 = vpack.c.b16 %v1882, %v1878
        %v2015 = vpack.c.b16 %v1883, %v1879
        %v2016 = vpack.c.b16 %v1884, %v1880
        %v2017 = vpack.c.b16 %v1889, %v1885
        %v2018 = vpack.c.b16 %v1890, %v1886
        %v2019 = vpack.c.b16 %v1891, %v1887
        %v2020 = vpack.c.b16 %v1892, %v1888
        %2149 = vmatprep.subr.bf16.mxu0 %v1922
        %2150 = vmatpush1.bf16.msra.mxu0 %v1921
        %2151 = vmatprep.subr.bf16.mxu0 %v1918
        %2152 = vmatpush1.bf16.msra.mxu0 %v1917
        %2153 = vmatprep.subr.bf16.mxu0 %v1914
        %2154 = vmatpush1.bf16.msra.mxu0 %v1913
        %2155 = vmatprep.subr.bf16.mxu0 %v1910
        %2156 = vmatpush1.bf16.msra.mxu0 %v1909
        %2157 = vmatprep.subr.bf16.mxu0 %v1906
        %2158 = vmatpush1.bf16.msra.mxu0 %v1905
        %2159 = vmatprep.subr.bf16.mxu0 %v1902
        %2160 = vmatpush1.bf16.msra.mxu0 %v1901
        %2161 = vmatprep.subr.bf16.mxu0 %v1898
        %2162 = vmatpush1.bf16.msra.mxu0 %v1897
        %2163 = vmatprep.subr.bf16.mxu0 %v1894
        %2164 = vmatpush1.bf16.msra.mxu0 %v1893
        %2165 = vmatprep.subr.bf16.mxu0 %v1954
        %2166 = vmatpush2.bf16.msra.mxu0 %v1953
        %2167 = vmatprep.subr.bf16.mxu0 %v1950
        %2168 = vmatpush2.bf16.msra.mxu0 %v1949
        %2169 = vmatprep.subr.bf16.mxu0 %v1946
        %2170 = vmatpush2.bf16.msra.mxu0 %v1945
        %2171 = vmatprep.subr.bf16.mxu0 %v1942
        %2172 = vmatpush2.bf16.msra.mxu0 %v1941
        %2173 = vmatprep.subr.bf16.mxu0 %v1938
        %2174 = vmatpush2.bf16.msra.mxu0 %v1937
        %2175 = vmatprep.subr.bf16.mxu0 %v1934
        %2176 = vmatpush2.bf16.msra.mxu0 %v1933
        %2177 = vmatprep.subr.bf16.mxu0 %v1930
        %2178 = vmatpush2.bf16.msra.mxu0 %v1929
        %2179 = vmatprep.subr.bf16.mxu0 %v1926
        %2180 = vmatpush2.bf16.msra.mxu0 %v1925
        %2181 = vmatprep.mubr.bf16.mxu0 %v1356
        %2182 = vmatmul.mubr.bf16.gmra.mxu0 %v1355
        %v2183 = vpop.f32.mrf.mxu0
        %v2184 = vadd.f32 %v1492, %v2183
        %v2185 = vpop.f32.mrf.mxu0
        %v2186 = vadd.f32 %v1496, %v2185
        %v2187 = vpop.f32.mrf.mxu0
        %v2188 = vpop.f32.mrf.mxu0
        %2189 = vdwg.mxu0
        %2190 = vmatprep.subr.bf16.mxu0 %v1986
        %2191 = vmatpush1.bf16.msra.mxu0 %v1985
        %2192 = vmatprep.subr.bf16.mxu0 %v1982
        %2193 = vmatpush1.bf16.msra.mxu0 %v1981
        %2194 = vmatprep.subr.bf16.mxu0 %v1978
        %2195 = vmatpush1.bf16.msra.mxu0 %v1977
        %2196 = vmatprep.subr.bf16.mxu0 %v1974
        %2197 = vmatpush1.bf16.msra.mxu0 %v1973
        %2198 = vmatprep.subr.bf16.mxu0 %v1970
        %2199 = vmatpush1.bf16.msra.mxu0 %v1969
        %2200 = vmatprep.subr.bf16.mxu0 %v1966
        %2201 = vmatpush1.bf16.msra.mxu0 %v1965
        %2202 = vmatprep.subr.bf16.mxu0 %v1962
        %2203 = vmatpush1.bf16.msra.mxu0 %v1961
        %2204 = vmatprep.subr.bf16.mxu0 %v1958
        %2205 = vmatpush1.bf16.msra.mxu0 %v1957
        %2206 = vmatprep.subr.bf16.mxu0 %v2018
        %2207 = vmatpush2.bf16.msra.mxu0 %v2017
        %2208 = vmatprep.subr.bf16.mxu0 %v2014
        %2209 = vmatpush2.bf16.msra.mxu0 %v2013
        %2210 = vmatprep.subr.bf16.mxu0 %v2010
        %2211 = vmatpush2.bf16.msra.mxu0 %v2009
        %2212 = vmatprep.subr.bf16.mxu0 %v2006
        %2213 = vmatpush2.bf16.msra.mxu0 %v2005
        %2214 = vmatprep.subr.bf16.mxu0 %v2002
        %2215 = vmatpush2.bf16.msra.mxu0 %v2001
        %2216 = vmatprep.subr.bf16.mxu0 %v1998
        %2217 = vmatpush2.bf16.msra.mxu0 %v1997
        %2218 = vmatprep.subr.bf16.mxu0 %v1994
        %2219 = vmatpush2.bf16.msra.mxu0 %v1993
        %2220 = vmatprep.subr.bf16.mxu0 %v1990
        %2221 = vmatpush2.bf16.msra.mxu0 %v1989
        %2222 = vmatprep.mubr.bf16.mxu0 %v1358
        %2223 = vmatmul.mubr.bf16.gmra.mxu0 %v1357
        %v2224 = vpop.f32.mrf.mxu0
        %v2225 = vadd.f32 %v2184, %v2224
        %v2226 = vpop.f32.mrf.mxu0
        %v2227 = vadd.f32 %v2186, %v2226
        %v2228 = vpop.f32.mrf.mxu0
        %v2229 = vpop.f32.mrf.mxu0
        %2230 = vdwg.mxu0
        %2231 = vmatprep.subr.bf16.mxu0 %v1924
        %2232 = vmatpush1.bf16.msra.mxu0 %v1923
        %2233 = vmatprep.subr.bf16.mxu0 %v1920
        %2234 = vmatpush1.bf16.msra.mxu0 %v1919
        %2235 = vmatprep.subr.bf16.mxu0 %v1916
        %2236 = vmatpush1.bf16.msra.mxu0 %v1915
        %2237 = vmatprep.subr.bf16.mxu0 %v1912
        %2238 = vmatpush1.bf16.msra.mxu0 %v1911
        %2239 = vmatprep.subr.bf16.mxu0 %v1908
        %2240 = vmatpush1.bf16.msra.mxu0 %v1907
        %2241 = vmatprep.subr.bf16.mxu0 %v1904
        %2242 = vmatpush1.bf16.msra.mxu0 %v1903
        %2243 = vmatprep.subr.bf16.mxu0 %v1900
        %2244 = vmatpush1.bf16.msra.mxu0 %v1899
        %2245 = vmatprep.subr.bf16.mxu0 %v1896
        %2246 = vmatpush1.bf16.msra.mxu0 %v1895
        %2247 = vmatprep.subr.bf16.mxu0 %v1956
        %2248 = vmatpush2.bf16.msra.mxu0 %v1955
        %2249 = vmatprep.subr.bf16.mxu0 %v1952
        %2250 = vmatpush2.bf16.msra.mxu0 %v1951
        %2251 = vmatprep.subr.bf16.mxu0 %v1948
        %2252 = vmatpush2.bf16.msra.mxu0 %v1947
        %2253 = vmatprep.subr.bf16.mxu0 %v1944
        %2254 = vmatpush2.bf16.msra.mxu0 %v1943
        %2255 = vmatprep.subr.bf16.mxu0 %v1940
        %2256 = vmatpush2.bf16.msra.mxu0 %v1939
        %2257 = vmatprep.subr.bf16.mxu0 %v1936
        %2258 = vmatpush2.bf16.msra.mxu0 %v1935
        %2259 = vmatprep.subr.bf16.mxu0 %v1932
        %2260 = vmatpush2.bf16.msra.mxu0 %v1931
        %2261 = vmatprep.subr.bf16.mxu0 %v1928
        %2262 = vmatpush2.bf16.msra.mxu0 %v1927
        %2263 = vmatprep.mubr.bf16.mxu0 %v1356
        %2264 = vmatmul.mubr.bf16.gmra.mxu0 %v1355
        %v2265 = vpop.f32.mrf.mxu0
        %v2266 = vadd.f32 %v1500, %v2265
        %v2267 = vpop.f32.mrf.mxu0
        %v2268 = vadd.f32 %v1504, %v2267
        %v2269 = vpop.f32.mrf.mxu0
        %v2270 = vpop.f32.mrf.mxu0
        %2271 = vdwg.mxu0
        %2272 = vmatprep.subr.bf16.mxu0 %v1988
        %2273 = vmatpush1.bf16.msra.mxu0 %v1987
        %2274 = vmatprep.subr.bf16.mxu0 %v1984
        %2275 = vmatpush1.bf16.msra.mxu0 %v1983
        %2276 = vmatprep.subr.bf16.mxu0 %v1980
        %2277 = vmatpush1.bf16.msra.mxu0 %v1979
        %2278 = vmatprep.subr.bf16.mxu0 %v1976
        %2279 = vmatpush1.bf16.msra.mxu0 %v1975
        %2280 = vmatprep.subr.bf16.mxu0 %v1972
        %2281 = vmatpush1.bf16.msra.mxu0 %v1971
        %2282 = vmatprep.subr.bf16.mxu0 %v1968
        %2283 = vmatpush1.bf16.msra.mxu0 %v1967
        %2284 = vmatprep.subr.bf16.mxu0 %v1964
        %2285 = vmatpush1.bf16.msra.mxu0 %v1963
        %2286 = vmatprep.subr.bf16.mxu0 %v1960
        %2287 = vmatpush1.bf16.msra.mxu0 %v1959
        %2288 = vmatprep.subr.bf16.mxu0 %v2020
        %2289 = vmatpush2.bf16.msra.mxu0 %v2019
        %2290 = vmatprep.subr.bf16.mxu0 %v2016
        %2291 = vmatpush2.bf16.msra.mxu0 %v2015
        %2292 = vmatprep.subr.bf16.mxu0 %v2012
        %2293 = vmatpush2.bf16.msra.mxu0 %v2011
        %2294 = vmatprep.subr.bf16.mxu0 %v2008
        %2295 = vmatpush2.bf16.msra.mxu0 %v2007
        %2296 = vmatprep.subr.bf16.mxu0 %v2004
        %2297 = vmatpush2.bf16.msra.mxu0 %v2003
        %2298 = vmatprep.subr.bf16.mxu0 %v2000
        %2299 = vmatpush2.bf16.msra.mxu0 %v1999
        %2300 = vmatprep.subr.bf16.mxu0 %v1996
        %2301 = vmatpush2.bf16.msra.mxu0 %v1995
        %2302 = vmatprep.subr.bf16.mxu0 %v1992
        %2303 = vmatpush2.bf16.msra.mxu0 %v1991
        %2304 = vmatprep.mubr.bf16.mxu0 %v1358
        %2305 = vmatmul.mubr.bf16.gmra.mxu0 %v1357
        %v2306 = vpop.f32.mrf.mxu0
        %v2307 = vadd.f32 %v2266, %v2306
        %v2308 = vpop.f32.mrf.mxu0
        %v2309 = vadd.f32 %v2268, %v2308
        %v2310 = vpop.f32.mrf.mxu0
        %v2311 = vpop.f32.mrf.mxu0
        %2312 = vdwg.mxu0
        %v2313 = vmax.f32 %v2225, 0.0
        %v2314 = vmax.f32 %v2227, 0.0
        %v2315 = vmax.f32 %v2307, 0.0
        %v2316 = vmax.f32 %v2309, 0.0
        %v2317 = vpack.c.bf16 %v2313, %v2313
        %v2318 = vpack.c.bf16 %v2314, %v2314
        %v2319 = vpack.c.bf16 %v2315, %v2315
        %v2320 = vpack.c.bf16 %v2316, %v2316
        %v2321 = vld [vmem:[#allocation10] sm:$0xff]
        %v2322 = vld [vmem:[#allocation10 + $0x8] sm:$0xff]
        %v2323 = vld [vmem:[#allocation10 + $0x10] sm:$0xff]
        %v2324 = vld [vmem:[#allocation10 + $0x18] sm:$0xff]
        %v2325 = vld [vmem:[#allocation10 + $0x20] sm:$0xff]
        %v2326 = vld [vmem:[#allocation10 + $0x28] sm:$0xff]
        %v2327 = vld [vmem:[#allocation10 + $0x30] sm:$0xff]
        %v2328 = vld [vmem:[#allocation10 + $0x38] sm:$0xff]
        %v2329 = vld [vmem:[#allocation10 + $0x40] sm:$0xff]
        %v2330 = vld [vmem:[#allocation10 + $0x48] sm:$0xff]
        %v2331 = vld [vmem:[#allocation10 + $0x50] sm:$0xff]
        %v2332 = vld [vmem:[#allocation10 + $0x58] sm:$0xff]
        %v2333 = vld [vmem:[#allocation10 + $0x60] sm:$0xff]
        %v2334 = vld [vmem:[#allocation10 + $0x68] sm:$0xff]
        %v2335 = vld [vmem:[#allocation10 + $0x70] sm:$0xff]
        %v2336 = vld [vmem:[#allocation10 + $0x78] sm:$0xff]
        %v2337 = vld [vmem:[#allocation10 + $0x80] sm:$0xff]
        %v2338 = vld [vmem:[#allocation10 + $0x88] sm:$0xff]
        %v2339 = vld [vmem:[#allocation10 + $0x90] sm:$0xff]
        %v2340 = vld [vmem:[#allocation10 + $0x98] sm:$0xff]
        %v2341 = vld [vmem:[#allocation10 + $0xa0] sm:$0xff]
        %v2342 = vld [vmem:[#allocation10 + $0xa8] sm:$0xff]
        %v2343 = vld [vmem:[#allocation10 + $0xb0] sm:$0xff]
        %v2344 = vld [vmem:[#allocation10 + $0xb8] sm:$0xff]
        %v2345 = vld [vmem:[#allocation10 + $0xc0] sm:$0xff]
        %v2346 = vld [vmem:[#allocation10 + $0xc8] sm:$0xff]
        %v2347 = vld [vmem:[#allocation10 + $0xd0] sm:$0xff]
        %v2348 = vld [vmem:[#allocation10 + $0xd8] sm:$0xff]
        %v2349 = vld [vmem:[#allocation10 + $0xe0] sm:$0xff]
        %v2350 = vld [vmem:[#allocation10 + $0xe8] sm:$0xff]
        %v2351 = vld [vmem:[#allocation10 + $0xf0] sm:$0xff]
        %v2352 = vld [vmem:[#allocation10 + $0xf8] sm:$0xff]
        %v2353 = vld [vmem:[#allocation10 + $0x100] sm:$0xff]
        %v2354 = vld [vmem:[#allocation10 + $0x108] sm:$0xff]
        %v2355 = vld [vmem:[#allocation10 + $0x110] sm:$0xff]
        %v2356 = vld [vmem:[#allocation10 + $0x118] sm:$0xff]
        %v2357 = vld [vmem:[#allocation10 + $0x120] sm:$0xff]
        %v2358 = vld [vmem:[#allocation10 + $0x128] sm:$0xff]
        %v2359 = vld [vmem:[#allocation10 + $0x130] sm:$0xff]
        %v2360 = vld [vmem:[#allocation10 + $0x138] sm:$0xff]
        %v2361 = vld [vmem:[#allocation10 + $0x140] sm:$0xff]
        %v2362 = vld [vmem:[#allocation10 + $0x148] sm:$0xff]
        %v2363 = vld [vmem:[#allocation10 + $0x150] sm:$0xff]
        %v2364 = vld [vmem:[#allocation10 + $0x158] sm:$0xff]
        %v2365 = vld [vmem:[#allocation10 + $0x160] sm:$0xff]
        %v2366 = vld [vmem:[#allocation10 + $0x168] sm:$0xff]
        %v2367 = vld [vmem:[#allocation10 + $0x170] sm:$0xff]
        %v2368 = vld [vmem:[#allocation10 + $0x178] sm:$0xff]
        %v2369 = vld [vmem:[#allocation10 + $0x180] sm:$0xff]
        %v2370 = vld [vmem:[#allocation10 + $0x188] sm:$0xff]
        %v2371 = vld [vmem:[#allocation10 + $0x190] sm:$0xff]
        %v2372 = vld [vmem:[#allocation10 + $0x198] sm:$0xff]
        %v2373 = vld [vmem:[#allocation10 + $0x1a0] sm:$0xff]
        %v2374 = vld [vmem:[#allocation10 + $0x1a8] sm:$0xff]
        %v2375 = vld [vmem:[#allocation10 + $0x1b0] sm:$0xff]
        %v2376 = vld [vmem:[#allocation10 + $0x1b8] sm:$0xff]
        %v2377 = vld [vmem:[#allocation10 + $0x1c0] sm:$0xff]
        %v2378 = vld [vmem:[#allocation10 + $0x1c8] sm:$0xff]
        %v2379 = vld [vmem:[#allocation10 + $0x1d0] sm:$0xff]
        %v2380 = vld [vmem:[#allocation10 + $0x1d8] sm:$0xff]
        %v2381 = vld [vmem:[#allocation10 + $0x1e0] sm:$0xff]
        %v2382 = vld [vmem:[#allocation10 + $0x1e8] sm:$0xff]
        %v2383 = vld [vmem:[#allocation10 + $0x1f0] sm:$0xff]
        %v2384 = vld [vmem:[#allocation10 + $0x1f8] sm:$0xff]
        %v2385 = vld [vmem:[#allocation10 + $0x200] sm:$0xff]
        %v2386 = vld [vmem:[#allocation10 + $0x208] sm:$0xff]
        %v2387 = vld [vmem:[#allocation10 + $0x210] sm:$0xff]
        %v2388 = vld [vmem:[#allocation10 + $0x218] sm:$0xff]
        %v2389 = vld [vmem:[#allocation10 + $0x220] sm:$0xff]
        %v2390 = vld [vmem:[#allocation10 + $0x228] sm:$0xff]
        %v2391 = vld [vmem:[#allocation10 + $0x230] sm:$0xff]
        %v2392 = vld [vmem:[#allocation10 + $0x238] sm:$0xff]
        %v2393 = vld [vmem:[#allocation10 + $0x240] sm:$0xff]
        %v2394 = vld [vmem:[#allocation10 + $0x248] sm:$0xff]
        %v2395 = vld [vmem:[#allocation10 + $0x250] sm:$0xff]
        %v2396 = vld [vmem:[#allocation10 + $0x258] sm:$0xff]
        %v2397 = vld [vmem:[#allocation10 + $0x260] sm:$0xff]
        %v2398 = vld [vmem:[#allocation10 + $0x268] sm:$0xff]
        %v2399 = vld [vmem:[#allocation10 + $0x270] sm:$0xff]
        %v2400 = vld [vmem:[#allocation10 + $0x278] sm:$0xff]
        %v2401 = vld [vmem:[#allocation10 + $0x280] sm:$0xff]
        %v2402 = vld [vmem:[#allocation10 + $0x288] sm:$0xff]
        %v2403 = vld [vmem:[#allocation10 + $0x290] sm:$0xff]
        %v2404 = vld [vmem:[#allocation10 + $0x298] sm:$0xff]
        %v2405 = vld [vmem:[#allocation10 + $0x2a0] sm:$0xff]
        %v2406 = vld [vmem:[#allocation10 + $0x2a8] sm:$0xff]
        %v2407 = vld [vmem:[#allocation10 + $0x2b0] sm:$0xff]
        %v2408 = vld [vmem:[#allocation10 + $0x2b8] sm:$0xff]
        %v2409 = vld [vmem:[#allocation10 + $0x2c0] sm:$0xff]
        %v2410 = vld [vmem:[#allocation10 + $0x2c8] sm:$0xff]
        %v2411 = vld [vmem:[#allocation10 + $0x2d0] sm:$0xff]
        %v2412 = vld [vmem:[#allocation10 + $0x2d8] sm:$0xff]
        %v2413 = vld [vmem:[#allocation10 + $0x2e0] sm:$0xff]
        %v2414 = vld [vmem:[#allocation10 + $0x2e8] sm:$0xff]
        %v2415 = vld [vmem:[#allocation10 + $0x2f0] sm:$0xff]
        %v2416 = vld [vmem:[#allocation10 + $0x2f8] sm:$0xff]
        %v2417 = vld [vmem:[#allocation10 + $0x300] sm:$0xff]
        %v2418 = vld [vmem:[#allocation10 + $0x308] sm:$0xff]
        %v2419 = vld [vmem:[#allocation10 + $0x310] sm:$0xff]
        %v2420 = vld [vmem:[#allocation10 + $0x318] sm:$0xff]
        %v2421 = vld [vmem:[#allocation10 + $0x320] sm:$0xff]
        %v2422 = vld [vmem:[#allocation10 + $0x328] sm:$0xff]
        %v2423 = vld [vmem:[#allocation10 + $0x330] sm:$0xff]
        %v2424 = vld [vmem:[#allocation10 + $0x338] sm:$0xff]
        %v2425 = vld [vmem:[#allocation10 + $0x340] sm:$0xff]
        %v2426 = vld [vmem:[#allocation10 + $0x348] sm:$0xff]
        %v2427 = vld [vmem:[#allocation10 + $0x350] sm:$0xff]
        %v2428 = vld [vmem:[#allocation10 + $0x358] sm:$0xff]
        %v2429 = vld [vmem:[#allocation10 + $0x360] sm:$0xff]
        %v2430 = vld [vmem:[#allocation10 + $0x368] sm:$0xff]
        %v2431 = vld [vmem:[#allocation10 + $0x370] sm:$0xff]
        %v2432 = vld [vmem:[#allocation10 + $0x378] sm:$0xff]
        %v2433 = vld [vmem:[#allocation10 + $0x380] sm:$0xff]
        %v2434 = vld [vmem:[#allocation10 + $0x388] sm:$0xff]
        %v2435 = vld [vmem:[#allocation10 + $0x390] sm:$0xff]
        %v2436 = vld [vmem:[#allocation10 + $0x398] sm:$0xff]
        %v2437 = vld [vmem:[#allocation10 + $0x3a0] sm:$0xff]
        %v2438 = vld [vmem:[#allocation10 + $0x3a8] sm:$0xff]
        %v2439 = vld [vmem:[#allocation10 + $0x3b0] sm:$0xff]
        %v2440 = vld [vmem:[#allocation10 + $0x3b8] sm:$0xff]
        %v2441 = vld [vmem:[#allocation10 + $0x3c0] sm:$0xff]
        %v2442 = vld [vmem:[#allocation10 + $0x3c8] sm:$0xff]
        %v2443 = vld [vmem:[#allocation10 + $0x3d0] sm:$0xff]
        %v2444 = vld [vmem:[#allocation10 + $0x3d8] sm:$0xff]
        %v2445 = vld [vmem:[#allocation10 + $0x3e0] sm:$0xff]
        %v2446 = vld [vmem:[#allocation10 + $0x3e8] sm:$0xff]
        %v2447 = vld [vmem:[#allocation10 + $0x3f0] sm:$0xff]
        %v2448 = vld [vmem:[#allocation10 + $0x3f8] sm:$0xff]
        %v2449 = vld [vmem:[%s10] sm:$0xf]
        %v2451 = vlaneseq
        %v2452 = vshrl.u32 %v2451, 7
        %v2453 = vsub.s32 0, %v2452
        %v2454 = vrot.slane %v2449, %v2453
        %v2455 = vlaneseq
        %v2456 = vshrl.u32 %v2455, 7
        %v2457 = vsub.s32 1, %v2456
        %v2458 = vrot.slane %v2449, %v2457
        %v2459 = vlaneseq
        %v2460 = vshrl.u32 %v2459, 7
        %v2461 = vsub.s32 2, %v2460
        %v2462 = vrot.slane %v2449, %v2461
        %v2463 = vlaneseq
        %v2464 = vshrl.u32 %v2463, 7
        %v2465 = vsub.s32 3, %v2464
        %v2466 = vrot.slane %v2449, %v2465
        %v2599 = vunpack.c.l.b16 %v2321
        %v2600 = vunpack.c.h.b16 %v2321
        %v2601 = vunpack.c.l.b16 %v2322
        %v2602 = vunpack.c.h.b16 %v2322
        %v2603 = vunpack.c.l.b16 %v2323
        %v2604 = vunpack.c.h.b16 %v2323
        %v2605 = vunpack.c.l.b16 %v2324
        %v2606 = vunpack.c.h.b16 %v2324
        %v2607 = vunpack.c.l.b16 %v2325
        %v2608 = vunpack.c.h.b16 %v2325
        %v2609 = vunpack.c.l.b16 %v2326
        %v2610 = vunpack.c.h.b16 %v2326
        %v2611 = vunpack.c.l.b16 %v2327
        %v2612 = vunpack.c.h.b16 %v2327
        %v2613 = vunpack.c.l.b16 %v2328
        %v2614 = vunpack.c.h.b16 %v2328
        %v2615 = vunpack.c.l.b16 %v2329
        %v2616 = vunpack.c.h.b16 %v2329
        %v2617 = vunpack.c.l.b16 %v2330
        %v2618 = vunpack.c.h.b16 %v2330
        %v2619 = vunpack.c.l.b16 %v2331
        %v2620 = vunpack.c.h.b16 %v2331
        %v2621 = vunpack.c.l.b16 %v2332
        %v2622 = vunpack.c.h.b16 %v2332
        %v2623 = vunpack.c.l.b16 %v2333
        %v2624 = vunpack.c.h.b16 %v2333
        %v2625 = vunpack.c.l.b16 %v2334
        %v2626 = vunpack.c.h.b16 %v2334
        %v2627 = vunpack.c.l.b16 %v2335
        %v2628 = vunpack.c.h.b16 %v2335
        %v2629 = vunpack.c.l.b16 %v2336
        %v2630 = vunpack.c.h.b16 %v2336
        %v2631 = vunpack.c.l.b16 %v2337
        %v2632 = vunpack.c.h.b16 %v2337
        %v2633 = vunpack.c.l.b16 %v2338
        %v2634 = vunpack.c.h.b16 %v2338
        %v2635 = vunpack.c.l.b16 %v2339
        %v2636 = vunpack.c.h.b16 %v2339
        %v2637 = vunpack.c.l.b16 %v2340
        %v2638 = vunpack.c.h.b16 %v2340
        %v2639 = vunpack.c.l.b16 %v2341
        %v2640 = vunpack.c.h.b16 %v2341
        %v2641 = vunpack.c.l.b16 %v2342
        %v2642 = vunpack.c.h.b16 %v2342
        %v2643 = vunpack.c.l.b16 %v2343
        %v2644 = vunpack.c.h.b16 %v2343
        %v2645 = vunpack.c.l.b16 %v2344
        %v2646 = vunpack.c.h.b16 %v2344
        %v2647 = vunpack.c.l.b16 %v2345
        %v2648 = vunpack.c.h.b16 %v2345
        %v2649 = vunpack.c.l.b16 %v2346
        %v2650 = vunpack.c.h.b16 %v2346
        %v2651 = vunpack.c.l.b16 %v2347
        %v2652 = vunpack.c.h.b16 %v2347
        %v2653 = vunpack.c.l.b16 %v2348
        %v2654 = vunpack.c.h.b16 %v2348
        %v2655 = vunpack.c.l.b16 %v2349
        %v2656 = vunpack.c.h.b16 %v2349
        %v2657 = vunpack.c.l.b16 %v2350
        %v2658 = vunpack.c.h.b16 %v2350
        %v2659 = vunpack.c.l.b16 %v2351
        %v2660 = vunpack.c.h.b16 %v2351
        %v2661 = vunpack.c.l.b16 %v2352
        %v2662 = vunpack.c.h.b16 %v2352
        %v2663 = vunpack.c.l.b16 %v2353
        %v2664 = vunpack.c.h.b16 %v2353
        %v2665 = vunpack.c.l.b16 %v2354
        %v2666 = vunpack.c.h.b16 %v2354
        %v2667 = vunpack.c.l.b16 %v2355
        %v2668 = vunpack.c.h.b16 %v2355
        %v2669 = vunpack.c.l.b16 %v2356
        %v2670 = vunpack.c.h.b16 %v2356
        %v2671 = vunpack.c.l.b16 %v2357
        %v2672 = vunpack.c.h.b16 %v2357
        %v2673 = vunpack.c.l.b16 %v2358
        %v2674 = vunpack.c.h.b16 %v2358
        %v2675 = vunpack.c.l.b16 %v2359
        %v2676 = vunpack.c.h.b16 %v2359
        %v2677 = vunpack.c.l.b16 %v2360
        %v2678 = vunpack.c.h.b16 %v2360
        %v2679 = vunpack.c.l.b16 %v2361
        %v2680 = vunpack.c.h.b16 %v2361
        %v2681 = vunpack.c.l.b16 %v2362
        %v2682 = vunpack.c.h.b16 %v2362
        %v2683 = vunpack.c.l.b16 %v2363
        %v2684 = vunpack.c.h.b16 %v2363
        %v2685 = vunpack.c.l.b16 %v2364
        %v2686 = vunpack.c.h.b16 %v2364
        %v2687 = vunpack.c.l.b16 %v2365
        %v2688 = vunpack.c.h.b16 %v2365
        %v2689 = vunpack.c.l.b16 %v2366
        %v2690 = vunpack.c.h.b16 %v2366
        %v2691 = vunpack.c.l.b16 %v2367
        %v2692 = vunpack.c.h.b16 %v2367
        %v2693 = vunpack.c.l.b16 %v2368
        %v2694 = vunpack.c.h.b16 %v2368
        %v2695 = vunpack.c.l.b16 %v2369
        %v2696 = vunpack.c.h.b16 %v2369
        %v2697 = vunpack.c.l.b16 %v2370
        %v2698 = vunpack.c.h.b16 %v2370
        %v2699 = vunpack.c.l.b16 %v2371
        %v2700 = vunpack.c.h.b16 %v2371
        %v2701 = vunpack.c.l.b16 %v2372
        %v2702 = vunpack.c.h.b16 %v2372
        %v2703 = vunpack.c.l.b16 %v2373
        %v2704 = vunpack.c.h.b16 %v2373
        %v2705 = vunpack.c.l.b16 %v2374
        %v2706 = vunpack.c.h.b16 %v2374
        %v2707 = vunpack.c.l.b16 %v2375
        %v2708 = vunpack.c.h.b16 %v2375
        %v2709 = vunpack.c.l.b16 %v2376
        %v2710 = vunpack.c.h.b16 %v2376
        %v2711 = vunpack.c.l.b16 %v2377
        %v2712 = vunpack.c.h.b16 %v2377
        %v2713 = vunpack.c.l.b16 %v2378
        %v2714 = vunpack.c.h.b16 %v2378
        %v2715 = vunpack.c.l.b16 %v2379
        %v2716 = vunpack.c.h.b16 %v2379
        %v2717 = vunpack.c.l.b16 %v2380
        %v2718 = vunpack.c.h.b16 %v2380
        %v2719 = vunpack.c.l.b16 %v2381
        %v2720 = vunpack.c.h.b16 %v2381
        %v2721 = vunpack.c.l.b16 %v2382
        %v2722 = vunpack.c.h.b16 %v2382
        %v2723 = vunpack.c.l.b16 %v2383
        %v2724 = vunpack.c.h.b16 %v2383
        %v2725 = vunpack.c.l.b16 %v2384
        %v2726 = vunpack.c.h.b16 %v2384
        %v2727 = vunpack.c.l.b16 %v2385
        %v2728 = vunpack.c.h.b16 %v2385
        %v2729 = vunpack.c.l.b16 %v2386
        %v2730 = vunpack.c.h.b16 %v2386
        %v2731 = vunpack.c.l.b16 %v2387
        %v2732 = vunpack.c.h.b16 %v2387
        %v2733 = vunpack.c.l.b16 %v2388
        %v2734 = vunpack.c.h.b16 %v2388
        %v2735 = vunpack.c.l.b16 %v2389
        %v2736 = vunpack.c.h.b16 %v2389
        %v2737 = vunpack.c.l.b16 %v2390
        %v2738 = vunpack.c.h.b16 %v2390
        %v2739 = vunpack.c.l.b16 %v2391
        %v2740 = vunpack.c.h.b16 %v2391
        %v2741 = vunpack.c.l.b16 %v2392
        %v2742 = vunpack.c.h.b16 %v2392
        %v2743 = vunpack.c.l.b16 %v2393
        %v2744 = vunpack.c.h.b16 %v2393
        %v2745 = vunpack.c.l.b16 %v2394
        %v2746 = vunpack.c.h.b16 %v2394
        %v2747 = vunpack.c.l.b16 %v2395
        %v2748 = vunpack.c.h.b16 %v2395
        %v2749 = vunpack.c.l.b16 %v2396
        %v2750 = vunpack.c.h.b16 %v2396
        %v2751 = vunpack.c.l.b16 %v2397
        %v2752 = vunpack.c.h.b16 %v2397
        %v2753 = vunpack.c.l.b16 %v2398
        %v2754 = vunpack.c.h.b16 %v2398
        %v2755 = vunpack.c.l.b16 %v2399
        %v2756 = vunpack.c.h.b16 %v2399
        %v2757 = vunpack.c.l.b16 %v2400
        %v2758 = vunpack.c.h.b16 %v2400
        %v2759 = vunpack.c.l.b16 %v2401
        %v2760 = vunpack.c.h.b16 %v2401
        %v2761 = vunpack.c.l.b16 %v2402
        %v2762 = vunpack.c.h.b16 %v2402
        %v2763 = vunpack.c.l.b16 %v2403
        %v2764 = vunpack.c.h.b16 %v2403
        %v2765 = vunpack.c.l.b16 %v2404
        %v2766 = vunpack.c.h.b16 %v2404
        %v2767 = vunpack.c.l.b16 %v2405
        %v2768 = vunpack.c.h.b16 %v2405
        %v2769 = vunpack.c.l.b16 %v2406
        %v2770 = vunpack.c.h.b16 %v2406
        %v2771 = vunpack.c.l.b16 %v2407
        %v2772 = vunpack.c.h.b16 %v2407
        %v2773 = vunpack.c.l.b16 %v2408
        %v2774 = vunpack.c.h.b16 %v2408
        %v2775 = vunpack.c.l.b16 %v2409
        %v2776 = vunpack.c.h.b16 %v2409
        %v2777 = vunpack.c.l.b16 %v2410
        %v2778 = vunpack.c.h.b16 %v2410
        %v2779 = vunpack.c.l.b16 %v2411
        %v2780 = vunpack.c.h.b16 %v2411
        %v2781 = vunpack.c.l.b16 %v2412
        %v2782 = vunpack.c.h.b16 %v2412
        %v2783 = vunpack.c.l.b16 %v2413
        %v2784 = vunpack.c.h.b16 %v2413
        %v2785 = vunpack.c.l.b16 %v2414
        %v2786 = vunpack.c.h.b16 %v2414
        %v2787 = vunpack.c.l.b16 %v2415
        %v2788 = vunpack.c.h.b16 %v2415
        %v2789 = vunpack.c.l.b16 %v2416
        %v2790 = vunpack.c.h.b16 %v2416
        %v2791 = vunpack.c.l.b16 %v2417
        %v2792 = vunpack.c.h.b16 %v2417
        %v2793 = vunpack.c.l.b16 %v2418
        %v2794 = vunpack.c.h.b16 %v2418
        %v2795 = vunpack.c.l.b16 %v2419
        %v2796 = vunpack.c.h.b16 %v2419
        %v2797 = vunpack.c.l.b16 %v2420
        %v2798 = vunpack.c.h.b16 %v2420
        %v2799 = vunpack.c.l.b16 %v2421
        %v2800 = vunpack.c.h.b16 %v2421
        %v2801 = vunpack.c.l.b16 %v2422
        %v2802 = vunpack.c.h.b16 %v2422
        %v2803 = vunpack.c.l.b16 %v2423
        %v2804 = vunpack.c.h.b16 %v2423
        %v2805 = vunpack.c.l.b16 %v2424
        %v2806 = vunpack.c.h.b16 %v2424
        %v2807 = vunpack.c.l.b16 %v2425
        %v2808 = vunpack.c.h.b16 %v2425
        %v2809 = vunpack.c.l.b16 %v2426
        %v2810 = vunpack.c.h.b16 %v2426
        %v2811 = vunpack.c.l.b16 %v2427
        %v2812 = vunpack.c.h.b16 %v2427
        %v2813 = vunpack.c.l.b16 %v2428
        %v2814 = vunpack.c.h.b16 %v2428
        %v2815 = vunpack.c.l.b16 %v2429
        %v2816 = vunpack.c.h.b16 %v2429
        %v2817 = vunpack.c.l.b16 %v2430
        %v2818 = vunpack.c.h.b16 %v2430
        %v2819 = vunpack.c.l.b16 %v2431
        %v2820 = vunpack.c.h.b16 %v2431
        %v2821 = vunpack.c.l.b16 %v2432
        %v2822 = vunpack.c.h.b16 %v2432
        %v2823 = vunpack.c.l.b16 %v2433
        %v2824 = vunpack.c.h.b16 %v2433
        %v2825 = vunpack.c.l.b16 %v2434
        %v2826 = vunpack.c.h.b16 %v2434
        %v2827 = vunpack.c.l.b16 %v2435
        %v2828 = vunpack.c.h.b16 %v2435
        %v2829 = vunpack.c.l.b16 %v2436
        %v2830 = vunpack.c.h.b16 %v2436
        %v2831 = vunpack.c.l.b16 %v2437
        %v2832 = vunpack.c.h.b16 %v2437
        %v2833 = vunpack.c.l.b16 %v2438
        %v2834 = vunpack.c.h.b16 %v2438
        %v2835 = vunpack.c.l.b16 %v2439
        %v2836 = vunpack.c.h.b16 %v2439
        %v2837 = vunpack.c.l.b16 %v2440
        %v2838 = vunpack.c.h.b16 %v2440
        %v2839 = vunpack.c.l.b16 %v2441
        %v2840 = vunpack.c.h.b16 %v2441
        %v2841 = vunpack.c.l.b16 %v2442
        %v2842 = vunpack.c.h.b16 %v2442
        %v2843 = vunpack.c.l.b16 %v2443
        %v2844 = vunpack.c.h.b16 %v2443
        %v2845 = vunpack.c.l.b16 %v2444
        %v2846 = vunpack.c.h.b16 %v2444
        %v2847 = vunpack.c.l.b16 %v2445
        %v2848 = vunpack.c.h.b16 %v2445
        %v2849 = vunpack.c.l.b16 %v2446
        %v2850 = vunpack.c.h.b16 %v2446
        %v2851 = vunpack.c.l.b16 %v2447
        %v2852 = vunpack.c.h.b16 %v2447
        %v2853 = vunpack.c.l.b16 %v2448
        %v2854 = vunpack.c.h.b16 %v2448
        %v2855 = vpack.c.b16 %v2603, %v2599
        %v2856 = vpack.c.b16 %v2604, %v2600
        %v2857 = vpack.c.b16 %v2605, %v2601
        %v2858 = vpack.c.b16 %v2606, %v2602
        %v2859 = vpack.c.b16 %v2611, %v2607
        %v2860 = vpack.c.b16 %v2612, %v2608
        %v2861 = vpack.c.b16 %v2613, %v2609
        %v2862 = vpack.c.b16 %v2614, %v2610
        %v2863 = vpack.c.b16 %v2619, %v2615
        %v2864 = vpack.c.b16 %v2620, %v2616
        %v2865 = vpack.c.b16 %v2621, %v2617
        %v2866 = vpack.c.b16 %v2622, %v2618
        %v2867 = vpack.c.b16 %v2627, %v2623
        %v2868 = vpack.c.b16 %v2628, %v2624
        %v2869 = vpack.c.b16 %v2629, %v2625
        %v2870 = vpack.c.b16 %v2630, %v2626
        %v2871 = vpack.c.b16 %v2635, %v2631
        %v2872 = vpack.c.b16 %v2636, %v2632
        %v2873 = vpack.c.b16 %v2637, %v2633
        %v2874 = vpack.c.b16 %v2638, %v2634
        %v2875 = vpack.c.b16 %v2643, %v2639
        %v2876 = vpack.c.b16 %v2644, %v2640
        %v2877 = vpack.c.b16 %v2645, %v2641
        %v2878 = vpack.c.b16 %v2646, %v2642
        %v2879 = vpack.c.b16 %v2651, %v2647
        %v2880 = vpack.c.b16 %v2652, %v2648
        %v2881 = vpack.c.b16 %v2653, %v2649
        %v2882 = vpack.c.b16 %v2654, %v2650
        %v2883 = vpack.c.b16 %v2659, %v2655
        %v2884 = vpack.c.b16 %v2660, %v2656
        %v2885 = vpack.c.b16 %v2661, %v2657
        %v2886 = vpack.c.b16 %v2662, %v2658
        %v2887 = vpack.c.b16 %v2667, %v2663
        %v2888 = vpack.c.b16 %v2668, %v2664
        %v2889 = vpack.c.b16 %v2669, %v2665
        %v2890 = vpack.c.b16 %v2670, %v2666
        %v2891 = vpack.c.b16 %v2675, %v2671
        %v2892 = vpack.c.b16 %v2676, %v2672
        %v2893 = vpack.c.b16 %v2677, %v2673
        %v2894 = vpack.c.b16 %v2678, %v2674
        %v2895 = vpack.c.b16 %v2683, %v2679
        %v2896 = vpack.c.b16 %v2684, %v2680
        %v2897 = vpack.c.b16 %v2685, %v2681
        %v2898 = vpack.c.b16 %v2686, %v2682
        %v2899 = vpack.c.b16 %v2691, %v2687
        %v2900 = vpack.c.b16 %v2692, %v2688
        %v2901 = vpack.c.b16 %v2693, %v2689
        %v2902 = vpack.c.b16 %v2694, %v2690
        %v2903 = vpack.c.b16 %v2699, %v2695
        %v2904 = vpack.c.b16 %v2700, %v2696
        %v2905 = vpack.c.b16 %v2701, %v2697
        %v2906 = vpack.c.b16 %v2702, %v2698
        %v2907 = vpack.c.b16 %v2707, %v2703
        %v2908 = vpack.c.b16 %v2708, %v2704
        %v2909 = vpack.c.b16 %v2709, %v2705
        %v2910 = vpack.c.b16 %v2710, %v2706
        %v2911 = vpack.c.b16 %v2715, %v2711
        %v2912 = vpack.c.b16 %v2716, %v2712
        %v2913 = vpack.c.b16 %v2717, %v2713
        %v2914 = vpack.c.b16 %v2718, %v2714
        %v2915 = vpack.c.b16 %v2723, %v2719
        %v2916 = vpack.c.b16 %v2724, %v2720
        %v2917 = vpack.c.b16 %v2725, %v2721
        %v2918 = vpack.c.b16 %v2726, %v2722
        %v2919 = vpack.c.b16 %v2731, %v2727
        %v2920 = vpack.c.b16 %v2732, %v2728
        %v2921 = vpack.c.b16 %v2733, %v2729
        %v2922 = vpack.c.b16 %v2734, %v2730
        %v2923 = vpack.c.b16 %v2739, %v2735
        %v2924 = vpack.c.b16 %v2740, %v2736
        %v2925 = vpack.c.b16 %v2741, %v2737
        %v2926 = vpack.c.b16 %v2742, %v2738
        %v2927 = vpack.c.b16 %v2747, %v2743
        %v2928 = vpack.c.b16 %v2748, %v2744
        %v2929 = vpack.c.b16 %v2749, %v2745
        %v2930 = vpack.c.b16 %v2750, %v2746
        %v2931 = vpack.c.b16 %v2755, %v2751
        %v2932 = vpack.c.b16 %v2756, %v2752
        %v2933 = vpack.c.b16 %v2757, %v2753
        %v2934 = vpack.c.b16 %v2758, %v2754
        %v2935 = vpack.c.b16 %v2763, %v2759
        %v2936 = vpack.c.b16 %v2764, %v2760
        %v2937 = vpack.c.b16 %v2765, %v2761
        %v2938 = vpack.c.b16 %v2766, %v2762
        %v2939 = vpack.c.b16 %v2771, %v2767
        %v2940 = vpack.c.b16 %v2772, %v2768
        %v2941 = vpack.c.b16 %v2773, %v2769
        %v2942 = vpack.c.b16 %v2774, %v2770
        %v2943 = vpack.c.b16 %v2779, %v2775
        %v2944 = vpack.c.b16 %v2780, %v2776
        %v2945 = vpack.c.b16 %v2781, %v2777
        %v2946 = vpack.c.b16 %v2782, %v2778
        %v2947 = vpack.c.b16 %v2787, %v2783
        %v2948 = vpack.c.b16 %v2788, %v2784
        %v2949 = vpack.c.b16 %v2789, %v2785
        %v2950 = vpack.c.b16 %v2790, %v2786
        %v2951 = vpack.c.b16 %v2795, %v2791
        %v2952 = vpack.c.b16 %v2796, %v2792
        %v2953 = vpack.c.b16 %v2797, %v2793
        %v2954 = vpack.c.b16 %v2798, %v2794
        %v2955 = vpack.c.b16 %v2803, %v2799
        %v2956 = vpack.c.b16 %v2804, %v2800
        %v2957 = vpack.c.b16 %v2805, %v2801
        %v2958 = vpack.c.b16 %v2806, %v2802
        %v2959 = vpack.c.b16 %v2811, %v2807
        %v2960 = vpack.c.b16 %v2812, %v2808
        %v2961 = vpack.c.b16 %v2813, %v2809
        %v2962 = vpack.c.b16 %v2814, %v2810
        %v2963 = vpack.c.b16 %v2819, %v2815
        %v2964 = vpack.c.b16 %v2820, %v2816
        %v2965 = vpack.c.b16 %v2821, %v2817
        %v2966 = vpack.c.b16 %v2822, %v2818
        %v2967 = vpack.c.b16 %v2827, %v2823
        %v2968 = vpack.c.b16 %v2828, %v2824
        %v2969 = vpack.c.b16 %v2829, %v2825
        %v2970 = vpack.c.b16 %v2830, %v2826
        %v2971 = vpack.c.b16 %v2835, %v2831
        %v2972 = vpack.c.b16 %v2836, %v2832
        %v2973 = vpack.c.b16 %v2837, %v2833
        %v2974 = vpack.c.b16 %v2838, %v2834
        %v2975 = vpack.c.b16 %v2843, %v2839
        %v2976 = vpack.c.b16 %v2844, %v2840
        %v2977 = vpack.c.b16 %v2845, %v2841
        %v2978 = vpack.c.b16 %v2846, %v2842
        %v2979 = vpack.c.b16 %v2851, %v2847
        %v2980 = vpack.c.b16 %v2852, %v2848
        %v2981 = vpack.c.b16 %v2853, %v2849
        %v2982 = vpack.c.b16 %v2854, %v2850
        %3111 = vmatprep.subr.bf16.mxu0 %v2884
        %3112 = vmatpush1.bf16.msra.mxu0 %v2883
        %3113 = vmatprep.subr.bf16.mxu0 %v2880
        %3114 = vmatpush1.bf16.msra.mxu0 %v2879
        %3115 = vmatprep.subr.bf16.mxu0 %v2876
        %3116 = vmatpush1.bf16.msra.mxu0 %v2875
        %3117 = vmatprep.subr.bf16.mxu0 %v2872
        %3118 = vmatpush1.bf16.msra.mxu0 %v2871
        %3119 = vmatprep.subr.bf16.mxu0 %v2868
        %3120 = vmatpush1.bf16.msra.mxu0 %v2867
        %3121 = vmatprep.subr.bf16.mxu0 %v2864
        %3122 = vmatpush1.bf16.msra.mxu0 %v2863
        %3123 = vmatprep.subr.bf16.mxu0 %v2860
        %3124 = vmatpush1.bf16.msra.mxu0 %v2859
        %3125 = vmatprep.subr.bf16.mxu0 %v2856
        %3126 = vmatpush1.bf16.msra.mxu0 %v2855
        %3127 = vmatprep.subr.bf16.mxu0 %v2916
        %3128 = vmatpush2.bf16.msra.mxu0 %v2915
        %3129 = vmatprep.subr.bf16.mxu0 %v2912
        %3130 = vmatpush2.bf16.msra.mxu0 %v2911
        %3131 = vmatprep.subr.bf16.mxu0 %v2908
        %3132 = vmatpush2.bf16.msra.mxu0 %v2907
        %3133 = vmatprep.subr.bf16.mxu0 %v2904
        %3134 = vmatpush2.bf16.msra.mxu0 %v2903
        %3135 = vmatprep.subr.bf16.mxu0 %v2900
        %3136 = vmatpush2.bf16.msra.mxu0 %v2899
        %3137 = vmatprep.subr.bf16.mxu0 %v2896
        %3138 = vmatpush2.bf16.msra.mxu0 %v2895
        %3139 = vmatprep.subr.bf16.mxu0 %v2892
        %3140 = vmatpush2.bf16.msra.mxu0 %v2891
        %3141 = vmatprep.subr.bf16.mxu0 %v2888
        %3142 = vmatpush2.bf16.msra.mxu0 %v2887
        %3143 = vmatprep.mubr.bf16.mxu0 %v2318
        %3144 = vmatmul.mubr.bf16.gmra.mxu0 %v2317
        %v3145 = vpop.f32.mrf.mxu0
        %v3146 = vadd.f32 %v2454, %v3145
        %v3147 = vpop.f32.mrf.mxu0
        %v3148 = vadd.f32 %v2458, %v3147
        %v3149 = vpop.f32.mrf.mxu0
        %v3150 = vpop.f32.mrf.mxu0
        %3151 = vdwg.mxu0
        %3152 = vmatprep.subr.bf16.mxu0 %v2948
        %3153 = vmatpush1.bf16.msra.mxu0 %v2947
        %3154 = vmatprep.subr.bf16.mxu0 %v2944
        %3155 = vmatpush1.bf16.msra.mxu0 %v2943
        %3156 = vmatprep.subr.bf16.mxu0 %v2940
        %3157 = vmatpush1.bf16.msra.mxu0 %v2939
        %3158 = vmatprep.subr.bf16.mxu0 %v2936
        %3159 = vmatpush1.bf16.msra.mxu0 %v2935
        %3160 = vmatprep.subr.bf16.mxu0 %v2932
        %3161 = vmatpush1.bf16.msra.mxu0 %v2931
        %3162 = vmatprep.subr.bf16.mxu0 %v2928
        %3163 = vmatpush1.bf16.msra.mxu0 %v2927
        %3164 = vmatprep.subr.bf16.mxu0 %v2924
        %3165 = vmatpush1.bf16.msra.mxu0 %v2923
        %3166 = vmatprep.subr.bf16.mxu0 %v2920
        %3167 = vmatpush1.bf16.msra.mxu0 %v2919
        %3168 = vmatprep.subr.bf16.mxu0 %v2980
        %3169 = vmatpush2.bf16.msra.mxu0 %v2979
        %3170 = vmatprep.subr.bf16.mxu0 %v2976
        %3171 = vmatpush2.bf16.msra.mxu0 %v2975
        %3172 = vmatprep.subr.bf16.mxu0 %v2972
        %3173 = vmatpush2.bf16.msra.mxu0 %v2971
        %3174 = vmatprep.subr.bf16.mxu0 %v2968
        %3175 = vmatpush2.bf16.msra.mxu0 %v2967
        %3176 = vmatprep.subr.bf16.mxu0 %v2964
        %3177 = vmatpush2.bf16.msra.mxu0 %v2963
        %3178 = vmatprep.subr.bf16.mxu0 %v2960
        %3179 = vmatpush2.bf16.msra.mxu0 %v2959
        %3180 = vmatprep.subr.bf16.mxu0 %v2956
        %3181 = vmatpush2.bf16.msra.mxu0 %v2955
        %3182 = vmatprep.subr.bf16.mxu0 %v2952
        %3183 = vmatpush2.bf16.msra.mxu0 %v2951
        %3184 = vmatprep.mubr.bf16.mxu0 %v2320
        %3185 = vmatmul.mubr.bf16.gmra.mxu0 %v2319
        %v3186 = vpop.f32.mrf.mxu0
        %v3187 = vadd.f32 %v3146, %v3186
        %v3188 = vpop.f32.mrf.mxu0
        %v3189 = vadd.f32 %v3148, %v3188
        %v3190 = vpop.f32.mrf.mxu0
        %v3191 = vpop.f32.mrf.mxu0
        %3192 = vdwg.mxu0
        %3193 = vmatprep.subr.bf16.mxu0 %v2886
        %3194 = vmatpush1.bf16.msra.mxu0 %v2885
        %3195 = vmatprep.subr.bf16.mxu0 %v2882
        %3196 = vmatpush1.bf16.msra.mxu0 %v2881
        %3197 = vmatprep.subr.bf16.mxu0 %v2878
        %3198 = vmatpush1.bf16.msra.mxu0 %v2877
        %3199 = vmatprep.subr.bf16.mxu0 %v2874
        %3200 = vmatpush1.bf16.msra.mxu0 %v2873
        %3201 = vmatprep.subr.bf16.mxu0 %v2870
        %3202 = vmatpush1.bf16.msra.mxu0 %v2869
        %3203 = vmatprep.subr.bf16.mxu0 %v2866
        %3204 = vmatpush1.bf16.msra.mxu0 %v2865
        %3205 = vmatprep.subr.bf16.mxu0 %v2862
        %3206 = vmatpush1.bf16.msra.mxu0 %v2861
        %3207 = vmatprep.subr.bf16.mxu0 %v2858
        %3208 = vmatpush1.bf16.msra.mxu0 %v2857
        %3209 = vmatprep.subr.bf16.mxu0 %v2918
        %3210 = vmatpush2.bf16.msra.mxu0 %v2917
        %3211 = vmatprep.subr.bf16.mxu0 %v2914
        %3212 = vmatpush2.bf16.msra.mxu0 %v2913
        %3213 = vmatprep.subr.bf16.mxu0 %v2910
        %3214 = vmatpush2.bf16.msra.mxu0 %v2909
        %3215 = vmatprep.subr.bf16.mxu0 %v2906
        %3216 = vmatpush2.bf16.msra.mxu0 %v2905
        %3217 = vmatprep.subr.bf16.mxu0 %v2902
        %3218 = vmatpush2.bf16.msra.mxu0 %v2901
        %3219 = vmatprep.subr.bf16.mxu0 %v2898
        %3220 = vmatpush2.bf16.msra.mxu0 %v2897
        %3221 = vmatprep.subr.bf16.mxu0 %v2894
        %3222 = vmatpush2.bf16.msra.mxu0 %v2893
        %3223 = vmatprep.subr.bf16.mxu0 %v2890
        %3224 = vmatpush2.bf16.msra.mxu0 %v2889
        %3225 = vmatprep.mubr.bf16.mxu0 %v2318
        %3226 = vmatmul.mubr.bf16.gmra.mxu0 %v2317
        %v3227 = vpop.f32.mrf.mxu0
        %v3228 = vadd.f32 %v2462, %v3227
        %v3229 = vpop.f32.mrf.mxu0
        %v3230 = vadd.f32 %v2466, %v3229
        %v3231 = vpop.f32.mrf.mxu0
        %v3232 = vpop.f32.mrf.mxu0
        %3233 = vdwg.mxu0
        %3234 = vmatprep.subr.bf16.mxu0 %v2950
        %3235 = vmatpush1.bf16.msra.mxu0 %v2949
        %3236 = vmatprep.subr.bf16.mxu0 %v2946
        %3237 = vmatpush1.bf16.msra.mxu0 %v2945
        %3238 = vmatprep.subr.bf16.mxu0 %v2942
        %3239 = vmatpush1.bf16.msra.mxu0 %v2941
        %3240 = vmatprep.subr.bf16.mxu0 %v2938
        %3241 = vmatpush1.bf16.msra.mxu0 %v2937
        %3242 = vmatprep.subr.bf16.mxu0 %v2934
        %3243 = vmatpush1.bf16.msra.mxu0 %v2933
        %3244 = vmatprep.subr.bf16.mxu0 %v2930
        %3245 = vmatpush1.bf16.msra.mxu0 %v2929
        %3246 = vmatprep.subr.bf16.mxu0 %v2926
        %3247 = vmatpush1.bf16.msra.mxu0 %v2925
        %3248 = vmatprep.subr.bf16.mxu0 %v2922
        %3249 = vmatpush1.bf16.msra.mxu0 %v2921
        %3250 = vmatprep.subr.bf16.mxu0 %v2982
        %3251 = vmatpush2.bf16.msra.mxu0 %v2981
        %3252 = vmatprep.subr.bf16.mxu0 %v2978
        %3253 = vmatpush2.bf16.msra.mxu0 %v2977
        %3254 = vmatprep.subr.bf16.mxu0 %v2974
        %3255 = vmatpush2.bf16.msra.mxu0 %v2973
        %3256 = vmatprep.subr.bf16.mxu0 %v2970
        %3257 = vmatpush2.bf16.msra.mxu0 %v2969
        %3258 = vmatprep.subr.bf16.mxu0 %v2966
        %3259 = vmatpush2.bf16.msra.mxu0 %v2965
        %3260 = vmatprep.subr.bf16.mxu0 %v2962
        %3261 = vmatpush2.bf16.msra.mxu0 %v2961
        %3262 = vmatprep.subr.bf16.mxu0 %v2958
        %3263 = vmatpush2.bf16.msra.mxu0 %v2957
        %3264 = vmatprep.subr.bf16.mxu0 %v2954
        %3265 = vmatpush2.bf16.msra.mxu0 %v2953
        %3266 = vmatprep.mubr.bf16.mxu0 %v2320
        %3267 = vmatmul.mubr.bf16.gmra.mxu0 %v2319
        %v3268 = vpop.f32.mrf.mxu0
        %v3269 = vadd.f32 %v3228, %v3268
        %v3270 = vpop.f32.mrf.mxu0
        %v3271 = vadd.f32 %v3230, %v3270
        %v3272 = vpop.f32.mrf.mxu0
        %v3273 = vpop.f32.mrf.mxu0
        %3274 = vdwg.mxu0
        %v3275 = vmax.f32 %v3187, 0.0
        %v3276 = vmax.f32 %v3189, 0.0
        %v3277 = vmax.f32 %v3269, 0.0
        %v3278 = vmax.f32 %v3271, 0.0
        %v3279 = vpack.c.bf16 %v3275, %v3275
        %v3280 = vpack.c.bf16 %v3276, %v3276
        %v3281 = vpack.c.bf16 %v3277, %v3277
        %v3282 = vpack.c.bf16 %v3278, %v3278
        %v3283 = vld [vmem:[#allocation11] sm:$0xf]
        %v3284 = vld [vmem:[#allocation11 + $0x4] sm:$0xf]
        %v3285 = vld [vmem:[#allocation11 + $0x8] sm:$0xf]
        %v3286 = vld [vmem:[#allocation11 + $0xc] sm:$0xf]
        %v3287 = vld [vmem:[#allocation11 + $0x10] sm:$0xf]
        %v3288 = vld [vmem:[#allocation11 + $0x14] sm:$0xf]
        %v3289 = vld [vmem:[#allocation11 + $0x18] sm:$0xf]
        %v3290 = vld [vmem:[#allocation11 + $0x1c] sm:$0xf]
        %v3291 = vld [vmem:[#allocation11 + $0x20] sm:$0xf]
        %v3292 = vld [vmem:[#allocation11 + $0x24] sm:$0xf]
        %v3293 = vld [vmem:[#allocation11 + $0x28] sm:$0xf]
        %v3294 = vld [vmem:[#allocation11 + $0x2c] sm:$0xf]
        %v3295 = vld [vmem:[#allocation11 + $0x30] sm:$0xf]
        %v3296 = vld [vmem:[#allocation11 + $0x34] sm:$0xf]
        %v3297 = vld [vmem:[#allocation11 + $0x38] sm:$0xf]
        %v3298 = vld [vmem:[#allocation11 + $0x3c] sm:$0xf]
        %v3299 = vld [vmem:[#allocation11 + $0x40] sm:$0xf]
        %v3300 = vld [vmem:[#allocation11 + $0x44] sm:$0xf]
        %v3301 = vld [vmem:[#allocation11 + $0x48] sm:$0xf]
        %v3302 = vld [vmem:[#allocation11 + $0x4c] sm:$0xf]
        %v3303 = vld [vmem:[#allocation11 + $0x50] sm:$0xf]
        %v3304 = vld [vmem:[#allocation11 + $0x54] sm:$0xf]
        %v3305 = vld [vmem:[#allocation11 + $0x58] sm:$0xf]
        %v3306 = vld [vmem:[#allocation11 + $0x5c] sm:$0xf]
        %v3307 = vld [vmem:[#allocation11 + $0x60] sm:$0xf]
        %v3308 = vld [vmem:[#allocation11 + $0x64] sm:$0xf]
        %v3309 = vld [vmem:[#allocation11 + $0x68] sm:$0xf]
        %v3310 = vld [vmem:[#allocation11 + $0x6c] sm:$0xf]
        %v3311 = vld [vmem:[#allocation11 + $0x70] sm:$0xf]
        %v3312 = vld [vmem:[#allocation11 + $0x74] sm:$0xf]
        %v3313 = vld [vmem:[#allocation11 + $0x78] sm:$0xf]
        %v3314 = vld [vmem:[#allocation11 + $0x7c] sm:$0xf]
        %v3315 = vld [vmem:[#allocation11 + $0x80] sm:$0xf]
        %v3316 = vld [vmem:[#allocation11 + $0x84] sm:$0xf]
        %v3317 = vld [vmem:[#allocation11 + $0x88] sm:$0xf]
        %v3318 = vld [vmem:[#allocation11 + $0x8c] sm:$0xf]
        %v3319 = vld [vmem:[#allocation11 + $0x90] sm:$0xf]
        %v3320 = vld [vmem:[#allocation11 + $0x94] sm:$0xf]
        %v3321 = vld [vmem:[#allocation11 + $0x98] sm:$0xf]
        %v3322 = vld [vmem:[#allocation11 + $0x9c] sm:$0xf]
        %v3323 = vld [vmem:[#allocation11 + $0xa0] sm:$0xf]
        %v3324 = vld [vmem:[#allocation11 + $0xa4] sm:$0xf]
        %v3325 = vld [vmem:[#allocation11 + $0xa8] sm:$0xf]
        %v3326 = vld [vmem:[#allocation11 + $0xac] sm:$0xf]
        %v3327 = vld [vmem:[#allocation11 + $0xb0] sm:$0xf]
        %v3328 = vld [vmem:[#allocation11 + $0xb4] sm:$0xf]
        %v3329 = vld [vmem:[#allocation11 + $0xb8] sm:$0xf]
        %v3330 = vld [vmem:[#allocation11 + $0xbc] sm:$0xf]
        %v3331 = vld [vmem:[#allocation11 + $0xc0] sm:$0xf]
        %v3332 = vld [vmem:[#allocation11 + $0xc4] sm:$0xf]
        %v3333 = vld [vmem:[#allocation11 + $0xc8] sm:$0xf]
        %v3334 = vld [vmem:[#allocation11 + $0xcc] sm:$0xf]
        %v3335 = vld [vmem:[#allocation11 + $0xd0] sm:$0xf]
        %v3336 = vld [vmem:[#allocation11 + $0xd4] sm:$0xf]
        %v3337 = vld [vmem:[#allocation11 + $0xd8] sm:$0xf]
        %v3338 = vld [vmem:[#allocation11 + $0xdc] sm:$0xf]
        %v3339 = vld [vmem:[#allocation11 + $0xe0] sm:$0xf]
        %v3340 = vld [vmem:[#allocation11 + $0xe4] sm:$0xf]
        %v3341 = vld [vmem:[#allocation11 + $0xe8] sm:$0xf]
        %v3342 = vld [vmem:[#allocation11 + $0xec] sm:$0xf]
        %v3343 = vld [vmem:[#allocation11 + $0xf0] sm:$0xf]
        %v3344 = vld [vmem:[#allocation11 + $0xf4] sm:$0xf]
        %v3345 = vld [vmem:[#allocation11 + $0xf8] sm:$0xf]
        %v3346 = vld [vmem:[#allocation11 + $0xfc] sm:$0xf]
        %v3347 = vld [vmem:[%s12] sm:$0x1]
        %v3349 = vlaneseq
        %v3350 = vshrl.u32 %v3349, 7
        %v3351 = vsub.s32 0, %v3350
        %v3352 = vrot.slane %v3347, %v3351
        %v3418 = vunpack.c.l.b16 %v3283
        %v3419 = vunpack.c.l.b16 %v3284
        %v3420 = vunpack.c.l.b16 %v3285
        %v3421 = vunpack.c.l.b16 %v3286
        %v3422 = vunpack.c.l.b16 %v3287
        %v3423 = vunpack.c.l.b16 %v3288
        %v3424 = vunpack.c.l.b16 %v3289
        %v3425 = vunpack.c.l.b16 %v3290
        %v3426 = vunpack.c.l.b16 %v3291
        %v3427 = vunpack.c.l.b16 %v3292
        %v3428 = vunpack.c.l.b16 %v3293
        %v3429 = vunpack.c.l.b16 %v3294
        %v3430 = vunpack.c.l.b16 %v3295
        %v3431 = vunpack.c.l.b16 %v3296
        %v3432 = vunpack.c.l.b16 %v3297
        %v3433 = vunpack.c.l.b16 %v3298
        %v3434 = vunpack.c.l.b16 %v3299
        %v3435 = vunpack.c.l.b16 %v3300
        %v3436 = vunpack.c.l.b16 %v3301
        %v3437 = vunpack.c.l.b16 %v3302
        %v3438 = vunpack.c.l.b16 %v3303
        %v3439 = vunpack.c.l.b16 %v3304
        %v3440 = vunpack.c.l.b16 %v3305
        %v3441 = vunpack.c.l.b16 %v3306
        %v3442 = vunpack.c.l.b16 %v3307
        %v3443 = vunpack.c.l.b16 %v3308
        %v3444 = vunpack.c.l.b16 %v3309
        %v3445 = vunpack.c.l.b16 %v3310
        %v3446 = vunpack.c.l.b16 %v3311
        %v3447 = vunpack.c.l.b16 %v3312
        %v3448 = vunpack.c.l.b16 %v3313
        %v3449 = vunpack.c.l.b16 %v3314
        %v3450 = vunpack.c.l.b16 %v3315
        %v3451 = vunpack.c.l.b16 %v3316
        %v3452 = vunpack.c.l.b16 %v3317
        %v3453 = vunpack.c.l.b16 %v3318
        %v3454 = vunpack.c.l.b16 %v3319
        %v3455 = vunpack.c.l.b16 %v3320
        %v3456 = vunpack.c.l.b16 %v3321
        %v3457 = vunpack.c.l.b16 %v3322
        %v3458 = vunpack.c.l.b16 %v3323
        %v3459 = vunpack.c.l.b16 %v3324
        %v3460 = vunpack.c.l.b16 %v3325
        %v3461 = vunpack.c.l.b16 %v3326
        %v3462 = vunpack.c.l.b16 %v3327
        %v3463 = vunpack.c.l.b16 %v3328
        %v3464 = vunpack.c.l.b16 %v3329
        %v3465 = vunpack.c.l.b16 %v3330
        %v3466 = vunpack.c.l.b16 %v3331
        %v3467 = vunpack.c.l.b16 %v3332
        %v3468 = vunpack.c.l.b16 %v3333
        %v3469 = vunpack.c.l.b16 %v3334
        %v3470 = vunpack.c.l.b16 %v3335
        %v3471 = vunpack.c.l.b16 %v3336
        %v3472 = vunpack.c.l.b16 %v3337
        %v3473 = vunpack.c.l.b16 %v3338
        %v3474 = vunpack.c.l.b16 %v3339
        %v3475 = vunpack.c.l.b16 %v3340
        %v3476 = vunpack.c.l.b16 %v3341
        %v3477 = vunpack.c.l.b16 %v3342
        %v3478 = vunpack.c.l.b16 %v3343
        %v3479 = vunpack.c.l.b16 %v3344
        %v3480 = vunpack.c.l.b16 %v3345
        %v3481 = vunpack.c.l.b16 %v3346
        %v3482 = vpack.c.b16 %v3419, %v3418
        %v3483 = vpack.c.b16 %v3421, %v3420
        %v3484 = vpack.c.b16 %v3423, %v3422
        %v3485 = vpack.c.b16 %v3425, %v3424
        %v3486 = vpack.c.b16 %v3427, %v3426
        %v3487 = vpack.c.b16 %v3429, %v3428
        %v3488 = vpack.c.b16 %v3431, %v3430
        %v3489 = vpack.c.b16 %v3433, %v3432
        %v3490 = vpack.c.b16 %v3435, %v3434
        %v3491 = vpack.c.b16 %v3437, %v3436
        %v3492 = vpack.c.b16 %v3439, %v3438
        %v3493 = vpack.c.b16 %v3441, %v3440
        %v3494 = vpack.c.b16 %v3443, %v3442
        %v3495 = vpack.c.b16 %v3445, %v3444
        %v3496 = vpack.c.b16 %v3447, %v3446
        %v3497 = vpack.c.b16 %v3449, %v3448
        %v3498 = vpack.c.b16 %v3451, %v3450
        %v3499 = vpack.c.b16 %v3453, %v3452
        %v3500 = vpack.c.b16 %v3455, %v3454
        %v3501 = vpack.c.b16 %v3457, %v3456
        %v3502 = vpack.c.b16 %v3459, %v3458
        %v3503 = vpack.c.b16 %v3461, %v3460
        %v3504 = vpack.c.b16 %v3463, %v3462
        %v3505 = vpack.c.b16 %v3465, %v3464
        %v3506 = vpack.c.b16 %v3467, %v3466
        %v3507 = vpack.c.b16 %v3469, %v3468
        %v3508 = vpack.c.b16 %v3471, %v3470
        %v3509 = vpack.c.b16 %v3473, %v3472
        %v3510 = vpack.c.b16 %v3475, %v3474
        %v3511 = vpack.c.b16 %v3477, %v3476
        %v3512 = vpack.c.b16 %v3479, %v3478
        %v3513 = vpack.c.b16 %v3481, %v3480
        %3546 = vmatprep.subr.bf16.mxu0 0
        %3547 = vmatpush1.bf16.msra.mxu0 %v3489
        %3548 = vmatprep.subr.bf16.mxu0 0
        %3549 = vmatpush1.bf16.msra.mxu0 %v3488
        %3550 = vmatprep.subr.bf16.mxu0 0
        %3551 = vmatpush1.bf16.msra.mxu0 %v3487
        %3552 = vmatprep.subr.bf16.mxu0 0
        %3553 = vmatpush1.bf16.msra.mxu0 %v3486
        %3554 = vmatprep.subr.bf16.mxu0 0
        %3555 = vmatpush1.bf16.msra.mxu0 %v3485
        %3556 = vmatprep.subr.bf16.mxu0 0
        %3557 = vmatpush1.bf16.msra.mxu0 %v3484
        %3558 = vmatprep.subr.bf16.mxu0 0
        %3559 = vmatpush1.bf16.msra.mxu0 %v3483
        %3560 = vmatprep.subr.bf16.mxu0 0
        %3561 = vmatpush1.bf16.msra.mxu0 %v3482
        %3562 = vmatprep.subr.bf16.mxu0 0
        %3563 = vmatpush2.bf16.msra.mxu0 %v3497
        %3564 = vmatprep.subr.bf16.mxu0 0
        %3565 = vmatpush2.bf16.msra.mxu0 %v3496
        %3566 = vmatprep.subr.bf16.mxu0 0
        %3567 = vmatpush2.bf16.msra.mxu0 %v3495
        %3568 = vmatprep.subr.bf16.mxu0 0
        %3569 = vmatpush2.bf16.msra.mxu0 %v3494
        %3570 = vmatprep.subr.bf16.mxu0 0
        %3571 = vmatpush2.bf16.msra.mxu0 %v3493
        %3572 = vmatprep.subr.bf16.mxu0 0
        %3573 = vmatpush2.bf16.msra.mxu0 %v3492
        %3574 = vmatprep.subr.bf16.mxu0 0
        %3575 = vmatpush2.bf16.msra.mxu0 %v3491
        %3576 = vmatprep.subr.bf16.mxu0 0
        %3577 = vmatpush2.bf16.msra.mxu0 %v3490
        %3578 = vmatprep.mubr.bf16.mxu0 %v3280
        %3579 = vmatmul.mubr.bf16.gmra.mxu0 %v3279
        %v3580 = vpop.f32.mrf.mxu0
        %v3581 = vadd.f32 %v3352, %v3580
        %v3582 = vpop.f32.mrf.mxu0
        %v3583 = vpop.f32.mrf.mxu0
        %v3584 = vpop.f32.mrf.mxu0
        %3585 = vdwg.mxu0
        %3586 = vmatprep.subr.bf16.mxu0 0
        %3587 = vmatpush1.bf16.msra.mxu0 %v3505
        %3588 = vmatprep.subr.bf16.mxu0 0
        %3589 = vmatpush1.bf16.msra.mxu0 %v3504
        %3590 = vmatprep.subr.bf16.mxu0 0
        %3591 = vmatpush1.bf16.msra.mxu0 %v3503
        %3592 = vmatprep.subr.bf16.mxu0 0
        %3593 = vmatpush1.bf16.msra.mxu0 %v3502
        %3594 = vmatprep.subr.bf16.mxu0 0
        %3595 = vmatpush1.bf16.msra.mxu0 %v3501
        %3596 = vmatprep.subr.bf16.mxu0 0
        %3597 = vmatpush1.bf16.msra.mxu0 %v3500
        %3598 = vmatprep.subr.bf16.mxu0 0
        %3599 = vmatpush1.bf16.msra.mxu0 %v3499
        %3600 = vmatprep.subr.bf16.mxu0 0
        %3601 = vmatpush1.bf16.msra.mxu0 %v3498
        %3602 = vmatprep.subr.bf16.mxu0 0
        %3603 = vmatpush2.bf16.msra.mxu0 %v3513
        %3604 = vmatprep.subr.bf16.mxu0 0
        %3605 = vmatpush2.bf16.msra.mxu0 %v3512
        %3606 = vmatprep.subr.bf16.mxu0 0
        %3607 = vmatpush2.bf16.msra.mxu0 %v3511
        %3608 = vmatprep.subr.bf16.mxu0 0
        %3609 = vmatpush2.bf16.msra.mxu0 %v3510
        %3610 = vmatprep.subr.bf16.mxu0 0
        %3611 = vmatpush2.bf16.msra.mxu0 %v3509
        %3612 = vmatprep.subr.bf16.mxu0 0
        %3613 = vmatpush2.bf16.msra.mxu0 %v3508
        %3614 = vmatprep.subr.bf16.mxu0 0
        %3615 = vmatpush2.bf16.msra.mxu0 %v3507
        %3616 = vmatprep.subr.bf16.mxu0 0
        %3617 = vmatpush2.bf16.msra.mxu0 %v3506
        %3618 = vmatprep.mubr.bf16.mxu0 %v3282
        %3619 = vmatmul.mubr.bf16.gmra.mxu0 %v3281
        %v3620 = vpop.f32.mrf.mxu0
        %v3621 = vadd.f32 %v3581, %v3620
        %v3622 = vpop.f32.mrf.mxu0
        %v3623 = vpop.f32.mrf.mxu0
        %v3624 = vpop.f32.mrf.mxu0
        %3625 = vdwg.mxu0
        %3626 = vst [vmem:[%s542] sm:$0xff] %v3621
        %s3627 = sand.u32 %s324, 1
        %s3628 = scalar_lea.sflag [#allocation4], %s3627
        %s3629 = sand.u32 %s324, 1
        %s3630 = smul.addr %s3629, 8
        %s3631 = scalar_lea.vmem [#allocation13], %s3630
        // Predicated region
        $region97: #{tpu_custom_call.1} parent=71 // pred_check
          %p3632 = pneg %p334
        $region98: #{tpu_custom_call.1} parent=71 // pred_check_branch
          %3634 = sbr.rel (%p3632) target = $region100
        $region99: #{tpu_custom_call.1} parent=71 // pred_region
          %s3636 = ssub.s32 128, 128
          %3637 = vsyncadd %s3628, %s3636
          %s3638 = smul.addr %s33, 128
          %s3639 = scalar_lea.hbm %s13, %s3638
          %s3641 = sshll.u32 %s3631, 4
          %s3642 = int_to_ptr.vmem [resolvable:$true] %s3641
          %3644 = dma.vmem_to_hbm [thread:$0]  %s3642, 128, %s3639, %s3628
        $region100: #{tpu_custom_call.1} parent=71 // pred_fallthru
          _
      $region72: #{tpu_custom_call.1} parent=5 // pred_fallthru
        _
      %p3645 = scmp.le.s32.totalorder 2, %s28
      // Predicated region
      $region101: #{tpu_custom_call.1} parent=5 // pred_check
        %p3646 = pneg %p3645
      $region102: #{tpu_custom_call.1} parent=5 // pred_check_branch
        %3648 = sbr.rel (%p3646) target = $region104
      $region103: #{tpu_custom_call.1} parent=5 // pred_region
        %s3649 = ssub.s32 %s28, 2
        // Predicated region
        $region105: #{tpu_custom_call.1} parent=103 // pred_check
          %p3650 = pneg %p340
        $region106: #{tpu_custom_call.1} parent=103 // pred_check_branch
          %3652 = sbr.rel (%p3650) target = $region108
        $region107: #{tpu_custom_call.1} parent=103 // pred_region
          %s3653 = sand.u32 %s325, 1
          %s3654 = scalar_lea.sflag [#allocation4], %s3653
          %s3655 = sand.u32 %s325, 1
          %s3656 = smul.addr %s3655, 8
          %s3657 = scalar_lea.vmem [#allocation13], %s3656
          %3658 = dma.done %s3654, 128
        $region108: #{tpu_custom_call.1} parent=103 // pred_fallthru
          _
      $region104: #{tpu_custom_call.1} parent=5 // pred_fallthru
        _
    $region6: #{tpu_custom_call.1} parent=1 // loop_footer
      %s32 = sadd.s32 1, %s28
    $region7: #{tpu_custom_call.1} parent=1 // loop_footer_branch
      %27 = sbr.rel target = $region3
    $region8: #{tpu_custom_call.1} parent=1 // loop_exit
      _
    %3659 = vsyncpa [#allocation3], 1
    %s3660 = scalar_lea.sflag [#allocation3], 1
    %3661 = vsyncpa %s3660, 1
    %3662 = vsyncpa [#allocation6], 1
    %3663 = vsyncpa [#allocation9], 1
    %3664 = vsyncpa [#allocation12], 1
    %3665 = vsyncpa [#allocation4], 1
    %s3666 = scalar_lea.sflag [#allocation4], 1
    %3667 = vsyncpa %s3666, 1

</llo_original>
